<compile_context>
chip_gen: v6e
topology: v6e:2x2x1
jax: 0.10.0
libtpu: 0.0.40
codegen_flags: <defaults>
</compile_context>

<pallas_src>
import jax
import jax.numpy as jnp
from jax import lax
from jax.experimental import pallas as pl
from jax.experimental.pallas import tpu as pltpu


_TB_MAX = 32   # max batch rows per grid step (multiple of 8 for sublanes)
_CJ = 128      # segment / chunk width (one full lane group)


def _rouge2_kernel(rk_ref, hk_ref, f1_ref):
    # rk/hk: packed bigram keys, [TB, Lp] int32.  key == 0 means the slot does
    # not hold a real bigram (padding, shifted-out last column, or a bigram
    # containing an ignored token).  Valid keys are always non-zero, so an
    # invalid slot can only ever compare equal to another invalid slot, and
    # those never reach the counts (masked by `valid & ~dup`).
    r_key = rk_ref[...]
    h_key = hk_ref[...]
    TB, Lp = r_key.shape
    n_seg = Lp // _CJ

    # Strict lower-triangular mask (j < i) for the diagonal block only; the
    # local mask equals the global one there because i0 == cs.
    i_loc = lax.broadcasted_iota(jnp.int32, (_CJ, _CJ), 0)
    j_loc = lax.broadcasted_iota(jnp.int32, (_CJ, _CJ), 1)
    tri = (j_loc < i_loc)[None, :, :]                      # [1, CJ, CJ]

    n_h = jnp.zeros((TB, 1), jnp.float32)      # |distinct hyp bigrams|
    n_r = jnp.zeros((TB, 1), jnp.float32)      # |distinct ref bigrams|
    overlap = jnp.zeros((TB, 1), jnp.float32)  # |distinct hyp bigrams in ref|

    # Static loops (fully unrolled; single (s, c) pair at the test shapes).
    for s in range(n_seg):
        i0 = s * _CJ
        h_i = h_key[:, i0:i0 + _CJ]                        # [TB, CJ]
        r_i = r_key[:, i0:i0 + _CJ]
        h_i3 = h_i[:, :, None]                             # [TB, CJ, 1]
        r_i3 = r_i[:, :, None]

        hit_s = None       # [TB, CJ] hyp bigram i matches some ref bigram
        dup_h_s = None     # [TB, CJ] hyp bigram i has an earlier equal
        dup_r_s = None     # [TB, CJ] ref bigram i has an earlier equal

        for c in range(n_seg):
            cs = c * _CJ
            r_c = r_key[:, cs:cs + _CJ][:, None, :]        # [TB, 1, CJ]

            # hyp-vs-ref hit: needs the full Lp x Lp sweep.
            hr = jnp.any(h_i3 == r_c, axis=2)              # [TB, CJ]
            hit_s = hr if hit_s is None else (hit_s | hr)

            # Duplicate flags: only chunks c <= s can hold an earlier (j < i)
            # equal; the diagonal block needs the triangular mask, earlier
            # blocks are fully "earlier" so no mask is needed.
            if c <= s:
                h_c = h_key[:, cs:cs + _CJ][:, None, :]
                if c == s:
                    dh = jnp.any((h_i3 == h_c) & tri, axis=2)
                    dr = jnp.any((r_i3 == r_c) & tri, axis=2)
                else:
                    dh = jnp.any(h_i3 == h_c, axis=2)
                    dr = jnp.any(r_i3 == r_c, axis=2)
                dup_h_s = dh if dup_h_s is None else (dup_h_s | dh)
                dup_r_s = dr if dup_r_s is None else (dup_r_s | dr)

        valid_h = h_i != 0
        valid_r = r_i != 0
        first_h = valid_h & ~dup_h_s           # first occurrence = distinct
        first_r = valid_r & ~dup_r_s

        n_h = n_h + jnp.sum(first_h.astype(jnp.float32), axis=1, keepdims=True)
        n_r = n_r + jnp.sum(first_r.astype(jnp.float32), axis=1, keepdims=True)
        overlap = overlap + jnp.sum((first_h & hit_s).astype(jnp.float32),
                                    axis=1, keepdims=True)

    precision = jnp.where(n_h > 0.0, overlap / jnp.maximum(n_h, 1.0), 0.0)
    recall = jnp.where(n_r > 0.0, overlap / jnp.maximum(n_r, 1.0), 0.0)
    f1 = 2.0 * precision * recall / (precision + recall + 1e-8)

    f1_ref[...] = f1


def _prep_keys(tokens, ignore_tokens, seq_pad, batch_pad):
    """Drop ignore-tokens (cumsum+scatter compaction, no argsort), build the
    packed bigram key for every position, pad sequence to a lane-aligned width
    and batch to a multiple of the batch tile.  Returns [batch_pad, seq_pad]
    int32 keys, 0 = invalid bigram slot."""
    tokens = tokens.astype(jnp.int32)
    B, L = tokens.shape

    valid = jnp.ones(tokens.shape, dtype=bool)
    for t in ignore_tokens:
        valid = valid & (tokens != t)

    # Destination slot for each surviving token; invalid tokens go to an
    # overflow column that is dropped afterwards.
    dest = jnp.where(valid, jnp.cumsum(valid.astype(jnp.int32), axis=1) - 1,
                     seq_pad)
    rows = jnp.arange(B, dtype=jnp.int32)[:, None]
    compact = jnp.full((B, seq_pad + 1), -1, dtype=jnp.int32)
    compact = compact.at[rows, dest].set(tokens)[:, :seq_pad]

    firsts = compact
    seconds = jnp.concatenate(
        [compact[:, 1:], jnp.full((B, 1), -1, dtype=jnp.int32)], axis=1)
    valid_bigram = (firsts >= 0) & (seconds >= 0)

    # Pack (first, second) into one int32 key.  Bijective (for equality) as
    # long as token ids fit in 16 bits, and never 0 because second+1 >= 1.
    # TODO(synk): for vocabularies with ids >= 2**16 - 1 this packing would
    # alias distinct bigrams; fall back to the dual-token comparison there.
    keys = jnp.where(valid_bigram,
                     ((firsts + 1) << 16) | (seconds + 1),
                     0).astype(jnp.int32)

    if batch_pad > B:
        keys = jnp.pad(keys, ((0, batch_pad - B), (0, 0)))   # pad key = 0
    return keys


def rouge2_score_pallas(targets, outputs, ignore_tokens=(0, 1)):
    """Batch-mean ROUGE-2 F1 of hypotheses `outputs` against references
    `targets`, with `ignore_tokens` removed first."""
    B, L = targets.shape
    seq_pad = max(_CJ, pl.cdiv(L, _CJ) * _CJ)

    # Batch tile: as big as _TB_MAX to amortize per-grid-step overhead, but
    # always >= 2 grid steps so v7x's second TensorCore gets half the batch.
    tb = min(_TB_MAX, max(8, 8 * pl.cdiv(pl.cdiv(B, 2), 8)))
    batch_pad = max(pl.cdiv(B, tb) * tb, 2 * tb)

    r_key = _prep_keys(targets, ignore_tokens, seq_pad, batch_pad)   # refs
    h_key = _prep_keys(outputs, ignore_tokens, seq_pad, batch_pad)   # hyps

    tok_spec = pl.BlockSpec((tb, seq_pad), lambda i: (i, 0))

    f1 = pl.pallas_call(
        _rouge2_kernel,
        out_shape=jax.ShapeDtypeStruct((batch_pad, 1), jnp.float32),
        grid_spec=pltpu.PrefetchScalarGridSpec(
            num_scalar_prefetch=0,
            grid=(batch_pad // tb,),
            in_specs=[tok_spec, tok_spec],
            out_specs=pl.BlockSpec((tb, 1), lambda i: (i, 0)),
        ),
        compiler_params=pltpu.CompilerParams(
            dimension_semantics=("parallel",),
            vmem_limit_bytes=32 * 1024 * 1024,   # sized for v7x's 64 MiB VMEM
        ),
    )(r_key, h_key)

    # Batch mean over the real (non-padded) samples, in plain JAX.
    return jnp.mean(f1[:B, 0])


def rouge2_forward(outputs, targets):
    """Mirrors Rouge2Score.forward(outputs, targets)."""
    # TODO(synk): the unitorch registry / from_core_configure plumbing and the
    # hasattr(outputs, 'sequences') / hasattr(targets, 'refs') attribute
    # dispatch are host-side glue with no kernel equivalent; only the rouge2
    # F1 computation is implemented.
    return rouge2_score_pallas(targets, outputs, ignore_tokens=(0, 1))


def _rouge2_reference(targets, outputs, ignore_tokens=(0, 1)):
    """Pure-python reference (set-based ROUGE-2 F1, batch mean)."""
    f1s = []
    for r, h in zip(targets.tolist(), outputs.tolist()):
        r = [t for t in r if t not in ignore_tokens]
        h = [t for t in h if t not in ignore_tokens]
        rb = set(zip(r[:-1], r[1:]))
        hb = set(zip(h[:-1], h[1:]))
        ov = len(rb & hb)
        p = ov / len(hb) if hb else 0.0
        rc = ov / len(rb) if rb else 0.0
        f1s.append(2.0 * p * rc / (p + rc + 1e-8))
    return sum(f1s) / len(f1s)


if __name__ == "__main__":
    # Small shapes consistent with the module: batch=2, seq=16, vocab=20.
    key = jax.random.PRNGKey(0)
    k1, k2 = jax.random.split(key)
    B, L, V = 2, 16, 20
    # outputs ~ model-generated token ids, targets ~ reference token ids.
    # ids 0/1 act as pad/bos (the ignore tokens).
    outputs = jax.random.randint(k1, (B, L), 0, V, dtype=jnp.int32)
    targets = jax.random.randint(k2, (B, L), 0, V, dtype=jnp.int32)
    # Force some overlap so the score is non-trivial.
    outputs = outputs.at[0, : L // 2].set(targets[0, : L // 2])

    score = rouge2_forward(outputs, targets)
    score = jax.block_until_ready(score)

    ref = _rouge2_reference(jax.device_get(targets), jax.device_get(outputs))
    assert abs(float(score) - ref) < 1e-5, (float(score), ref)

    print("KERNEL_OK")
</pallas_src>

<mosaic_0001>
module attributes {stable_mosaic.version = 11 : i64} {
  func.func @_rouge2_kernel(%arg0: i32, %arg1: memref<8x128xi32, #tpu.memory_space<vmem>>, %arg2: memref<8x128xi32, #tpu.memory_space<vmem>>, %arg3: memref<8x1xf32, #tpu.memory_space<vmem>>) attributes {dimension_semantics = [#tpu.dimension_semantics<parallel>], iteration_bounds = array<i64: 2>, scalar_prefetch = 0 : i64, scratch_operands = 0 : i64, tpu.core_type = #tpu.core_type<tc>, window_params = [{transform_indices = @transform_0, window_bounds = array<i64: 8, 128>}, {transform_indices = @transform_1, window_bounds = array<i64: 8, 128>}, {transform_indices = @transform_2, window_bounds = array<i64: 8, 1>}]} {
    %c0 = arith.constant 0 : index
    %c0_0 = arith.constant 0 : index
    %0 = vector.load %arg1[%c0, %c0_0] : memref<8x128xi32, #tpu.memory_space<vmem>>, vector<8x128xi32>
    %c0_1 = arith.constant 0 : index
    %c0_2 = arith.constant 0 : index
    %1 = vector.load %arg2[%c0_1, %c0_2] : memref<8x128xi32, #tpu.memory_space<vmem>>, vector<8x128xi32>
    %2 = tpu.iota {dimensions = array<i32: 0>} : vector<128x128xi32>
    %3 = tpu.iota {dimensions = array<i32: 1>} : vector<128x128xi32>
    %4 = arith.cmpi slt, %3, %2 : vector<128x128xi32>
    %5 = vector.shape_cast %4 : vector<128x128xi1> to vector<1x128x128xi1>
    %cst = arith.constant 0.000000e+00 : f32
    %6 = vector.broadcast %cst : f32 to vector<8x1xf32>
    %cst_3 = arith.constant 0.000000e+00 : f32
    %7 = vector.broadcast %cst_3 : f32 to vector<8x1xf32>
    %cst_4 = arith.constant 0.000000e+00 : f32
    %8 = vector.broadcast %cst_4 : f32 to vector<8x1xf32>
    %9 = vector.shape_cast %1 : vector<8x128xi32> to vector<8x128x1xi32>
    %10 = vector.shape_cast %0 : vector<8x128xi32> to vector<8x128x1xi32>
    %11 = vector.shape_cast %0 : vector<8x128xi32> to vector<8x1x128xi32>
    %12 = vector.broadcast %9 : vector<8x128x1xi32> to vector<8x128x128xi32>
    %13 = vector.broadcast %11 : vector<8x1x128xi32> to vector<8x128x128xi32>
    %14 = arith.cmpi eq, %12, %13 : vector<8x128x128xi32>
    %cst_5 = arith.constant 1.000000e+00 : f32
    %cst_6 = arith.constant 0.000000e+00 : f32
    %15 = vector.broadcast %cst_5 : f32 to vector<8x128x128xf32>
    %16 = vector.broadcast %cst_6 : f32 to vector<8x128x128xf32>
    %17 = arith.select %14, %15, %16 : vector<8x128x128xi1>, vector<8x128x128xf32>
    %cst_7 = arith.constant dense<0xFF800000> : vector<8x128xf32>
    %18 = vector.multi_reduction <maximumf>, %17, %cst_7 [2] : vector<8x128x128xf32> to vector<8x128xf32>
    %cst_8 = arith.constant 0.000000e+00 : f32
    %19 = vector.broadcast %cst_8 : f32 to vector<8x128xf32>
    %20 = arith.cmpf ogt, %18, %19 : vector<8x128xf32>
    %21 = vector.shape_cast %1 : vector<8x128xi32> to vector<8x1x128xi32>
    %22 = vector.broadcast %9 : vector<8x128x1xi32> to vector<8x128x128xi32>
    %23 = vector.broadcast %21 : vector<8x1x128xi32> to vector<8x128x128xi32>
    %24 = arith.cmpi eq, %22, %23 : vector<8x128x128xi32>
    %25 = vector.broadcast %5 : vector<1x128x128xi1> to vector<8x128x128xi1>
    %26 = arith.andi %24, %25 : vector<8x128x128xi1>
    %cst_9 = arith.constant 1.000000e+00 : f32
    %cst_10 = arith.constant 0.000000e+00 : f32
    %27 = vector.broadcast %cst_9 : f32 to vector<8x128x128xf32>
    %28 = vector.broadcast %cst_10 : f32 to vector<8x128x128xf32>
    %29 = arith.select %26, %27, %28 : vector<8x128x128xi1>, vector<8x128x128xf32>
    %cst_11 = arith.constant dense<0xFF800000> : vector<8x128xf32>
    %30 = vector.multi_reduction <maximumf>, %29, %cst_11 [2] : vector<8x128x128xf32> to vector<8x128xf32>
    %cst_12 = arith.constant 0.000000e+00 : f32
    %31 = vector.broadcast %cst_12 : f32 to vector<8x128xf32>
    %32 = arith.cmpf ogt, %30, %31 : vector<8x128xf32>
    %33 = vector.broadcast %10 : vector<8x128x1xi32> to vector<8x128x128xi32>
    %34 = vector.broadcast %11 : vector<8x1x128xi32> to vector<8x128x128xi32>
    %35 = arith.cmpi eq, %33, %34 : vector<8x128x128xi32>
    %36 = vector.broadcast %5 : vector<1x128x128xi1> to vector<8x128x128xi1>
    %37 = arith.andi %35, %36 : vector<8x128x128xi1>
    %cst_13 = arith.constant 1.000000e+00 : f32
    %cst_14 = arith.constant 0.000000e+00 : f32
    %38 = vector.broadcast %cst_13 : f32 to vector<8x128x128xf32>
    %39 = vector.broadcast %cst_14 : f32 to vector<8x128x128xf32>
    %40 = arith.select %37, %38, %39 : vector<8x128x128xi1>, vector<8x128x128xf32>
    %cst_15 = arith.constant dense<0xFF800000> : vector<8x128xf32>
    %41 = vector.multi_reduction <maximumf>, %40, %cst_15 [2] : vector<8x128x128xf32> to vector<8x128xf32>
    %cst_16 = arith.constant 0.000000e+00 : f32
    %42 = vector.broadcast %cst_16 : f32 to vector<8x128xf32>
    %43 = arith.cmpf ogt, %41, %42 : vector<8x128xf32>
    %c0_i32 = arith.constant 0 : i32
    %44 = vector.broadcast %c0_i32 : i32 to vector<8x128xi32>
    %45 = arith.cmpi ne, %1, %44 : vector<8x128xi32>
    %c0_i32_17 = arith.constant 0 : i32
    %46 = vector.broadcast %c0_i32_17 : i32 to vector<8x128xi32>
    %47 = arith.cmpi ne, %0, %46 : vector<8x128xi32>
    %cst_18 = arith.constant dense<true> : vector<8x128xi1>
    %48 = arith.xori %32, %cst_18 : vector<8x128xi1>
    %49 = arith.andi %45, %48 : vector<8x128xi1>
    %cst_19 = arith.constant dense<true> : vector<8x128xi1>
    %50 = arith.xori %43, %cst_19 : vector<8x128xi1>
    %51 = arith.andi %47, %50 : vector<8x128xi1>
    %52 = arith.extui %49 : vector<8x128xi1> to vector<8x128xi32>
    %53 = arith.sitofp %52 : vector<8x128xi32> to vector<8x128xf32>
    %cst_20 = arith.constant dense<0.000000e+00> : vector<8xf32>
    %54 = vector.multi_reduction <add>, %53, %cst_20 [1] : vector<8x128xf32> to vector<8xf32>
    %55 = vector.shape_cast %54 : vector<8xf32> to vector<8x1xf32>
    %56 = arith.addf %6, %55 : vector<8x1xf32>
    %57 = arith.extui %51 : vector<8x128xi1> to vector<8x128xi32>
    %58 = arith.sitofp %57 : vector<8x128xi32> to vector<8x128xf32>
    %cst_21 = arith.constant dense<0.000000e+00> : vector<8xf32>
    %59 = vector.multi_reduction <add>, %58, %cst_21 [1] : vector<8x128xf32> to vector<8xf32>
    %60 = vector.shape_cast %59 : vector<8xf32> to vector<8x1xf32>
    %61 = arith.addf %7, %60 : vector<8x1xf32>
    %62 = arith.andi %49, %20 : vector<8x128xi1>
    %63 = arith.extui %62 : vector<8x128xi1> to vector<8x128xi32>
    %64 = arith.sitofp %63 : vector<8x128xi32> to vector<8x128xf32>
    %cst_22 = arith.constant dense<0.000000e+00> : vector<8xf32>
    %65 = vector.multi_reduction <add>, %64, %cst_22 [1] : vector<8x128xf32> to vector<8xf32>
    %66 = vector.shape_cast %65 : vector<8xf32> to vector<8x1xf32>
    %67 = arith.addf %8, %66 : vector<8x1xf32>
    %cst_23 = arith.constant 0.000000e+00 : f32
    %68 = vector.broadcast %cst_23 : f32 to vector<8x1xf32>
    %69 = arith.cmpf ogt, %56, %68 : vector<8x1xf32>
    %cst_24 = arith.constant 1.000000e+00 : f32
    %70 = vector.broadcast %cst_24 : f32 to vector<8x1xf32>
    %71 = arith.maximumf %56, %70 : vector<8x1xf32>
    %72 = arith.divf %67, %71 : vector<8x1xf32>
    %cst_25 = arith.constant 0.000000e+00 : f32
    %73 = vector.broadcast %cst_25 : f32 to vector<8x1xf32>
    %74 = arith.select %69, %72, %73 : vector<8x1xi1>, vector<8x1xf32>
    %cst_26 = arith.constant 0.000000e+00 : f32
    %75 = vector.broadcast %cst_26 : f32 to vector<8x1xf32>
    %76 = arith.cmpf ogt, %61, %75 : vector<8x1xf32>
    %cst_27 = arith.constant 1.000000e+00 : f32
    %77 = vector.broadcast %cst_27 : f32 to vector<8x1xf32>
    %78 = arith.maximumf %61, %77 : vector<8x1xf32>
    %79 = arith.divf %67, %78 : vector<8x1xf32>
    %cst_28 = arith.constant 0.000000e+00 : f32
    %80 = vector.broadcast %cst_28 : f32 to vector<8x1xf32>
    %81 = arith.select %76, %79, %80 : vector<8x1xi1>, vector<8x1xf32>
    %cst_29 = arith.constant 2.000000e+00 : f32
    %82 = vector.broadcast %cst_29 : f32 to vector<8x1xf32>
    %83 = arith.mulf %82, %74 : vector<8x1xf32>
    %84 = arith.mulf %83, %81 : vector<8x1xf32>
    %85 = arith.addf %74, %81 : vector<8x1xf32>
    %cst_30 = arith.constant 9.99999993E-9 : f32
    %86 = vector.broadcast %cst_30 : f32 to vector<8x1xf32>
    %87 = arith.addf %85, %86 : vector<8x1xf32>
    %88 = arith.divf %84, %87 : vector<8x1xf32>
    %c0_31 = arith.constant 0 : index
    %c0_32 = arith.constant 0 : index
    %89 = vector.load %arg3[%c0_31, %c0_32] : memref<8x1xf32, #tpu.memory_space<vmem>>, vector<8x1xf32>
    tpu.vector_store %arg3[%c0_31, %c0_32], %88 {strides = array<i32>} : memref<8x1xf32, #tpu.memory_space<vmem>>, vector<8x1xf32>,
    return
  }
  func.func @transform_0(%arg0: i32) -> (i32, i32) {
    %c0_i32 = arith.constant 0 : i32
    %c0_i32_0 = arith.constant 0 : i32
    return %arg0, %c0_i32 : i32, i32
  }
  func.func @transform_1(%arg0: i32) -> (i32, i32) {
    %c0_i32 = arith.constant 0 : i32
    %c0_i32_0 = arith.constant 0 : i32
    return %arg0, %c0_i32 : i32, i32
  }
  func.func @transform_2(%arg0: i32) -> (i32, i32) {
    %c0_i32 = arith.constant 0 : i32
    %c0_i32_0 = arith.constant 0 : i32
    return %arg0, %c0_i32 : i32, i32
  }
}

</mosaic_0001>

<llo_original>
// kernel: tpu_custom_call.1
$region0: #{tpu_custom_call.1}
  #allocation0 [shape = 'u32[]', space=smem, size = 0x4, offset = 0x4, fixed_abs, tag = 'smem constant byte address 0x4 - core index']
  #allocation1 [shape = 'u32[144,128]{1,0:T(1,128)}', space=vmem, size = 0x12000, scoped, tag = 'internal scratch']
  %s0 = inlined_call_operand.hbm [shape: s32[16,128], index: 0, kind: input, shape index: {}]
  %s1 = inlined_call_operand.hbm [shape: s32[16,128], index: 1, kind: input, shape index: {}]
  %s2 = inlined_call_operand.vmem [shape: f32[16,1], index: 2, kind: output, shape index: {}]
  %s3 = sld [smem:[#allocation0]]
  $region49: #{tpu_custom_call.1} parent=0
    _
  %s5 = ssub.s32 1, %s3
  %s6 = scalar_select 0, %s5, %s3
  $region1: #{tpu_custom_call.1} parent=0
    #allocation2 [shape = 'u8[8192]{0}', space=vmem, size = 0x2000, scoped, tag = 'input window, operand 0']
    #allocation3 [shape = 's32[2]{0}', space=sflag, size = 0x8, scoped, tag = 'scoped memory for tpu_custom_call.1']
    #allocation4 [shape = 'u8[8192]{0}', space=vmem, size = 0x2000, scoped, tag = 'input window, operand 1']
    #allocation5 [shape = 's32[2]{0}', space=sflag, size = 0x8, scoped, tag = 'scoped memory for tpu_custom_call.1']
    %7 = vsyncpa [#allocation3], 0
    %s8 = scalar_lea.sflag [#allocation3], 1
    %9 = vsyncpa %s8, 0
    %10 = vsyncpa [#allocation5], 0
    %s11 = scalar_lea.sflag [#allocation5], 1
    %12 = vsyncpa %s11, 0
    loop: start=0, step=1, limit=4
    $region2: #{tpu_custom_call.1} parent=1 // loop_pre_header
      _
    $region3: #{tpu_custom_call.1} parent=1 // loop_header
      %s14 = sphi 0, %s18
      %p15 = scmp.ge.s32.totalorder %s14, 4
      %s24 = sphi 0, %s26
      %s27 = sphi 0, %s24
      %s28 = sphi 0, %s27
      %s44 = sphi 0, %s28
      %s50 = sphi 0, %s52
      %s53 = sphi 0, %s50
      %s54 = sphi 0, %s53
      %s70 = sphi 0, %s54
      %s76 = sphi 0, %s78
      %s79 = sphi 0, %s76
      %s80 = sphi 0, %s79
      %s96 = sphi 0, %s80
    $region4: #{tpu_custom_call.1} parent=1 // loop_header_branch
      %17 = sbr.rel (%p15) target = $region8
    $region5: #{tpu_custom_call.1} parent=1 // loop_body
      %s19 = ssub.s32 %s14, 1
      %s20 = ssub.s32 %s14, 2
      %s21 = sadd.s32 %s14, 1
      %s22 = ssub.s32 %s14, %s21
      %p23 = scmp.eq.s32.totalorder %s22, 0
      %s25 = sadd.s32 %s24, 1
      %s26 = scalar_select %p23, %s24, %s25
      %p29 = pneg %p23
      %p30 = scmp.eq.s32.totalorder %s14, 1
      %p31 = por %p29, %p30
      %p32 = scmp.ne.s32.totalorder %s24, %s27
      %p33 = scmp.eq.s32.totalorder %s14, 0
      %p34 = por %p32, %p33
      %p35 = scmp.ne.s32.totalorder %s24, %s27
      %p36 = scmp.eq.s32.totalorder %s19, 1
      %p37 = por %p35, %p36
      %p38 = scmp.ne.s32.totalorder %s27, %s28
      %p39 = scmp.eq.s32.totalorder %s19, 0
      %p40 = por %p38, %p39
      %p41 = scmp.ne.s32.totalorder %s27, %s28
      %p42 = scmp.eq.s32.totalorder %s20, 1
      %p43 = por %p41, %p42
      %p45 = scmp.ne.s32.totalorder %s28, %s44
      %p46 = scmp.eq.s32.totalorder %s20, 0
      %p47 = por %p45, %p46
      %s48 = ssub.s32 %s14, %s21
      %p49 = scmp.eq.s32.totalorder %s48, 0
      %s51 = sadd.s32 %s50, 1
      %s52 = scalar_select %p49, %s50, %s51
      %p55 = pneg %p49
      %p56 = scmp.eq.s32.totalorder %s14, 1
      %p57 = por %p55, %p56
      %p58 = scmp.ne.s32.totalorder %s50, %s53
      %p59 = scmp.eq.s32.totalorder %s14, 0
      %p60 = por %p58, %p59
      %p61 = scmp.ne.s32.totalorder %s50, %s53
      %p62 = scmp.eq.s32.totalorder %s19, 1
      %p63 = por %p61, %p62
      %p64 = scmp.ne.s32.totalorder %s53, %s54
      %p65 = scmp.eq.s32.totalorder %s19, 0
      %p66 = por %p64, %p65
      %p67 = scmp.ne.s32.totalorder %s53, %s54
      %p68 = scmp.eq.s32.totalorder %s20, 1
      %p69 = por %p67, %p68
      %p71 = scmp.ne.s32.totalorder %s54, %s70
      %p72 = scmp.eq.s32.totalorder %s20, 0
      %p73 = por %p71, %p72
      %s74 = ssub.s32 %s14, %s21
      %p75 = scmp.eq.s32.totalorder %s74, 0
      %s77 = sadd.s32 %s76, 1
      %s78 = scalar_select %p75, %s76, %s77
      %p81 = pneg %p75
      %p82 = scmp.eq.s32.totalorder %s14, 1
      %p83 = por %p81, %p82
      %p84 = scmp.ne.s32.totalorder %s76, %s79
      %p85 = scmp.eq.s32.totalorder %s14, 0
      %p86 = por %p84, %p85
      %p87 = scmp.ne.s32.totalorder %s76, %s79
      %p88 = scmp.eq.s32.totalorder %s19, 1
      %p89 = por %p87, %p88
      %p90 = scmp.ne.s32.totalorder %s79, %s80
      %p91 = scmp.eq.s32.totalorder %s19, 0
      %p92 = por %p90, %p91
      %p93 = scmp.ne.s32.totalorder %s79, %s80
      %p94 = scmp.eq.s32.totalorder %s20, 1
      %p95 = por %p93, %p94
      %p97 = scmp.ne.s32.totalorder %s80, %s96
      %p98 = scmp.eq.s32.totalorder %s20, 0
      %p99 = por %p97, %p98
      %p100 = scmp.le.s32.totalorder 1, %s14
      %p101 = scmp.lt.s32.totalorder %s14, 3
      %p102 = pnand %p100, %p101
      %p103 = pneg %p102
      // Predicated region
      $region9: #{tpu_custom_call.1} parent=5 // pred_check
        _
      $region10: #{tpu_custom_call.1} parent=5 // pred_check_branch
        %105 = sbr.rel (%p102) target = $region12
      $region11: #{tpu_custom_call.1} parent=5 // pred_region
        %s106 = ssub.s32 %s14, 1
      $region12: #{tpu_custom_call.1} parent=5 // pred_fallthru
        _
      %p107 = scmp.lt.s32.totalorder %s14, 2
      // Predicated region
      $region13: #{tpu_custom_call.1} parent=5 // pred_check
        %p108 = pneg %p107
      $region14: #{tpu_custom_call.1} parent=5 // pred_check_branch
        %110 = sbr.rel (%p108) target = $region16
      $region15: #{tpu_custom_call.1} parent=5 // pred_region
        // Predicated region
        $region17: #{tpu_custom_call.1} parent=15 // pred_check
          %p111 = pneg %p34
        $region18: #{tpu_custom_call.1} parent=15 // pred_check_branch
          %113 = sbr.rel (%p111) target = $region20
        $region19: #{tpu_custom_call.1} parent=15 // pred_region
          %s114 = sand.u32 %s24, 1
          %s115 = scalar_lea.sflag [#allocation3], %s114
          %s116 = sand.u32 %s24, 1
          %s117 = smul.addr %s116, 8
          %s118 = scalar_lea.vmem [#allocation2], %s117
          %s120 = ssub.s32 128, 128
          %121 = vsyncadd %s115, %s120
          %s122 = smul.addr %s14, 128
          %s123 = scalar_lea.hbm %s0, %s122
          %s125 = sshll.u32 %s118, 4
          %s126 = int_to_ptr.vmem [resolvable:$true] %s125
          %128 = dma.hbm_to_vmem [thread:$0]  %s123, 128, %s126, %s115
        $region20: #{tpu_custom_call.1} parent=15 // pred_fallthru
          _
        // Predicated region
        $region21: #{tpu_custom_call.1} parent=15 // pred_check
          %p129 = pneg %p60
        $region22: #{tpu_custom_call.1} parent=15 // pred_check_branch
          %131 = sbr.rel (%p129) target = $region24
        $region23: #{tpu_custom_call.1} parent=15 // pred_region
          %s132 = sand.u32 %s50, 1
          %s133 = scalar_lea.sflag [#allocation5], %s132
          %s134 = sand.u32 %s50, 1
          %s135 = smul.addr %s134, 8
          %s136 = scalar_lea.vmem [#allocation4], %s135
          %s138 = ssub.s32 128, 128
          %139 = vsyncadd %s133, %s138
          %s140 = smul.addr %s14, 128
          %s141 = scalar_lea.hbm %s1, %s140
          %s143 = sshll.u32 %s136, 4
          %s144 = int_to_ptr.vmem [resolvable:$true] %s143
          %146 = dma.hbm_to_vmem [thread:$0]  %s141, 128, %s144, %s133
        $region24: #{tpu_custom_call.1} parent=15 // pred_fallthru
          _
      $region16: #{tpu_custom_call.1} parent=5 // pred_fallthru
        _
      %p147 = scmp.le.s32.totalorder 1, %s14
      %p148 = scmp.lt.s32.totalorder %s14, 3
      %p149 = pnand %p147, %p148
      %p150 = pneg %p149
      // Predicated region
      $region25: #{tpu_custom_call.1} parent=5 // pred_check
        _
      $region26: #{tpu_custom_call.1} parent=5 // pred_check_branch
        %152 = sbr.rel (%p149) target = $region28
      $region27: #{tpu_custom_call.1} parent=5 // pred_region
        %s153 = ssub.s32 %s14, 1
        %s154 = sand.u32 %s27, 1
        %s155 = scalar_lea.sflag [#allocation3], %s154
        %s156 = sand.u32 %s27, 1
        %s157 = smul.addr %s156, 8
        %s158 = scalar_lea.vmem [#allocation2], %s157
        // Predicated region
        $region29: #{tpu_custom_call.1} parent=27 // pred_check
          %p159 = pneg %p40
        $region30: #{tpu_custom_call.1} parent=27 // pred_check_branch
          %161 = sbr.rel (%p159) target = $region32
        $region31: #{tpu_custom_call.1} parent=27 // pred_region
          %162 = dma.done %s155, 128
        $region32: #{tpu_custom_call.1} parent=27 // pred_fallthru
          _
        %s163 = sand.u32 %s53, 1
        %s164 = scalar_lea.sflag [#allocation5], %s163
        %s165 = sand.u32 %s53, 1
        %s166 = smul.addr %s165, 8
        %s167 = scalar_lea.vmem [#allocation4], %s166
        // Predicated region
        $region33: #{tpu_custom_call.1} parent=27 // pred_check
          %p168 = pneg %p66
        $region34: #{tpu_custom_call.1} parent=27 // pred_check_branch
          %170 = sbr.rel (%p168) target = $region36
        $region35: #{tpu_custom_call.1} parent=27 // pred_region
          %171 = dma.done %s164, 128
        $region36: #{tpu_custom_call.1} parent=27 // pred_fallthru
          _
        %s172 = sand.u32 %s27, 1
        %s173 = scalar_lea.sflag [#allocation3], %s172
        %s174 = sand.u32 %s27, 1
        %s175 = smul.addr %s174, 8
        %s176 = scalar_lea.vmem [#allocation2], %s175
        %p177 = pneg %p40
        %p178 = pneg %p37
        %s179 = sand.u32 %s53, 1
        %s180 = scalar_lea.sflag [#allocation5], %s179
        %s181 = sand.u32 %s53, 1
        %s182 = smul.addr %s181, 8
        %s183 = scalar_lea.vmem [#allocation4], %s182
        %p184 = pneg %p66
        %p185 = pneg %p63
        %p186 = pneg %p92
        %p187 = pneg %p89
        %p188 = scmp.lt.s32.totalorder %s19, 1
        %s189 = scalar_select %p188, %s19, 1
        %s190 = smul.addr %s189, 8
        %s191 = scalar_lea.vmem %s2, %s190
        %p192 = scmp.lt.s32.totalorder %s19, 1
        %s193 = scalar_select %p192, %s19, 1
        %s194 = smul.addr %s193, 8
        %s195 = scalar_lea.vmem %s2, %s194
        %v196 = vld [vmem:[%s158] sm:$0xff]
        %v197 = vld [vmem:[%s167] sm:$0xff]
        %v198 = vlaneseq
        %v199 = vshrl.u32 %v198, 7
        %v200 = vadd.s32 %v199, 8
        %v201 = vadd.s32 %v199, 16
        %v202 = vadd.s32 %v199, 24
        %v203 = vadd.s32 %v199, 32
        %v204 = vadd.s32 %v199, 40
        %v205 = vadd.s32 %v199, 48
        %v206 = vadd.s32 %v199, 56
        %v207 = vadd.s32 %v199, 64
        %v208 = vadd.s32 %v199, 72
        %v209 = vadd.s32 %v199, 80
        %v210 = vadd.s32 %v199, 88
        %v211 = vadd.s32 %v199, 96
        %v212 = vadd.s32 %v199, 104
        %v213 = vadd.s32 %v199, 112
        %v214 = vadd.s32 %v199, 120
        %v215 = vlaneseq
        %v216 = vand.u32 %v215, 127
        %vm217 = vcmp.lt.s32.totalorder %v216, %v199
        %vm218 = vcmp.lt.s32.totalorder %v216, %v200
        %vm219 = vcmp.lt.s32.totalorder %v216, %v201
        %vm220 = vcmp.lt.s32.totalorder %v216, %v202
        %vm221 = vcmp.lt.s32.totalorder %v216, %v203
        %vm222 = vcmp.lt.s32.totalorder %v216, %v204
        %vm223 = vcmp.lt.s32.totalorder %v216, %v205
        %vm224 = vcmp.lt.s32.totalorder %v216, %v206
        %vm225 = vcmp.lt.s32.totalorder %v216, %v207
        %vm226 = vcmp.lt.s32.totalorder %v216, %v208
        %vm227 = vcmp.lt.s32.totalorder %v216, %v209
        %vm228 = vcmp.lt.s32.totalorder %v216, %v210
        %vm229 = vcmp.lt.s32.totalorder %v216, %v211
        %vm230 = vcmp.lt.s32.totalorder %v216, %v212
        %vm231 = vcmp.lt.s32.totalorder %v216, %v213
        %vm232 = vcmp.lt.s32.totalorder %v216, %v214
        %v233 = vlaneseq
        %v234 = vshrl.u32 %v233, 7
        %v235 = vsub.s32 0, %v234
        %v236 = vrot.slane %v197, %v235
        %238 = vbcast.lane.b32.xlu0 %v236, 256
        %v239 = vpop.permute.xlu0 %238
        %s241 = sor.u32 256, 8
        %242 = vbcast.lane.b32.xlu0 %v236, %s241
        %v243 = vpop.permute.xlu0 %242
        %s245 = sor.u32 256, 16
        %246 = vbcast.lane.b32.xlu0 %v236, %s245
        %v247 = vpop.permute.xlu0 %246
        %s249 = sor.u32 256, 24
        %250 = vbcast.lane.b32.xlu0 %v236, %s249
        %v251 = vpop.permute.xlu0 %250
        %s253 = sor.u32 256, 32
        %254 = vbcast.lane.b32.xlu0 %v236, %s253
        %v255 = vpop.permute.xlu0 %254
        %s257 = sor.u32 256, 40
        %258 = vbcast.lane.b32.xlu0 %v236, %s257
        %v259 = vpop.permute.xlu0 %258
        %s261 = sor.u32 256, 48
        %262 = vbcast.lane.b32.xlu0 %v236, %s261
        %v263 = vpop.permute.xlu0 %262
        %s265 = sor.u32 256, 56
        %266 = vbcast.lane.b32.xlu0 %v236, %s265
        %v267 = vpop.permute.xlu0 %266
        %s269 = sor.u32 256, 64
        %270 = vbcast.lane.b32.xlu0 %v236, %s269
        %v271 = vpop.permute.xlu0 %270
        %s273 = sor.u32 256, 72
        %274 = vbcast.lane.b32.xlu0 %v236, %s273
        %v275 = vpop.permute.xlu0 %274
        %s277 = sor.u32 256, 80
        %278 = vbcast.lane.b32.xlu0 %v236, %s277
        %v279 = vpop.permute.xlu0 %278
        %s281 = sor.u32 256, 88
        %282 = vbcast.lane.b32.xlu0 %v236, %s281
        %v283 = vpop.permute.xlu0 %282
        %s285 = sor.u32 256, 96
        %286 = vbcast.lane.b32.xlu0 %v236, %s285
        %v287 = vpop.permute.xlu0 %286
        %s289 = sor.u32 256, 104
        %290 = vbcast.lane.b32.xlu0 %v236, %s289
        %v291 = vpop.permute.xlu0 %290
        %s293 = sor.u32 256, 112
        %294 = vbcast.lane.b32.xlu0 %v236, %s293
        %v295 = vpop.permute.xlu0 %294
        %s297 = sor.u32 256, 120
        %298 = vbcast.lane.b32.xlu0 %v236, %s297
        %v299 = vpop.permute.xlu0 %298
        %v300 = vlaneseq
        %v301 = vshrl.u32 %v300, 7
        %v302 = vsub.s32 1, %v301
        %v303 = vrot.slane %v197, %v302
        %305 = vbcast.lane.b32.xlu0 %v303, 256
        %v306 = vpop.permute.xlu0 %305
        %s308 = sor.u32 256, 8
        %309 = vbcast.lane.b32.xlu0 %v303, %s308
        %v310 = vpop.permute.xlu0 %309
        %s312 = sor.u32 256, 16
        %313 = vbcast.lane.b32.xlu0 %v303, %s312
        %v314 = vpop.permute.xlu0 %313
        %s316 = sor.u32 256, 24
        %317 = vbcast.lane.b32.xlu0 %v303, %s316
        %v318 = vpop.permute.xlu0 %317
        %s320 = sor.u32 256, 32
        %321 = vbcast.lane.b32.xlu0 %v303, %s320
        %v322 = vpop.permute.xlu0 %321
        %s324 = sor.u32 256, 40
        %325 = vbcast.lane.b32.xlu0 %v303, %s324
        %v326 = vpop.permute.xlu0 %325
        %s328 = sor.u32 256, 48
        %329 = vbcast.lane.b32.xlu0 %v303, %s328
        %v330 = vpop.permute.xlu0 %329
        %s332 = sor.u32 256, 56
        %333 = vbcast.lane.b32.xlu0 %v303, %s332
        %v334 = vpop.permute.xlu0 %333
        %s336 = sor.u32 256, 64
        %337 = vbcast.lane.b32.xlu0 %v303, %s336
        %v338 = vpop.permute.xlu0 %337
        %s340 = sor.u32 256, 72
        %341 = vbcast.lane.b32.xlu0 %v303, %s340
        %v342 = vpop.permute.xlu0 %341
        %s344 = sor.u32 256, 80
        %345 = vbcast.lane.b32.xlu0 %v303, %s344
        %v346 = vpop.permute.xlu0 %345
        %s348 = sor.u32 256, 88
        %349 = vbcast.lane.b32.xlu0 %v303, %s348
        %v350 = vpop.permute.xlu0 %349
        %s352 = sor.u32 256, 96
        %353 = vbcast.lane.b32.xlu0 %v303, %s352
        %v354 = vpop.permute.xlu0 %353
        %s356 = sor.u32 256, 104
        %357 = vbcast.lane.b32.xlu0 %v303, %s356
        %v358 = vpop.permute.xlu0 %357
        %s360 = sor.u32 256, 112
        %361 = vbcast.lane.b32.xlu0 %v303, %s360
        %v362 = vpop.permute.xlu0 %361
        %s364 = sor.u32 256, 120
        %365 = vbcast.lane.b32.xlu0 %v303, %s364
        %v366 = vpop.permute.xlu0 %365
        %v367 = vlaneseq
        %v368 = vshrl.u32 %v367, 7
        %v369 = vsub.s32 2, %v368
        %v370 = vrot.slane %v197, %v369
        %372 = vbcast.lane.b32.xlu0 %v370, 256
        %v373 = vpop.permute.xlu0 %372
        %s375 = sor.u32 256, 8
        %376 = vbcast.lane.b32.xlu0 %v370, %s375
        %v377 = vpop.permute.xlu0 %376
        %s379 = sor.u32 256, 16
        %380 = vbcast.lane.b32.xlu0 %v370, %s379
        %v381 = vpop.permute.xlu0 %380
        %s383 = sor.u32 256, 24
        %384 = vbcast.lane.b32.xlu0 %v370, %s383
        %v385 = vpop.permute.xlu0 %384
        %s387 = sor.u32 256, 32
        %388 = vbcast.lane.b32.xlu0 %v370, %s387
        %v389 = vpop.permute.xlu0 %388
        %s391 = sor.u32 256, 40
        %392 = vbcast.lane.b32.xlu0 %v370, %s391
        %v393 = vpop.permute.xlu0 %392
        %s395 = sor.u32 256, 48
        %396 = vbcast.lane.b32.xlu0 %v370, %s395
        %v397 = vpop.permute.xlu0 %396
        %s399 = sor.u32 256, 56
        %400 = vbcast.lane.b32.xlu0 %v370, %s399
        %v401 = vpop.permute.xlu0 %400
        %s403 = sor.u32 256, 64
        %404 = vbcast.lane.b32.xlu0 %v370, %s403
        %v405 = vpop.permute.xlu0 %404
        %s407 = sor.u32 256, 72
        %408 = vbcast.lane.b32.xlu0 %v370, %s407
        %v409 = vpop.permute.xlu0 %408
        %s411 = sor.u32 256, 80
        %412 = vbcast.lane.b32.xlu0 %v370, %s411
        %v413 = vpop.permute.xlu0 %412
        %s415 = sor.u32 256, 88
        %416 = vbcast.lane.b32.xlu0 %v370, %s415
        %v417 = vpop.permute.xlu0 %416
        %s419 = sor.u32 256, 96
        %420 = vbcast.lane.b32.xlu0 %v370, %s419
        %v421 = vpop.permute.xlu0 %420
        %s423 = sor.u32 256, 104
        %424 = vbcast.lane.b32.xlu0 %v370, %s423
        %v425 = vpop.permute.xlu0 %424
        %s427 = sor.u32 256, 112
        %428 = vbcast.lane.b32.xlu0 %v370, %s427
        %v429 = vpop.permute.xlu0 %428
        %s431 = sor.u32 256, 120
        %432 = vbcast.lane.b32.xlu0 %v370, %s431
        %v433 = vpop.permute.xlu0 %432
        %v434 = vlaneseq
        %v435 = vshrl.u32 %v434, 7
        %v436 = vsub.s32 3, %v435
        %v437 = vrot.slane %v197, %v436
        %439 = vbcast.lane.b32.xlu0 %v437, 256
        %v440 = vpop.permute.xlu0 %439
        %s442 = sor.u32 256, 8
        %443 = vbcast.lane.b32.xlu0 %v437, %s442
        %v444 = vpop.permute.xlu0 %443
        %s446 = sor.u32 256, 16
        %447 = vbcast.lane.b32.xlu0 %v437, %s446
        %v448 = vpop.permute.xlu0 %447
        %s450 = sor.u32 256, 24
        %451 = vbcast.lane.b32.xlu0 %v437, %s450
        %v452 = vpop.permute.xlu0 %451
        %s454 = sor.u32 256, 32
        %455 = vbcast.lane.b32.xlu0 %v437, %s454
        %v456 = vpop.permute.xlu0 %455
        %s458 = sor.u32 256, 40
        %459 = vbcast.lane.b32.xlu0 %v437, %s458
        %v460 = vpop.permute.xlu0 %459
        %s462 = sor.u32 256, 48
        %463 = vbcast.lane.b32.xlu0 %v437, %s462
        %v464 = vpop.permute.xlu0 %463
        %s466 = sor.u32 256, 56
        %467 = vbcast.lane.b32.xlu0 %v437, %s466
        %v468 = vpop.permute.xlu0 %467
        %s470 = sor.u32 256, 64
        %471 = vbcast.lane.b32.xlu0 %v437, %s470
        %v472 = vpop.permute.xlu0 %471
        %s474 = sor.u32 256, 72
        %475 = vbcast.lane.b32.xlu0 %v437, %s474
        %v476 = vpop.permute.xlu0 %475
        %s478 = sor.u32 256, 80
        %479 = vbcast.lane.b32.xlu0 %v437, %s478
        %v480 = vpop.permute.xlu0 %479
        %s482 = sor.u32 256, 88
        %483 = vbcast.lane.b32.xlu0 %v437, %s482
        %v484 = vpop.permute.xlu0 %483
        %s486 = sor.u32 256, 96
        %487 = vbcast.lane.b32.xlu0 %v437, %s486
        %v488 = vpop.permute.xlu0 %487
        %s490 = sor.u32 256, 104
        %491 = vbcast.lane.b32.xlu0 %v437, %s490
        %v492 = vpop.permute.xlu0 %491
        %s494 = sor.u32 256, 112
        %495 = vbcast.lane.b32.xlu0 %v437, %s494
        %v496 = vpop.permute.xlu0 %495
        %s498 = sor.u32 256, 120
        %499 = vbcast.lane.b32.xlu0 %v437, %s498
        %v500 = vpop.permute.xlu0 %499
        %v501 = vlaneseq
        %v502 = vshrl.u32 %v501, 7
        %v503 = vsub.s32 4, %v502
        %v504 = vrot.slane %v197, %v503
        %506 = vbcast.lane.b32.xlu0 %v504, 256
        %v507 = vpop.permute.xlu0 %506
        %s509 = sor.u32 256, 8
        %510 = vbcast.lane.b32.xlu0 %v504, %s509
        %v511 = vpop.permute.xlu0 %510
        %s513 = sor.u32 256, 16
        %514 = vbcast.lane.b32.xlu0 %v504, %s513
        %v515 = vpop.permute.xlu0 %514
        %s517 = sor.u32 256, 24
        %518 = vbcast.lane.b32.xlu0 %v504, %s517
        %v519 = vpop.permute.xlu0 %518
        %s521 = sor.u32 256, 32
        %522 = vbcast.lane.b32.xlu0 %v504, %s521
        %v523 = vpop.permute.xlu0 %522
        %s525 = sor.u32 256, 40
        %526 = vbcast.lane.b32.xlu0 %v504, %s525
        %v527 = vpop.permute.xlu0 %526
        %s529 = sor.u32 256, 48
        %530 = vbcast.lane.b32.xlu0 %v504, %s529
        %v531 = vpop.permute.xlu0 %530
        %s533 = sor.u32 256, 56
        %534 = vbcast.lane.b32.xlu0 %v504, %s533
        %v535 = vpop.permute.xlu0 %534
        %s537 = sor.u32 256, 64
        %538 = vbcast.lane.b32.xlu0 %v504, %s537
        %v539 = vpop.permute.xlu0 %538
        %s541 = sor.u32 256, 72
        %542 = vbcast.lane.b32.xlu0 %v504, %s541
        %v543 = vpop.permute.xlu0 %542
        %s545 = sor.u32 256, 80
        %546 = vbcast.lane.b32.xlu0 %v504, %s545
        %v547 = vpop.permute.xlu0 %546
        %s549 = sor.u32 256, 88
        %550 = vbcast.lane.b32.xlu0 %v504, %s549
        %v551 = vpop.permute.xlu0 %550
        %s553 = sor.u32 256, 96
        %554 = vbcast.lane.b32.xlu0 %v504, %s553
        %v555 = vpop.permute.xlu0 %554
        %s557 = sor.u32 256, 104
        %558 = vbcast.lane.b32.xlu0 %v504, %s557
        %v559 = vpop.permute.xlu0 %558
        %s561 = sor.u32 256, 112
        %562 = vbcast.lane.b32.xlu0 %v504, %s561
        %v563 = vpop.permute.xlu0 %562
        %s565 = sor.u32 256, 120
        %566 = vbcast.lane.b32.xlu0 %v504, %s565
        %v567 = vpop.permute.xlu0 %566
        %v568 = vlaneseq
        %v569 = vshrl.u32 %v568, 7
        %v570 = vsub.s32 5, %v569
        %v571 = vrot.slane %v197, %v570
        %573 = vbcast.lane.b32.xlu0 %v571, 256
        %v574 = vpop.permute.xlu0 %573
        %s576 = sor.u32 256, 8
        %577 = vbcast.lane.b32.xlu0 %v571, %s576
        %v578 = vpop.permute.xlu0 %577
        %s580 = sor.u32 256, 16
        %581 = vbcast.lane.b32.xlu0 %v571, %s580
        %v582 = vpop.permute.xlu0 %581
        %s584 = sor.u32 256, 24
        %585 = vbcast.lane.b32.xlu0 %v571, %s584
        %v586 = vpop.permute.xlu0 %585
        %s588 = sor.u32 256, 32
        %589 = vbcast.lane.b32.xlu0 %v571, %s588
        %v590 = vpop.permute.xlu0 %589
        %s592 = sor.u32 256, 40
        %593 = vbcast.lane.b32.xlu0 %v571, %s592
        %v594 = vpop.permute.xlu0 %593
        %s596 = sor.u32 256, 48
        %597 = vbcast.lane.b32.xlu0 %v571, %s596
        %v598 = vpop.permute.xlu0 %597
        %s600 = sor.u32 256, 56
        %601 = vbcast.lane.b32.xlu0 %v571, %s600
        %v602 = vpop.permute.xlu0 %601
        %s604 = sor.u32 256, 64
        %605 = vbcast.lane.b32.xlu0 %v571, %s604
        %v606 = vpop.permute.xlu0 %605
        %s608 = sor.u32 256, 72
        %609 = vbcast.lane.b32.xlu0 %v571, %s608
        %v610 = vpop.permute.xlu0 %609
        %s612 = sor.u32 256, 80
        %613 = vbcast.lane.b32.xlu0 %v571, %s612
        %v614 = vpop.permute.xlu0 %613
        %s616 = sor.u32 256, 88
        %617 = vbcast.lane.b32.xlu0 %v571, %s616
        %v618 = vpop.permute.xlu0 %617
        %s620 = sor.u32 256, 96
        %621 = vbcast.lane.b32.xlu0 %v571, %s620
        %v622 = vpop.permute.xlu0 %621
        %s624 = sor.u32 256, 104
        %625 = vbcast.lane.b32.xlu0 %v571, %s624
        %v626 = vpop.permute.xlu0 %625
        %s628 = sor.u32 256, 112
        %629 = vbcast.lane.b32.xlu0 %v571, %s628
        %v630 = vpop.permute.xlu0 %629
        %s632 = sor.u32 256, 120
        %633 = vbcast.lane.b32.xlu0 %v571, %s632
        %v634 = vpop.permute.xlu0 %633
        %v635 = vlaneseq
        %v636 = vshrl.u32 %v635, 7
        %v637 = vsub.s32 6, %v636
        %v638 = vrot.slane %v197, %v637
        %640 = vbcast.lane.b32.xlu0 %v638, 256
        %v641 = vpop.permute.xlu0 %640
        %s643 = sor.u32 256, 8
        %644 = vbcast.lane.b32.xlu0 %v638, %s643
        %v645 = vpop.permute.xlu0 %644
        %s647 = sor.u32 256, 16
        %648 = vbcast.lane.b32.xlu0 %v638, %s647
        %v649 = vpop.permute.xlu0 %648
        %s651 = sor.u32 256, 24
        %652 = vbcast.lane.b32.xlu0 %v638, %s651
        %v653 = vpop.permute.xlu0 %652
        %s655 = sor.u32 256, 32
        %656 = vbcast.lane.b32.xlu0 %v638, %s655
        %v657 = vpop.permute.xlu0 %656
        %s659 = sor.u32 256, 40
        %660 = vbcast.lane.b32.xlu0 %v638, %s659
        %v661 = vpop.permute.xlu0 %660
        %s663 = sor.u32 256, 48
        %664 = vbcast.lane.b32.xlu0 %v638, %s663
        %v665 = vpop.permute.xlu0 %664
        %s667 = sor.u32 256, 56
        %668 = vbcast.lane.b32.xlu0 %v638, %s667
        %v669 = vpop.permute.xlu0 %668
        %s671 = sor.u32 256, 64
        %672 = vbcast.lane.b32.xlu0 %v638, %s671
        %v673 = vpop.permute.xlu0 %672
        %s675 = sor.u32 256, 72
        %676 = vbcast.lane.b32.xlu0 %v638, %s675
        %v677 = vpop.permute.xlu0 %676
        %s679 = sor.u32 256, 80
        %680 = vbcast.lane.b32.xlu0 %v638, %s679
        %v681 = vpop.permute.xlu0 %680
        %s683 = sor.u32 256, 88
        %684 = vbcast.lane.b32.xlu0 %v638, %s683
        %v685 = vpop.permute.xlu0 %684
        %s687 = sor.u32 256, 96
        %688 = vbcast.lane.b32.xlu0 %v638, %s687
        %v689 = vpop.permute.xlu0 %688
        %s691 = sor.u32 256, 104
        %692 = vbcast.lane.b32.xlu0 %v638, %s691
        %v693 = vpop.permute.xlu0 %692
        %s695 = sor.u32 256, 112
        %696 = vbcast.lane.b32.xlu0 %v638, %s695
        %v697 = vpop.permute.xlu0 %696
        %s699 = sor.u32 256, 120
        %700 = vbcast.lane.b32.xlu0 %v638, %s699
        %v701 = vpop.permute.xlu0 %700
        %v702 = vlaneseq
        %v703 = vshrl.u32 %v702, 7
        %v704 = vsub.s32 7, %v703
        %v705 = vrot.slane %v197, %v704
        %707 = vbcast.lane.b32.xlu0 %v705, 256
        %v708 = vpop.permute.xlu0 %707
        %s710 = sor.u32 256, 8
        %711 = vbcast.lane.b32.xlu0 %v705, %s710
        %v712 = vpop.permute.xlu0 %711
        %s714 = sor.u32 256, 16
        %715 = vbcast.lane.b32.xlu0 %v705, %s714
        %v716 = vpop.permute.xlu0 %715
        %s718 = sor.u32 256, 24
        %719 = vbcast.lane.b32.xlu0 %v705, %s718
        %v720 = vpop.permute.xlu0 %719
        %s722 = sor.u32 256, 32
        %723 = vbcast.lane.b32.xlu0 %v705, %s722
        %v724 = vpop.permute.xlu0 %723
        %s726 = sor.u32 256, 40
        %727 = vbcast.lane.b32.xlu0 %v705, %s726
        %v728 = vpop.permute.xlu0 %727
        %s730 = sor.u32 256, 48
        %731 = vbcast.lane.b32.xlu0 %v705, %s730
        %v732 = vpop.permute.xlu0 %731
        %s734 = sor.u32 256, 56
        %735 = vbcast.lane.b32.xlu0 %v705, %s734
        %v736 = vpop.permute.xlu0 %735
        %s738 = sor.u32 256, 64
        %739 = vbcast.lane.b32.xlu0 %v705, %s738
        %v740 = vpop.permute.xlu0 %739
        %s742 = sor.u32 256, 72
        %743 = vbcast.lane.b32.xlu0 %v705, %s742
        %v744 = vpop.permute.xlu0 %743
        %s746 = sor.u32 256, 80
        %747 = vbcast.lane.b32.xlu0 %v705, %s746
        %v748 = vpop.permute.xlu0 %747
        %s750 = sor.u32 256, 88
        %751 = vbcast.lane.b32.xlu0 %v705, %s750
        %v752 = vpop.permute.xlu0 %751
        %s754 = sor.u32 256, 96
        %755 = vbcast.lane.b32.xlu0 %v705, %s754
        %v756 = vpop.permute.xlu0 %755
        %s758 = sor.u32 256, 104
        %759 = vbcast.lane.b32.xlu0 %v705, %s758
        %v760 = vpop.permute.xlu0 %759
        %s762 = sor.u32 256, 112
        %763 = vbcast.lane.b32.xlu0 %v705, %s762
        %v764 = vpop.permute.xlu0 %763
        %s766 = sor.u32 256, 120
        %767 = vbcast.lane.b32.xlu0 %v705, %s766
        %v768 = vpop.permute.xlu0 %767
        %v769 = vlaneseq
        %v770 = vshrl.u32 %v769, 7
        %v771 = vsub.s32 0, %v770
        %v772 = vrot.slane %v196, %v771
        %774 = vbcast.lane.b32.xlu0 %v772, 256
        %v775 = vpop.permute.xlu0 %774
        %s777 = sor.u32 256, 8
        %778 = vbcast.lane.b32.xlu0 %v772, %s777
        %v779 = vpop.permute.xlu0 %778
        %s781 = sor.u32 256, 16
        %782 = vbcast.lane.b32.xlu0 %v772, %s781
        %v783 = vpop.permute.xlu0 %782
        %s785 = sor.u32 256, 24
        %786 = vbcast.lane.b32.xlu0 %v772, %s785
        %v787 = vpop.permute.xlu0 %786
        %s789 = sor.u32 256, 32
        %790 = vbcast.lane.b32.xlu0 %v772, %s789
        %v791 = vpop.permute.xlu0 %790
        %s793 = sor.u32 256, 40
        %794 = vbcast.lane.b32.xlu0 %v772, %s793
        %v795 = vpop.permute.xlu0 %794
        %s797 = sor.u32 256, 48
        %798 = vbcast.lane.b32.xlu0 %v772, %s797
        %v799 = vpop.permute.xlu0 %798
        %s801 = sor.u32 256, 56
        %802 = vbcast.lane.b32.xlu0 %v772, %s801
        %v803 = vpop.permute.xlu0 %802
        %s805 = sor.u32 256, 64
        %806 = vbcast.lane.b32.xlu0 %v772, %s805
        %v807 = vpop.permute.xlu0 %806
        %s809 = sor.u32 256, 72
        %810 = vbcast.lane.b32.xlu0 %v772, %s809
        %v811 = vpop.permute.xlu0 %810
        %s813 = sor.u32 256, 80
        %814 = vbcast.lane.b32.xlu0 %v772, %s813
        %v815 = vpop.permute.xlu0 %814
        %s817 = sor.u32 256, 88
        %818 = vbcast.lane.b32.xlu0 %v772, %s817
        %v819 = vpop.permute.xlu0 %818
        %s821 = sor.u32 256, 96
        %822 = vbcast.lane.b32.xlu0 %v772, %s821
        %v823 = vpop.permute.xlu0 %822
        %s825 = sor.u32 256, 104
        %826 = vbcast.lane.b32.xlu0 %v772, %s825
        %v827 = vpop.permute.xlu0 %826
        %s829 = sor.u32 256, 112
        %830 = vbcast.lane.b32.xlu0 %v772, %s829
        %v831 = vpop.permute.xlu0 %830
        %s833 = sor.u32 256, 120
        %834 = vbcast.lane.b32.xlu0 %v772, %s833
        %v835 = vpop.permute.xlu0 %834
        %v836 = vlaneseq
        %v837 = vshrl.u32 %v836, 7
        %v838 = vsub.s32 1, %v837
        %v839 = vrot.slane %v196, %v838
        %841 = vbcast.lane.b32.xlu0 %v839, 256
        %v842 = vpop.permute.xlu0 %841
        %s844 = sor.u32 256, 8
        %845 = vbcast.lane.b32.xlu0 %v839, %s844
        %v846 = vpop.permute.xlu0 %845
        %s848 = sor.u32 256, 16
        %849 = vbcast.lane.b32.xlu0 %v839, %s848
        %v850 = vpop.permute.xlu0 %849
        %s852 = sor.u32 256, 24
        %853 = vbcast.lane.b32.xlu0 %v839, %s852
        %v854 = vpop.permute.xlu0 %853
        %s856 = sor.u32 256, 32
        %857 = vbcast.lane.b32.xlu0 %v839, %s856
        %v858 = vpop.permute.xlu0 %857
        %s860 = sor.u32 256, 40
        %861 = vbcast.lane.b32.xlu0 %v839, %s860
        %v862 = vpop.permute.xlu0 %861
        %s864 = sor.u32 256, 48
        %865 = vbcast.lane.b32.xlu0 %v839, %s864
        %v866 = vpop.permute.xlu0 %865
        %s868 = sor.u32 256, 56
        %869 = vbcast.lane.b32.xlu0 %v839, %s868
        %v870 = vpop.permute.xlu0 %869
        %s872 = sor.u32 256, 64
        %873 = vbcast.lane.b32.xlu0 %v839, %s872
        %v874 = vpop.permute.xlu0 %873
        %s876 = sor.u32 256, 72
        %877 = vbcast.lane.b32.xlu0 %v839, %s876
        %v878 = vpop.permute.xlu0 %877
        %s880 = sor.u32 256, 80
        %881 = vbcast.lane.b32.xlu0 %v839, %s880
        %v882 = vpop.permute.xlu0 %881
        %s884 = sor.u32 256, 88
        %885 = vbcast.lane.b32.xlu0 %v839, %s884
        %v886 = vpop.permute.xlu0 %885
        %s888 = sor.u32 256, 96
        %889 = vbcast.lane.b32.xlu0 %v839, %s888
        %v890 = vpop.permute.xlu0 %889
        %s892 = sor.u32 256, 104
        %893 = vbcast.lane.b32.xlu0 %v839, %s892
        %v894 = vpop.permute.xlu0 %893
        %s896 = sor.u32 256, 112
        %897 = vbcast.lane.b32.xlu0 %v839, %s896
        %v898 = vpop.permute.xlu0 %897
        %s900 = sor.u32 256, 120
        %901 = vbcast.lane.b32.xlu0 %v839, %s900
        %v902 = vpop.permute.xlu0 %901
        %v903 = vlaneseq
        %v904 = vshrl.u32 %v903, 7
        %v905 = vsub.s32 2, %v904
        %v906 = vrot.slane %v196, %v905
        %908 = vbcast.lane.b32.xlu0 %v906, 256
        %v909 = vpop.permute.xlu0 %908
        %s911 = sor.u32 256, 8
        %912 = vbcast.lane.b32.xlu0 %v906, %s911
        %v913 = vpop.permute.xlu0 %912
        %s915 = sor.u32 256, 16
        %916 = vbcast.lane.b32.xlu0 %v906, %s915
        %v917 = vpop.permute.xlu0 %916
        %s919 = sor.u32 256, 24
        %920 = vbcast.lane.b32.xlu0 %v906, %s919
        %v921 = vpop.permute.xlu0 %920
        %s923 = sor.u32 256, 32
        %924 = vbcast.lane.b32.xlu0 %v906, %s923
        %v925 = vpop.permute.xlu0 %924
        %s927 = sor.u32 256, 40
        %928 = vbcast.lane.b32.xlu0 %v906, %s927
        %v929 = vpop.permute.xlu0 %928
        %s931 = sor.u32 256, 48
        %932 = vbcast.lane.b32.xlu0 %v906, %s931
        %v933 = vpop.permute.xlu0 %932
        %s935 = sor.u32 256, 56
        %936 = vbcast.lane.b32.xlu0 %v906, %s935
        %v937 = vpop.permute.xlu0 %936
        %s939 = sor.u32 256, 64
        %940 = vbcast.lane.b32.xlu0 %v906, %s939
        %v941 = vpop.permute.xlu0 %940
        %s943 = sor.u32 256, 72
        %944 = vbcast.lane.b32.xlu0 %v906, %s943
        %v945 = vpop.permute.xlu0 %944
        %s947 = sor.u32 256, 80
        %948 = vbcast.lane.b32.xlu0 %v906, %s947
        %v949 = vpop.permute.xlu0 %948
        %s951 = sor.u32 256, 88
        %952 = vbcast.lane.b32.xlu0 %v906, %s951
        %v953 = vpop.permute.xlu0 %952
        %s955 = sor.u32 256, 96
        %956 = vbcast.lane.b32.xlu0 %v906, %s955
        %v957 = vpop.permute.xlu0 %956
        %s959 = sor.u32 256, 104
        %960 = vbcast.lane.b32.xlu0 %v906, %s959
        %v961 = vpop.permute.xlu0 %960
        %s963 = sor.u32 256, 112
        %964 = vbcast.lane.b32.xlu0 %v906, %s963
        %v965 = vpop.permute.xlu0 %964
        %s967 = sor.u32 256, 120
        %968 = vbcast.lane.b32.xlu0 %v906, %s967
        %v969 = vpop.permute.xlu0 %968
        %v970 = vlaneseq
        %v971 = vshrl.u32 %v970, 7
        %v972 = vsub.s32 3, %v971
        %v973 = vrot.slane %v196, %v972
        %975 = vbcast.lane.b32.xlu0 %v973, 256
        %v976 = vpop.permute.xlu0 %975
        %s978 = sor.u32 256, 8
        %979 = vbcast.lane.b32.xlu0 %v973, %s978
        %v980 = vpop.permute.xlu0 %979
        %s982 = sor.u32 256, 16
        %983 = vbcast.lane.b32.xlu0 %v973, %s982
        %v984 = vpop.permute.xlu0 %983
        %s986 = sor.u32 256, 24
        %987 = vbcast.lane.b32.xlu0 %v973, %s986
        %v988 = vpop.permute.xlu0 %987
        %s990 = sor.u32 256, 32
        %991 = vbcast.lane.b32.xlu0 %v973, %s990
        %v992 = vpop.permute.xlu0 %991
        %s994 = sor.u32 256, 40
        %995 = vbcast.lane.b32.xlu0 %v973, %s994
        %v996 = vpop.permute.xlu0 %995
        %s998 = sor.u32 256, 48
        %999 = vbcast.lane.b32.xlu0 %v973, %s998
        %v1000 = vpop.permute.xlu0 %999
        %s1002 = sor.u32 256, 56
        %1003 = vbcast.lane.b32.xlu0 %v973, %s1002
        %v1004 = vpop.permute.xlu0 %1003
        %s1006 = sor.u32 256, 64
        %1007 = vbcast.lane.b32.xlu0 %v973, %s1006
        %v1008 = vpop.permute.xlu0 %1007
        %s1010 = sor.u32 256, 72
        %1011 = vbcast.lane.b32.xlu0 %v973, %s1010
        %v1012 = vpop.permute.xlu0 %1011
        %s1014 = sor.u32 256, 80
        %1015 = vbcast.lane.b32.xlu0 %v973, %s1014
        %v1016 = vpop.permute.xlu0 %1015
        %s1018 = sor.u32 256, 88
        %1019 = vbcast.lane.b32.xlu0 %v973, %s1018
        %v1020 = vpop.permute.xlu0 %1019
        %s1022 = sor.u32 256, 96
        %1023 = vbcast.lane.b32.xlu0 %v973, %s1022
        %v1024 = vpop.permute.xlu0 %1023
        %s1026 = sor.u32 256, 104
        %1027 = vbcast.lane.b32.xlu0 %v973, %s1026
        %v1028 = vpop.permute.xlu0 %1027
        %s1030 = sor.u32 256, 112
        %1031 = vbcast.lane.b32.xlu0 %v973, %s1030
        %v1032 = vpop.permute.xlu0 %1031
        %s1034 = sor.u32 256, 120
        %1035 = vbcast.lane.b32.xlu0 %v973, %s1034
        %v1036 = vpop.permute.xlu0 %1035
        %v1037 = vlaneseq
        %v1038 = vshrl.u32 %v1037, 7
        %v1039 = vsub.s32 4, %v1038
        %v1040 = vrot.slane %v196, %v1039
        %1042 = vbcast.lane.b32.xlu0 %v1040, 256
        %v1043 = vpop.permute.xlu0 %1042
        %s1045 = sor.u32 256, 8
        %1046 = vbcast.lane.b32.xlu0 %v1040, %s1045
        %v1047 = vpop.permute.xlu0 %1046
        %s1049 = sor.u32 256, 16
        %1050 = vbcast.lane.b32.xlu0 %v1040, %s1049
        %v1051 = vpop.permute.xlu0 %1050
        %s1053 = sor.u32 256, 24
        %1054 = vbcast.lane.b32.xlu0 %v1040, %s1053
        %v1055 = vpop.permute.xlu0 %1054
        %s1057 = sor.u32 256, 32
        %1058 = vbcast.lane.b32.xlu0 %v1040, %s1057
        %v1059 = vpop.permute.xlu0 %1058
        %s1061 = sor.u32 256, 40
        %1062 = vbcast.lane.b32.xlu0 %v1040, %s1061
        %v1063 = vpop.permute.xlu0 %1062
        %s1065 = sor.u32 256, 48
        %1066 = vbcast.lane.b32.xlu0 %v1040, %s1065
        %v1067 = vpop.permute.xlu0 %1066
        %s1069 = sor.u32 256, 56
        %1070 = vbcast.lane.b32.xlu0 %v1040, %s1069
        %v1071 = vpop.permute.xlu0 %1070
        %s1073 = sor.u32 256, 64
        %1074 = vbcast.lane.b32.xlu0 %v1040, %s1073
        %v1075 = vpop.permute.xlu0 %1074
        %s1077 = sor.u32 256, 72
        %1078 = vbcast.lane.b32.xlu0 %v1040, %s1077
        %v1079 = vpop.permute.xlu0 %1078
        %s1081 = sor.u32 256, 80
        %1082 = vbcast.lane.b32.xlu0 %v1040, %s1081
        %v1083 = vpop.permute.xlu0 %1082
        %s1085 = sor.u32 256, 88
        %1086 = vbcast.lane.b32.xlu0 %v1040, %s1085
        %v1087 = vpop.permute.xlu0 %1086
        %s1089 = sor.u32 256, 96
        %1090 = vbcast.lane.b32.xlu0 %v1040, %s1089
        %v1091 = vpop.permute.xlu0 %1090
        %s1093 = sor.u32 256, 104
        %1094 = vbcast.lane.b32.xlu0 %v1040, %s1093
        %v1095 = vpop.permute.xlu0 %1094
        %s1097 = sor.u32 256, 112
        %1098 = vbcast.lane.b32.xlu0 %v1040, %s1097
        %v1099 = vpop.permute.xlu0 %1098
        %s1101 = sor.u32 256, 120
        %1102 = vbcast.lane.b32.xlu0 %v1040, %s1101
        %v1103 = vpop.permute.xlu0 %1102
        %v1104 = vlaneseq
        %v1105 = vshrl.u32 %v1104, 7
        %v1106 = vsub.s32 5, %v1105
        %v1107 = vrot.slane %v196, %v1106
        %1109 = vbcast.lane.b32.xlu0 %v1107, 256
        %v1110 = vpop.permute.xlu0 %1109
        %s1112 = sor.u32 256, 8
        %1113 = vbcast.lane.b32.xlu0 %v1107, %s1112
        %v1114 = vpop.permute.xlu0 %1113
        %s1116 = sor.u32 256, 16
        %1117 = vbcast.lane.b32.xlu0 %v1107, %s1116
        %v1118 = vpop.permute.xlu0 %1117
        %s1120 = sor.u32 256, 24
        %1121 = vbcast.lane.b32.xlu0 %v1107, %s1120
        %v1122 = vpop.permute.xlu0 %1121
        %s1124 = sor.u32 256, 32
        %1125 = vbcast.lane.b32.xlu0 %v1107, %s1124
        %v1126 = vpop.permute.xlu0 %1125
        %s1128 = sor.u32 256, 40
        %1129 = vbcast.lane.b32.xlu0 %v1107, %s1128
        %v1130 = vpop.permute.xlu0 %1129
        %s1132 = sor.u32 256, 48
        %1133 = vbcast.lane.b32.xlu0 %v1107, %s1132
        %v1134 = vpop.permute.xlu0 %1133
        %s1136 = sor.u32 256, 56
        %1137 = vbcast.lane.b32.xlu0 %v1107, %s1136
        %v1138 = vpop.permute.xlu0 %1137
        %s1140 = sor.u32 256, 64
        %1141 = vbcast.lane.b32.xlu0 %v1107, %s1140
        %v1142 = vpop.permute.xlu0 %1141
        %s1144 = sor.u32 256, 72
        %1145 = vbcast.lane.b32.xlu0 %v1107, %s1144
        %v1146 = vpop.permute.xlu0 %1145
        %s1148 = sor.u32 256, 80
        %1149 = vbcast.lane.b32.xlu0 %v1107, %s1148
        %v1150 = vpop.permute.xlu0 %1149
        %s1152 = sor.u32 256, 88
        %1153 = vbcast.lane.b32.xlu0 %v1107, %s1152
        %v1154 = vpop.permute.xlu0 %1153
        %s1156 = sor.u32 256, 96
        %1157 = vbcast.lane.b32.xlu0 %v1107, %s1156
        %v1158 = vpop.permute.xlu0 %1157
        %s1160 = sor.u32 256, 104
        %1161 = vbcast.lane.b32.xlu0 %v1107, %s1160
        %v1162 = vpop.permute.xlu0 %1161
        %s1164 = sor.u32 256, 112
        %1165 = vbcast.lane.b32.xlu0 %v1107, %s1164
        %v1166 = vpop.permute.xlu0 %1165
        %s1168 = sor.u32 256, 120
        %1169 = vbcast.lane.b32.xlu0 %v1107, %s1168
        %v1170 = vpop.permute.xlu0 %1169
        %v1171 = vlaneseq
        %v1172 = vshrl.u32 %v1171, 7
        %v1173 = vsub.s32 6, %v1172
        %v1174 = vrot.slane %v196, %v1173
        %1176 = vbcast.lane.b32.xlu0 %v1174, 256
        %v1177 = vpop.permute.xlu0 %1176
        %s1179 = sor.u32 256, 8
        %1180 = vbcast.lane.b32.xlu0 %v1174, %s1179
        %v1181 = vpop.permute.xlu0 %1180
        %s1183 = sor.u32 256, 16
        %1184 = vbcast.lane.b32.xlu0 %v1174, %s1183
        %v1185 = vpop.permute.xlu0 %1184
        %s1187 = sor.u32 256, 24
        %1188 = vbcast.lane.b32.xlu0 %v1174, %s1187
        %v1189 = vpop.permute.xlu0 %1188
        %s1191 = sor.u32 256, 32
        %1192 = vbcast.lane.b32.xlu0 %v1174, %s1191
        %v1193 = vpop.permute.xlu0 %1192
        %s1195 = sor.u32 256, 40
        %1196 = vbcast.lane.b32.xlu0 %v1174, %s1195
        %v1197 = vpop.permute.xlu0 %1196
        %s1199 = sor.u32 256, 48
        %1200 = vbcast.lane.b32.xlu0 %v1174, %s1199
        %v1201 = vpop.permute.xlu0 %1200
        %s1203 = sor.u32 256, 56
        %1204 = vbcast.lane.b32.xlu0 %v1174, %s1203
        %v1205 = vpop.permute.xlu0 %1204
        %s1207 = sor.u32 256, 64
        %1208 = vbcast.lane.b32.xlu0 %v1174, %s1207
        %v1209 = vpop.permute.xlu0 %1208
        %s1211 = sor.u32 256, 72
        %1212 = vbcast.lane.b32.xlu0 %v1174, %s1211
        %v1213 = vpop.permute.xlu0 %1212
        %s1215 = sor.u32 256, 80
        %1216 = vbcast.lane.b32.xlu0 %v1174, %s1215
        %v1217 = vpop.permute.xlu0 %1216
        %s1219 = sor.u32 256, 88
        %1220 = vbcast.lane.b32.xlu0 %v1174, %s1219
        %v1221 = vpop.permute.xlu0 %1220
        %s1223 = sor.u32 256, 96
        %1224 = vbcast.lane.b32.xlu0 %v1174, %s1223
        %v1225 = vpop.permute.xlu0 %1224
        %s1227 = sor.u32 256, 104
        %1228 = vbcast.lane.b32.xlu0 %v1174, %s1227
        %v1229 = vpop.permute.xlu0 %1228
        %s1231 = sor.u32 256, 112
        %1232 = vbcast.lane.b32.xlu0 %v1174, %s1231
        %v1233 = vpop.permute.xlu0 %1232
        %s1235 = sor.u32 256, 120
        %1236 = vbcast.lane.b32.xlu0 %v1174, %s1235
        %v1237 = vpop.permute.xlu0 %1236
        %v1238 = vlaneseq
        %v1239 = vshrl.u32 %v1238, 7
        %v1240 = vsub.s32 7, %v1239
        %v1241 = vrot.slane %v196, %v1240
        %1243 = vbcast.lane.b32.xlu0 %v1241, 256
        %v1244 = vpop.permute.xlu0 %1243
        %s1246 = sor.u32 256, 8
        %1247 = vbcast.lane.b32.xlu0 %v1241, %s1246
        %v1248 = vpop.permute.xlu0 %1247
        %s1250 = sor.u32 256, 16
        %1251 = vbcast.lane.b32.xlu0 %v1241, %s1250
        %v1252 = vpop.permute.xlu0 %1251
        %s1254 = sor.u32 256, 24
        %1255 = vbcast.lane.b32.xlu0 %v1241, %s1254
        %v1256 = vpop.permute.xlu0 %1255
        %s1258 = sor.u32 256, 32
        %1259 = vbcast.lane.b32.xlu0 %v1241, %s1258
        %v1260 = vpop.permute.xlu0 %1259
        %s1262 = sor.u32 256, 40
        %1263 = vbcast.lane.b32.xlu0 %v1241, %s1262
        %v1264 = vpop.permute.xlu0 %1263
        %s1266 = sor.u32 256, 48
        %1267 = vbcast.lane.b32.xlu0 %v1241, %s1266
        %v1268 = vpop.permute.xlu0 %1267
        %s1270 = sor.u32 256, 56
        %1271 = vbcast.lane.b32.xlu0 %v1241, %s1270
        %v1272 = vpop.permute.xlu0 %1271
        %s1274 = sor.u32 256, 64
        %1275 = vbcast.lane.b32.xlu0 %v1241, %s1274
        %v1276 = vpop.permute.xlu0 %1275
        %s1278 = sor.u32 256, 72
        %1279 = vbcast.lane.b32.xlu0 %v1241, %s1278
        %v1280 = vpop.permute.xlu0 %1279
        %s1282 = sor.u32 256, 80
        %1283 = vbcast.lane.b32.xlu0 %v1241, %s1282
        %v1284 = vpop.permute.xlu0 %1283
        %s1286 = sor.u32 256, 88
        %1287 = vbcast.lane.b32.xlu0 %v1241, %s1286
        %v1288 = vpop.permute.xlu0 %1287
        %s1290 = sor.u32 256, 96
        %1291 = vbcast.lane.b32.xlu0 %v1241, %s1290
        %v1292 = vpop.permute.xlu0 %1291
        %s1294 = sor.u32 256, 104
        %1295 = vbcast.lane.b32.xlu0 %v1241, %s1294
        %v1296 = vpop.permute.xlu0 %1295
        %s1298 = sor.u32 256, 112
        %1299 = vbcast.lane.b32.xlu0 %v1241, %s1298
        %v1300 = vpop.permute.xlu0 %1299
        %s1302 = sor.u32 256, 120
        %1303 = vbcast.lane.b32.xlu0 %v1241, %s1302
        %v1304 = vpop.permute.xlu0 %1303
        %v1305 = vcombine.high %v196, %v196
        %v1307 = vunpack.c.l.s4 1966171168
        %v1308 = vunpack.c.0.s8 %v1307
        %v1309 = vlaneseq
        %v1310 = vshrl.u32 %v1309, 7
        %v1311 = vsub.s32 %v1308, %v1310
        %v1312 = vrot.slane %v196, %v1311
        %v1314 = vunpack.c.l.s4 1966171168
        %v1315 = vunpack.c.0.s8 %v1314
        %v1316 = vlaneseq
        %v1317 = vshrl.u32 %v1316, 7
        %v1318 = vsub.s32 %v1315, %v1317
        %v1319 = vrot.slane %v1305, %v1318
        %v1320 = vcombine.high %v1312, %v1312
        %v1321 = vcombine.high %v1319, %v1319
        %v1323 = vunpack.c.l.s4 1966171168
        %v1324 = vunpack.c.0.s8 %v1323
        %v1325 = vlaneseq
        %v1326 = vshrl.u32 %v1325, 7
        %v1327 = vsub.s32 %v1324, %v1326
        %v1328 = vrot.slane %v1312, %v1327
        %v1330 = vunpack.c.l.s4 1966171168
        %v1331 = vunpack.c.0.s8 %v1330
        %v1332 = vlaneseq
        %v1333 = vshrl.u32 %v1332, 7
        %v1334 = vsub.s32 %v1331, %v1333
        %v1335 = vrot.slane %v1319, %v1334
        %v1337 = vunpack.c.l.s4 1966171168
        %v1338 = vunpack.c.0.s8 %v1337
        %v1339 = vlaneseq
        %v1340 = vshrl.u32 %v1339, 7
        %v1341 = vsub.s32 %v1338, %v1340
        %v1342 = vrot.slane %v1320, %v1341
        %v1344 = vunpack.c.l.s4 1966171168
        %v1345 = vunpack.c.0.s8 %v1344
        %v1346 = vlaneseq
        %v1347 = vshrl.u32 %v1346, 7
        %v1348 = vsub.s32 %v1345, %v1347
        %v1349 = vrot.slane %v1321, %v1348
        %v1350 = vcombine.high %v1328, %v1328
        %v1351 = vcombine.high %v1335, %v1335
        %v1352 = vcombine.high %v1342, %v1342
        %v1353 = vcombine.high %v1349, %v1349
        %v1354 = vlaneseq
        %v1355 = vshrl.u32 %v1354, 7
        %v1356 = vsub.s32 0, %v1355
        %v1357 = vrot.slane %v1328, %v1356
        %v1358 = vlaneseq
        %v1359 = vshrl.u32 %v1358, 7
        %v1360 = vsub.s32 0, %v1359
        %v1361 = vrot.slane %v1342, %v1360
        %v1362 = vlaneseq
        %v1363 = vshrl.u32 %v1362, 7
        %v1364 = vsub.s32 0, %v1363
        %v1365 = vrot.slane %v1350, %v1364
        %v1366 = vlaneseq
        %v1367 = vshrl.u32 %v1366, 7
        %v1368 = vsub.s32 0, %v1367
        %v1369 = vrot.slane %v1352, %v1368
        %v1370 = vlaneseq
        %v1371 = vshrl.u32 %v1370, 7
        %v1372 = vsub.s32 0, %v1371
        %v1373 = vrot.slane %v1335, %v1372
        %v1374 = vlaneseq
        %v1375 = vshrl.u32 %v1374, 7
        %v1376 = vsub.s32 0, %v1375
        %v1377 = vrot.slane %v1349, %v1376
        %v1378 = vlaneseq
        %v1379 = vshrl.u32 %v1378, 7
        %v1380 = vsub.s32 0, %v1379
        %v1381 = vrot.slane %v1351, %v1380
        %v1382 = vlaneseq
        %v1383 = vshrl.u32 %v1382, 7
        %v1384 = vsub.s32 0, %v1383
        %v1385 = vrot.slane %v1353, %v1384
        %vm1386 = vcmp.eq.s32.totalorder %v239, %v1357
        %vm1387 = vcmp.eq.s32.totalorder %v243, %v1357
        %vm1388 = vcmp.eq.s32.totalorder %v247, %v1357
        %vm1389 = vcmp.eq.s32.totalorder %v251, %v1357
        %vm1390 = vcmp.eq.s32.totalorder %v255, %v1357
        %vm1391 = vcmp.eq.s32.totalorder %v259, %v1357
        %vm1392 = vcmp.eq.s32.totalorder %v263, %v1357
        %vm1393 = vcmp.eq.s32.totalorder %v267, %v1357
        %vm1394 = vcmp.eq.s32.totalorder %v271, %v1357
        %vm1395 = vcmp.eq.s32.totalorder %v275, %v1357
        %vm1396 = vcmp.eq.s32.totalorder %v279, %v1357
        %vm1397 = vcmp.eq.s32.totalorder %v283, %v1357
        %vm1398 = vcmp.eq.s32.totalorder %v287, %v1357
        %vm1399 = vcmp.eq.s32.totalorder %v291, %v1357
        %vm1400 = vcmp.eq.s32.totalorder %v295, %v1357
        %vm1401 = vcmp.eq.s32.totalorder %v299, %v1357
        %vm1402 = vcmp.eq.s32.totalorder %v306, %v1361
        %vm1403 = vcmp.eq.s32.totalorder %v310, %v1361
        %vm1404 = vcmp.eq.s32.totalorder %v314, %v1361
        %vm1405 = vcmp.eq.s32.totalorder %v318, %v1361
        %vm1406 = vcmp.eq.s32.totalorder %v322, %v1361
        %vm1407 = vcmp.eq.s32.totalorder %v326, %v1361
        %vm1408 = vcmp.eq.s32.totalorder %v330, %v1361
        %vm1409 = vcmp.eq.s32.totalorder %v334, %v1361
        %vm1410 = vcmp.eq.s32.totalorder %v338, %v1361
        %vm1411 = vcmp.eq.s32.totalorder %v342, %v1361
        %vm1412 = vcmp.eq.s32.totalorder %v346, %v1361
        %vm1413 = vcmp.eq.s32.totalorder %v350, %v1361
        %vm1414 = vcmp.eq.s32.totalorder %v354, %v1361
        %vm1415 = vcmp.eq.s32.totalorder %v358, %v1361
        %vm1416 = vcmp.eq.s32.totalorder %v362, %v1361
        %vm1417 = vcmp.eq.s32.totalorder %v366, %v1361
        %vm1418 = vcmp.eq.s32.totalorder %v373, %v1365
        %vm1419 = vcmp.eq.s32.totalorder %v377, %v1365
        %vm1420 = vcmp.eq.s32.totalorder %v381, %v1365
        %vm1421 = vcmp.eq.s32.totalorder %v385, %v1365
        %vm1422 = vcmp.eq.s32.totalorder %v389, %v1365
        %vm1423 = vcmp.eq.s32.totalorder %v393, %v1365
        %vm1424 = vcmp.eq.s32.totalorder %v397, %v1365
        %vm1425 = vcmp.eq.s32.totalorder %v401, %v1365
        %vm1426 = vcmp.eq.s32.totalorder %v405, %v1365
        %vm1427 = vcmp.eq.s32.totalorder %v409, %v1365
        %vm1428 = vcmp.eq.s32.totalorder %v413, %v1365
        %vm1429 = vcmp.eq.s32.totalorder %v417, %v1365
        %vm1430 = vcmp.eq.s32.totalorder %v421, %v1365
        %vm1431 = vcmp.eq.s32.totalorder %v425, %v1365
        %vm1432 = vcmp.eq.s32.totalorder %v429, %v1365
        %vm1433 = vcmp.eq.s32.totalorder %v433, %v1365
        %vm1434 = vcmp.eq.s32.totalorder %v440, %v1369
        %vm1435 = vcmp.eq.s32.totalorder %v444, %v1369
        %vm1436 = vcmp.eq.s32.totalorder %v448, %v1369
        %vm1437 = vcmp.eq.s32.totalorder %v452, %v1369
        %vm1438 = vcmp.eq.s32.totalorder %v456, %v1369
        %vm1439 = vcmp.eq.s32.totalorder %v460, %v1369
        %vm1440 = vcmp.eq.s32.totalorder %v464, %v1369
        %vm1441 = vcmp.eq.s32.totalorder %v468, %v1369
        %vm1442 = vcmp.eq.s32.totalorder %v472, %v1369
        %vm1443 = vcmp.eq.s32.totalorder %v476, %v1369
        %vm1444 = vcmp.eq.s32.totalorder %v480, %v1369
        %vm1445 = vcmp.eq.s32.totalorder %v484, %v1369
        %vm1446 = vcmp.eq.s32.totalorder %v488, %v1369
        %vm1447 = vcmp.eq.s32.totalorder %v492, %v1369
        %vm1448 = vcmp.eq.s32.totalorder %v496, %v1369
        %vm1449 = vcmp.eq.s32.totalorder %v500, %v1369
        %vm1450 = vcmp.eq.s32.totalorder %v507, %v1373
        %vm1451 = vcmp.eq.s32.totalorder %v511, %v1373
        %vm1452 = vcmp.eq.s32.totalorder %v515, %v1373
        %vm1453 = vcmp.eq.s32.totalorder %v519, %v1373
        %vm1454 = vcmp.eq.s32.totalorder %v523, %v1373
        %vm1455 = vcmp.eq.s32.totalorder %v527, %v1373
        %vm1456 = vcmp.eq.s32.totalorder %v531, %v1373
        %vm1457 = vcmp.eq.s32.totalorder %v535, %v1373
        %vm1458 = vcmp.eq.s32.totalorder %v539, %v1373
        %vm1459 = vcmp.eq.s32.totalorder %v543, %v1373
        %vm1460 = vcmp.eq.s32.totalorder %v547, %v1373
        %vm1461 = vcmp.eq.s32.totalorder %v551, %v1373
        %vm1462 = vcmp.eq.s32.totalorder %v555, %v1373
        %vm1463 = vcmp.eq.s32.totalorder %v559, %v1373
        %vm1464 = vcmp.eq.s32.totalorder %v563, %v1373
        %vm1465 = vcmp.eq.s32.totalorder %v567, %v1373
        %vm1466 = vcmp.eq.s32.totalorder %v574, %v1377
        %vm1467 = vcmp.eq.s32.totalorder %v578, %v1377
        %vm1468 = vcmp.eq.s32.totalorder %v582, %v1377
        %vm1469 = vcmp.eq.s32.totalorder %v586, %v1377
        %vm1470 = vcmp.eq.s32.totalorder %v590, %v1377
        %vm1471 = vcmp.eq.s32.totalorder %v594, %v1377
        %vm1472 = vcmp.eq.s32.totalorder %v598, %v1377
        %vm1473 = vcmp.eq.s32.totalorder %v602, %v1377
        %vm1474 = vcmp.eq.s32.totalorder %v606, %v1377
        %vm1475 = vcmp.eq.s32.totalorder %v610, %v1377
        %vm1476 = vcmp.eq.s32.totalorder %v614, %v1377
        %vm1477 = vcmp.eq.s32.totalorder %v618, %v1377
        %vm1478 = vcmp.eq.s32.totalorder %v622, %v1377
        %vm1479 = vcmp.eq.s32.totalorder %v626, %v1377
        %vm1480 = vcmp.eq.s32.totalorder %v630, %v1377
        %vm1481 = vcmp.eq.s32.totalorder %v634, %v1377
        %vm1482 = vcmp.eq.s32.totalorder %v641, %v1381
        %vm1483 = vcmp.eq.s32.totalorder %v645, %v1381
        %vm1484 = vcmp.eq.s32.totalorder %v649, %v1381
        %vm1485 = vcmp.eq.s32.totalorder %v653, %v1381
        %vm1486 = vcmp.eq.s32.totalorder %v657, %v1381
        %vm1487 = vcmp.eq.s32.totalorder %v661, %v1381
        %vm1488 = vcmp.eq.s32.totalorder %v665, %v1381
        %vm1489 = vcmp.eq.s32.totalorder %v669, %v1381
        %vm1490 = vcmp.eq.s32.totalorder %v673, %v1381
        %vm1491 = vcmp.eq.s32.totalorder %v677, %v1381
        %vm1492 = vcmp.eq.s32.totalorder %v681, %v1381
        %vm1493 = vcmp.eq.s32.totalorder %v685, %v1381
        %vm1494 = vcmp.eq.s32.totalorder %v689, %v1381
        %vm1495 = vcmp.eq.s32.totalorder %v693, %v1381
        %vm1496 = vcmp.eq.s32.totalorder %v697, %v1381
        %vm1497 = vcmp.eq.s32.totalorder %v701, %v1381
        %vm1498 = vcmp.eq.s32.totalorder %v708, %v1385
        %vm1499 = vcmp.eq.s32.totalorder %v712, %v1385
        %vm1500 = vcmp.eq.s32.totalorder %v716, %v1385
        %vm1501 = vcmp.eq.s32.totalorder %v720, %v1385
        %vm1502 = vcmp.eq.s32.totalorder %v724, %v1385
        %vm1503 = vcmp.eq.s32.totalorder %v728, %v1385
        %vm1504 = vcmp.eq.s32.totalorder %v732, %v1385
        %vm1505 = vcmp.eq.s32.totalorder %v736, %v1385
        %vm1506 = vcmp.eq.s32.totalorder %v740, %v1385
        %vm1507 = vcmp.eq.s32.totalorder %v744, %v1385
        %vm1508 = vcmp.eq.s32.totalorder %v748, %v1385
        %vm1509 = vcmp.eq.s32.totalorder %v752, %v1385
        %vm1510 = vcmp.eq.s32.totalorder %v756, %v1385
        %vm1511 = vcmp.eq.s32.totalorder %v760, %v1385
        %vm1512 = vcmp.eq.s32.totalorder %v764, %v1385
        %vm1513 = vcmp.eq.s32.totalorder %v768, %v1385
        %v1514 = vsel %vm1386, 1.0, 0.0
        %v1515 = vsel %vm1387, 1.0, 0.0
        %v1516 = vsel %vm1388, 1.0, 0.0
        %v1517 = vsel %vm1389, 1.0, 0.0
        %v1518 = vsel %vm1390, 1.0, 0.0
        %v1519 = vsel %vm1391, 1.0, 0.0
        %v1520 = vsel %vm1392, 1.0, 0.0
        %v1521 = vsel %vm1393, 1.0, 0.0
        %v1522 = vsel %vm1394, 1.0, 0.0
        %v1523 = vsel %vm1395, 1.0, 0.0
        %v1524 = vsel %vm1396, 1.0, 0.0
        %v1525 = vsel %vm1397, 1.0, 0.0
        %v1526 = vsel %vm1398, 1.0, 0.0
        %v1527 = vsel %vm1399, 1.0, 0.0
        %v1528 = vsel %vm1400, 1.0, 0.0
        %v1529 = vsel %vm1401, 1.0, 0.0
        %v1530 = vsel %vm1402, 1.0, 0.0
        %v1531 = vsel %vm1403, 1.0, 0.0
        %v1532 = vsel %vm1404, 1.0, 0.0
        %v1533 = vsel %vm1405, 1.0, 0.0
        %v1534 = vsel %vm1406, 1.0, 0.0
        %v1535 = vsel %vm1407, 1.0, 0.0
        %v1536 = vsel %vm1408, 1.0, 0.0
        %v1537 = vsel %vm1409, 1.0, 0.0
        %v1538 = vsel %vm1410, 1.0, 0.0
        %v1539 = vsel %vm1411, 1.0, 0.0
        %v1540 = vsel %vm1412, 1.0, 0.0
        %v1541 = vsel %vm1413, 1.0, 0.0
        %v1542 = vsel %vm1414, 1.0, 0.0
        %v1543 = vsel %vm1415, 1.0, 0.0
        %v1544 = vsel %vm1416, 1.0, 0.0
        %v1545 = vsel %vm1417, 1.0, 0.0
        %v1546 = vsel %vm1418, 1.0, 0.0
        %v1547 = vsel %vm1419, 1.0, 0.0
        %v1548 = vsel %vm1420, 1.0, 0.0
        %v1549 = vsel %vm1421, 1.0, 0.0
        %v1550 = vsel %vm1422, 1.0, 0.0
        %v1551 = vsel %vm1423, 1.0, 0.0
        %v1552 = vsel %vm1424, 1.0, 0.0
        %v1553 = vsel %vm1425, 1.0, 0.0
        %v1554 = vsel %vm1426, 1.0, 0.0
        %v1555 = vsel %vm1427, 1.0, 0.0
        %v1556 = vsel %vm1428, 1.0, 0.0
        %v1557 = vsel %vm1429, 1.0, 0.0
        %v1558 = vsel %vm1430, 1.0, 0.0
        %v1559 = vsel %vm1431, 1.0, 0.0
        %v1560 = vsel %vm1432, 1.0, 0.0
        %v1561 = vsel %vm1433, 1.0, 0.0
        %v1562 = vsel %vm1434, 1.0, 0.0
        %v1563 = vsel %vm1435, 1.0, 0.0
        %v1564 = vsel %vm1436, 1.0, 0.0
        %v1565 = vsel %vm1437, 1.0, 0.0
        %v1566 = vsel %vm1438, 1.0, 0.0
        %v1567 = vsel %vm1439, 1.0, 0.0
        %v1568 = vsel %vm1440, 1.0, 0.0
        %v1569 = vsel %vm1441, 1.0, 0.0
        %v1570 = vsel %vm1442, 1.0, 0.0
        %v1571 = vsel %vm1443, 1.0, 0.0
        %v1572 = vsel %vm1444, 1.0, 0.0
        %v1573 = vsel %vm1445, 1.0, 0.0
        %v1574 = vsel %vm1446, 1.0, 0.0
        %v1575 = vsel %vm1447, 1.0, 0.0
        %v1576 = vsel %vm1448, 1.0, 0.0
        %v1577 = vsel %vm1449, 1.0, 0.0
        %v1578 = vsel %vm1450, 1.0, 0.0
        %v1579 = vsel %vm1451, 1.0, 0.0
        %v1580 = vsel %vm1452, 1.0, 0.0
        %v1581 = vsel %vm1453, 1.0, 0.0
        %v1582 = vsel %vm1454, 1.0, 0.0
        %v1583 = vsel %vm1455, 1.0, 0.0
        %v1584 = vsel %vm1456, 1.0, 0.0
        %v1585 = vsel %vm1457, 1.0, 0.0
        %v1586 = vsel %vm1458, 1.0, 0.0
        %v1587 = vsel %vm1459, 1.0, 0.0
        %v1588 = vsel %vm1460, 1.0, 0.0
        %v1589 = vsel %vm1461, 1.0, 0.0
        %v1590 = vsel %vm1462, 1.0, 0.0
        %v1591 = vsel %vm1463, 1.0, 0.0
        %v1592 = vsel %vm1464, 1.0, 0.0
        %v1593 = vsel %vm1465, 1.0, 0.0
        %v1594 = vsel %vm1466, 1.0, 0.0
        %v1595 = vsel %vm1467, 1.0, 0.0
        %v1596 = vsel %vm1468, 1.0, 0.0
        %v1597 = vsel %vm1469, 1.0, 0.0
        %v1598 = vsel %vm1470, 1.0, 0.0
        %v1599 = vsel %vm1471, 1.0, 0.0
        %v1600 = vsel %vm1472, 1.0, 0.0
        %v1601 = vsel %vm1473, 1.0, 0.0
        %v1602 = vsel %vm1474, 1.0, 0.0
        %v1603 = vsel %vm1475, 1.0, 0.0
        %v1604 = vsel %vm1476, 1.0, 0.0
        %v1605 = vsel %vm1477, 1.0, 0.0
        %v1606 = vsel %vm1478, 1.0, 0.0
        %v1607 = vsel %vm1479, 1.0, 0.0
        %v1608 = vsel %vm1480, 1.0, 0.0
        %v1609 = vsel %vm1481, 1.0, 0.0
        %v1610 = vsel %vm1482, 1.0, 0.0
        %v1611 = vsel %vm1483, 1.0, 0.0
        %v1612 = vsel %vm1484, 1.0, 0.0
        %v1613 = vsel %vm1485, 1.0, 0.0
        %v1614 = vsel %vm1486, 1.0, 0.0
        %v1615 = vsel %vm1487, 1.0, 0.0
        %v1616 = vsel %vm1488, 1.0, 0.0
        %v1617 = vsel %vm1489, 1.0, 0.0
        %v1618 = vsel %vm1490, 1.0, 0.0
        %v1619 = vsel %vm1491, 1.0, 0.0
        %v1620 = vsel %vm1492, 1.0, 0.0
        %v1621 = vsel %vm1493, 1.0, 0.0
        %v1622 = vsel %vm1494, 1.0, 0.0
        %v1623 = vsel %vm1495, 1.0, 0.0
        %v1624 = vsel %vm1496, 1.0, 0.0
        %v1625 = vsel %vm1497, 1.0, 0.0
        %v1626 = vsel %vm1498, 1.0, 0.0
        %v1627 = vsel %vm1499, 1.0, 0.0
        %v1628 = vsel %vm1500, 1.0, 0.0
        %v1629 = vsel %vm1501, 1.0, 0.0
        %v1630 = vsel %vm1502, 1.0, 0.0
        %v1631 = vsel %vm1503, 1.0, 0.0
        %v1632 = vsel %vm1504, 1.0, 0.0
        %v1633 = vsel %vm1505, 1.0, 0.0
        %v1634 = vsel %vm1506, 1.0, 0.0
        %v1635 = vsel %vm1507, 1.0, 0.0
        %v1636 = vsel %vm1508, 1.0, 0.0
        %v1637 = vsel %vm1509, 1.0, 0.0
        %v1638 = vsel %vm1510, 1.0, 0.0
        %v1639 = vsel %vm1511, 1.0, 0.0
        %v1640 = vsel %vm1512, 1.0, 0.0
        %v1641 = vsel %vm1513, 1.0, 0.0
        %1642 = vmax.xlane.f32.xlu0 %v1514
        %v1643 = vpop.xlane.xlu0 %1642
        %1644 = vmax.xlane.f32.xlu0 %v1515
        %v1645 = vpop.xlane.xlu0 %1644
        %1646 = vmax.xlane.f32.xlu0 %v1516
        %v1647 = vpop.xlane.xlu0 %1646
        %1648 = vmax.xlane.f32.xlu0 %v1517
        %v1649 = vpop.xlane.xlu0 %1648
        %1650 = vmax.xlane.f32.xlu0 %v1518
        %v1651 = vpop.xlane.xlu0 %1650
        %1652 = vmax.xlane.f32.xlu0 %v1519
        %v1653 = vpop.xlane.xlu0 %1652
        %1654 = vmax.xlane.f32.xlu0 %v1520
        %v1655 = vpop.xlane.xlu0 %1654
        %1656 = vmax.xlane.f32.xlu0 %v1521
        %v1657 = vpop.xlane.xlu0 %1656
        %1658 = vmax.xlane.f32.xlu0 %v1522
        %v1659 = vpop.xlane.xlu0 %1658
        %1660 = vmax.xlane.f32.xlu0 %v1523
        %v1661 = vpop.xlane.xlu0 %1660
        %1662 = vmax.xlane.f32.xlu0 %v1524
        %v1663 = vpop.xlane.xlu0 %1662
        %1664 = vmax.xlane.f32.xlu0 %v1525
        %v1665 = vpop.xlane.xlu0 %1664
        %1666 = vmax.xlane.f32.xlu0 %v1526
        %v1667 = vpop.xlane.xlu0 %1666
        %1668 = vmax.xlane.f32.xlu0 %v1527
        %v1669 = vpop.xlane.xlu0 %1668
        %1670 = vmax.xlane.f32.xlu0 %v1528
        %v1671 = vpop.xlane.xlu0 %1670
        %1672 = vmax.xlane.f32.xlu0 %v1529
        %v1673 = vpop.xlane.xlu0 %1672
        %1674 = vmax.xlane.f32.xlu0 %v1530
        %v1675 = vpop.xlane.xlu0 %1674
        %1676 = vmax.xlane.f32.xlu0 %v1531
        %v1677 = vpop.xlane.xlu0 %1676
        %1678 = vmax.xlane.f32.xlu0 %v1532
        %v1679 = vpop.xlane.xlu0 %1678
        %1680 = vmax.xlane.f32.xlu0 %v1533
        %v1681 = vpop.xlane.xlu0 %1680
        %1682 = vmax.xlane.f32.xlu0 %v1534
        %v1683 = vpop.xlane.xlu0 %1682
        %1684 = vmax.xlane.f32.xlu0 %v1535
        %v1685 = vpop.xlane.xlu0 %1684
        %1686 = vmax.xlane.f32.xlu0 %v1536
        %v1687 = vpop.xlane.xlu0 %1686
        %1688 = vmax.xlane.f32.xlu0 %v1537
        %v1689 = vpop.xlane.xlu0 %1688
        %1690 = vmax.xlane.f32.xlu0 %v1538
        %v1691 = vpop.xlane.xlu0 %1690
        %1692 = vmax.xlane.f32.xlu0 %v1539
        %v1693 = vpop.xlane.xlu0 %1692
        %1694 = vmax.xlane.f32.xlu0 %v1540
        %v1695 = vpop.xlane.xlu0 %1694
        %1696 = vmax.xlane.f32.xlu0 %v1541
        %v1697 = vpop.xlane.xlu0 %1696
        %1698 = vmax.xlane.f32.xlu0 %v1542
        %v1699 = vpop.xlane.xlu0 %1698
        %1700 = vmax.xlane.f32.xlu0 %v1543
        %v1701 = vpop.xlane.xlu0 %1700
        %1702 = vmax.xlane.f32.xlu0 %v1544
        %v1703 = vpop.xlane.xlu0 %1702
        %1704 = vmax.xlane.f32.xlu0 %v1545
        %v1705 = vpop.xlane.xlu0 %1704
        %1706 = vmax.xlane.f32.xlu0 %v1546
        %v1707 = vpop.xlane.xlu0 %1706
        %1708 = vmax.xlane.f32.xlu0 %v1547
        %v1709 = vpop.xlane.xlu0 %1708
        %1710 = vmax.xlane.f32.xlu0 %v1548
        %v1711 = vpop.xlane.xlu0 %1710
        %1712 = vmax.xlane.f32.xlu0 %v1549
        %v1713 = vpop.xlane.xlu0 %1712
        %1714 = vmax.xlane.f32.xlu0 %v1550
        %v1715 = vpop.xlane.xlu0 %1714
        %1716 = vmax.xlane.f32.xlu0 %v1551
        %v1717 = vpop.xlane.xlu0 %1716
        %1718 = vmax.xlane.f32.xlu0 %v1552
        %v1719 = vpop.xlane.xlu0 %1718
        %1720 = vmax.xlane.f32.xlu0 %v1553
        %v1721 = vpop.xlane.xlu0 %1720
        %1722 = vmax.xlane.f32.xlu0 %v1554
        %v1723 = vpop.xlane.xlu0 %1722
        %1724 = vmax.xlane.f32.xlu0 %v1555
        %v1725 = vpop.xlane.xlu0 %1724
        %1726 = vmax.xlane.f32.xlu0 %v1556
        %v1727 = vpop.xlane.xlu0 %1726
        %1728 = vmax.xlane.f32.xlu0 %v1557
        %v1729 = vpop.xlane.xlu0 %1728
        %1730 = vmax.xlane.f32.xlu0 %v1558
        %v1731 = vpop.xlane.xlu0 %1730
        %1732 = vmax.xlane.f32.xlu0 %v1559
        %v1733 = vpop.xlane.xlu0 %1732
        %1734 = vmax.xlane.f32.xlu0 %v1560
        %v1735 = vpop.xlane.xlu0 %1734
        %1736 = vmax.xlane.f32.xlu0 %v1561
        %v1737 = vpop.xlane.xlu0 %1736
        %1738 = vmax.xlane.f32.xlu0 %v1562
        %v1739 = vpop.xlane.xlu0 %1738
        %1740 = vmax.xlane.f32.xlu0 %v1563
        %v1741 = vpop.xlane.xlu0 %1740
        %1742 = vmax.xlane.f32.xlu0 %v1564
        %v1743 = vpop.xlane.xlu0 %1742
        %1744 = vmax.xlane.f32.xlu0 %v1565
        %v1745 = vpop.xlane.xlu0 %1744
        %1746 = vmax.xlane.f32.xlu0 %v1566
        %v1747 = vpop.xlane.xlu0 %1746
        %1748 = vmax.xlane.f32.xlu0 %v1567
        %v1749 = vpop.xlane.xlu0 %1748
        %1750 = vmax.xlane.f32.xlu0 %v1568
        %v1751 = vpop.xlane.xlu0 %1750
        %1752 = vmax.xlane.f32.xlu0 %v1569
        %v1753 = vpop.xlane.xlu0 %1752
        %1754 = vmax.xlane.f32.xlu0 %v1570
        %v1755 = vpop.xlane.xlu0 %1754
        %1756 = vmax.xlane.f32.xlu0 %v1571
        %v1757 = vpop.xlane.xlu0 %1756
        %1758 = vmax.xlane.f32.xlu0 %v1572
        %v1759 = vpop.xlane.xlu0 %1758
        %1760 = vmax.xlane.f32.xlu0 %v1573
        %v1761 = vpop.xlane.xlu0 %1760
        %1762 = vmax.xlane.f32.xlu0 %v1574
        %v1763 = vpop.xlane.xlu0 %1762
        %1764 = vmax.xlane.f32.xlu0 %v1575
        %v1765 = vpop.xlane.xlu0 %1764
        %1766 = vmax.xlane.f32.xlu0 %v1576
        %v1767 = vpop.xlane.xlu0 %1766
        %1768 = vmax.xlane.f32.xlu0 %v1577
        %v1769 = vpop.xlane.xlu0 %1768
        %1770 = vmax.xlane.f32.xlu0 %v1578
        %v1771 = vpop.xlane.xlu0 %1770
        %1772 = vmax.xlane.f32.xlu0 %v1579
        %v1773 = vpop.xlane.xlu0 %1772
        %1774 = vmax.xlane.f32.xlu0 %v1580
        %v1775 = vpop.xlane.xlu0 %1774
        %1776 = vmax.xlane.f32.xlu0 %v1581
        %v1777 = vpop.xlane.xlu0 %1776
        %1778 = vmax.xlane.f32.xlu0 %v1582
        %v1779 = vpop.xlane.xlu0 %1778
        %1780 = vmax.xlane.f32.xlu0 %v1583
        %v1781 = vpop.xlane.xlu0 %1780
        %1782 = vmax.xlane.f32.xlu0 %v1584
        %v1783 = vpop.xlane.xlu0 %1782
        %1784 = vmax.xlane.f32.xlu0 %v1585
        %v1785 = vpop.xlane.xlu0 %1784
        %1786 = vmax.xlane.f32.xlu0 %v1586
        %v1787 = vpop.xlane.xlu0 %1786
        %1788 = vmax.xlane.f32.xlu0 %v1587
        %v1789 = vpop.xlane.xlu0 %1788
        %1790 = vmax.xlane.f32.xlu0 %v1588
        %v1791 = vpop.xlane.xlu0 %1790
        %1792 = vmax.xlane.f32.xlu0 %v1589
        %v1793 = vpop.xlane.xlu0 %1792
        %1794 = vmax.xlane.f32.xlu0 %v1590
        %v1795 = vpop.xlane.xlu0 %1794
        %1796 = vmax.xlane.f32.xlu0 %v1591
        %v1797 = vpop.xlane.xlu0 %1796
        %1798 = vmax.xlane.f32.xlu0 %v1592
        %v1799 = vpop.xlane.xlu0 %1798
        %1800 = vmax.xlane.f32.xlu0 %v1593
        %v1801 = vpop.xlane.xlu0 %1800
        %1802 = vmax.xlane.f32.xlu0 %v1594
        %v1803 = vpop.xlane.xlu0 %1802
        %1804 = vmax.xlane.f32.xlu0 %v1595
        %v1805 = vpop.xlane.xlu0 %1804
        %1806 = vmax.xlane.f32.xlu0 %v1596
        %v1807 = vpop.xlane.xlu0 %1806
        %1808 = vmax.xlane.f32.xlu0 %v1597
        %v1809 = vpop.xlane.xlu0 %1808
        %1810 = vmax.xlane.f32.xlu0 %v1598
        %v1811 = vpop.xlane.xlu0 %1810
        %1812 = vmax.xlane.f32.xlu0 %v1599
        %v1813 = vpop.xlane.xlu0 %1812
        %1814 = vmax.xlane.f32.xlu0 %v1600
        %v1815 = vpop.xlane.xlu0 %1814
        %1816 = vmax.xlane.f32.xlu0 %v1601
        %v1817 = vpop.xlane.xlu0 %1816
        %1818 = vmax.xlane.f32.xlu0 %v1602
        %v1819 = vpop.xlane.xlu0 %1818
        %1820 = vmax.xlane.f32.xlu0 %v1603
        %v1821 = vpop.xlane.xlu0 %1820
        %1822 = vmax.xlane.f32.xlu0 %v1604
        %v1823 = vpop.xlane.xlu0 %1822
        %1824 = vmax.xlane.f32.xlu0 %v1605
        %v1825 = vpop.xlane.xlu0 %1824
        %1826 = vmax.xlane.f32.xlu0 %v1606
        %v1827 = vpop.xlane.xlu0 %1826
        %1828 = vmax.xlane.f32.xlu0 %v1607
        %v1829 = vpop.xlane.xlu0 %1828
        %1830 = vmax.xlane.f32.xlu0 %v1608
        %v1831 = vpop.xlane.xlu0 %1830
        %1832 = vmax.xlane.f32.xlu0 %v1609
        %v1833 = vpop.xlane.xlu0 %1832
        %1834 = vmax.xlane.f32.xlu0 %v1610
        %v1835 = vpop.xlane.xlu0 %1834
        %1836 = vmax.xlane.f32.xlu0 %v1611
        %v1837 = vpop.xlane.xlu0 %1836
        %1838 = vmax.xlane.f32.xlu0 %v1612
        %v1839 = vpop.xlane.xlu0 %1838
        %1840 = vmax.xlane.f32.xlu0 %v1613
        %v1841 = vpop.xlane.xlu0 %1840
        %1842 = vmax.xlane.f32.xlu0 %v1614
        %v1843 = vpop.xlane.xlu0 %1842
        %1844 = vmax.xlane.f32.xlu0 %v1615
        %v1845 = vpop.xlane.xlu0 %1844
        %1846 = vmax.xlane.f32.xlu0 %v1616
        %v1847 = vpop.xlane.xlu0 %1846
        %1848 = vmax.xlane.f32.xlu0 %v1617
        %v1849 = vpop.xlane.xlu0 %1848
        %1850 = vmax.xlane.f32.xlu0 %v1618
        %v1851 = vpop.xlane.xlu0 %1850
        %1852 = vmax.xlane.f32.xlu0 %v1619
        %v1853 = vpop.xlane.xlu0 %1852
        %1854 = vmax.xlane.f32.xlu0 %v1620
        %v1855 = vpop.xlane.xlu0 %1854
        %1856 = vmax.xlane.f32.xlu0 %v1621
        %v1857 = vpop.xlane.xlu0 %1856
        %1858 = vmax.xlane.f32.xlu0 %v1622
        %v1859 = vpop.xlane.xlu0 %1858
        %1860 = vmax.xlane.f32.xlu0 %v1623
        %v1861 = vpop.xlane.xlu0 %1860
        %1862 = vmax.xlane.f32.xlu0 %v1624
        %v1863 = vpop.xlane.xlu0 %1862
        %1864 = vmax.xlane.f32.xlu0 %v1625
        %v1865 = vpop.xlane.xlu0 %1864
        %1866 = vmax.xlane.f32.xlu0 %v1626
        %v1867 = vpop.xlane.xlu0 %1866
        %1868 = vmax.xlane.f32.xlu0 %v1627
        %v1869 = vpop.xlane.xlu0 %1868
        %1870 = vmax.xlane.f32.xlu0 %v1628
        %v1871 = vpop.xlane.xlu0 %1870
        %1872 = vmax.xlane.f32.xlu0 %v1629
        %v1873 = vpop.xlane.xlu0 %1872
        %1874 = vmax.xlane.f32.xlu0 %v1630
        %v1875 = vpop.xlane.xlu0 %1874
        %1876 = vmax.xlane.f32.xlu0 %v1631
        %v1877 = vpop.xlane.xlu0 %1876
        %1878 = vmax.xlane.f32.xlu0 %v1632
        %v1879 = vpop.xlane.xlu0 %1878
        %1880 = vmax.xlane.f32.xlu0 %v1633
        %v1881 = vpop.xlane.xlu0 %1880
        %1882 = vmax.xlane.f32.xlu0 %v1634
        %v1883 = vpop.xlane.xlu0 %1882
        %1884 = vmax.xlane.f32.xlu0 %v1635
        %v1885 = vpop.xlane.xlu0 %1884
        %1886 = vmax.xlane.f32.xlu0 %v1636
        %v1887 = vpop.xlane.xlu0 %1886
        %1888 = vmax.xlane.f32.xlu0 %v1637
        %v1889 = vpop.xlane.xlu0 %1888
        %1890 = vmax.xlane.f32.xlu0 %v1638
        %v1891 = vpop.xlane.xlu0 %1890
        %1892 = vmax.xlane.f32.xlu0 %v1639
        %v1893 = vpop.xlane.xlu0 %1892
        %1894 = vmax.xlane.f32.xlu0 %v1640
        %v1895 = vpop.xlane.xlu0 %1894
        %1896 = vmax.xlane.f32.xlu0 %v1641
        %v1897 = vpop.xlane.xlu0 %1896
        %vm1898 = vcmp.gt.f32.partialorder %v1643, 0.0
        %vm1899 = vcmp.gt.f32.partialorder %v1645, 0.0
        %vm1900 = vcmp.gt.f32.partialorder %v1647, 0.0
        %vm1901 = vcmp.gt.f32.partialorder %v1649, 0.0
        %vm1902 = vcmp.gt.f32.partialorder %v1651, 0.0
        %vm1903 = vcmp.gt.f32.partialorder %v1653, 0.0
        %vm1904 = vcmp.gt.f32.partialorder %v1655, 0.0
        %vm1905 = vcmp.gt.f32.partialorder %v1657, 0.0
        %vm1906 = vcmp.gt.f32.partialorder %v1659, 0.0
        %vm1907 = vcmp.gt.f32.partialorder %v1661, 0.0
        %vm1908 = vcmp.gt.f32.partialorder %v1663, 0.0
        %vm1909 = vcmp.gt.f32.partialorder %v1665, 0.0
        %vm1910 = vcmp.gt.f32.partialorder %v1667, 0.0
        %vm1911 = vcmp.gt.f32.partialorder %v1669, 0.0
        %vm1912 = vcmp.gt.f32.partialorder %v1671, 0.0
        %vm1913 = vcmp.gt.f32.partialorder %v1673, 0.0
        %vm1914 = vcmp.gt.f32.partialorder %v1675, 0.0
        %vm1915 = vcmp.gt.f32.partialorder %v1677, 0.0
        %vm1916 = vcmp.gt.f32.partialorder %v1679, 0.0
        %vm1917 = vcmp.gt.f32.partialorder %v1681, 0.0
        %vm1918 = vcmp.gt.f32.partialorder %v1683, 0.0
        %vm1919 = vcmp.gt.f32.partialorder %v1685, 0.0
        %vm1920 = vcmp.gt.f32.partialorder %v1687, 0.0
        %vm1921 = vcmp.gt.f32.partialorder %v1689, 0.0
        %vm1922 = vcmp.gt.f32.partialorder %v1691, 0.0
        %vm1923 = vcmp.gt.f32.partialorder %v1693, 0.0
        %vm1924 = vcmp.gt.f32.partialorder %v1695, 0.0
        %vm1925 = vcmp.gt.f32.partialorder %v1697, 0.0
        %vm1926 = vcmp.gt.f32.partialorder %v1699, 0.0
        %vm1927 = vcmp.gt.f32.partialorder %v1701, 0.0
        %vm1928 = vcmp.gt.f32.partialorder %v1703, 0.0
        %vm1929 = vcmp.gt.f32.partialorder %v1705, 0.0
        %vm1930 = vcmp.gt.f32.partialorder %v1707, 0.0
        %vm1931 = vcmp.gt.f32.partialorder %v1709, 0.0
        %vm1932 = vcmp.gt.f32.partialorder %v1711, 0.0
        %vm1933 = vcmp.gt.f32.partialorder %v1713, 0.0
        %vm1934 = vcmp.gt.f32.partialorder %v1715, 0.0
        %vm1935 = vcmp.gt.f32.partialorder %v1717, 0.0
        %vm1936 = vcmp.gt.f32.partialorder %v1719, 0.0
        %vm1937 = vcmp.gt.f32.partialorder %v1721, 0.0
        %vm1938 = vcmp.gt.f32.partialorder %v1723, 0.0
        %vm1939 = vcmp.gt.f32.partialorder %v1725, 0.0
        %vm1940 = vcmp.gt.f32.partialorder %v1727, 0.0
        %vm1941 = vcmp.gt.f32.partialorder %v1729, 0.0
        %vm1942 = vcmp.gt.f32.partialorder %v1731, 0.0
        %vm1943 = vcmp.gt.f32.partialorder %v1733, 0.0
        %vm1944 = vcmp.gt.f32.partialorder %v1735, 0.0
        %vm1945 = vcmp.gt.f32.partialorder %v1737, 0.0
        %vm1946 = vcmp.gt.f32.partialorder %v1739, 0.0
        %vm1947 = vcmp.gt.f32.partialorder %v1741, 0.0
        %vm1948 = vcmp.gt.f32.partialorder %v1743, 0.0
        %vm1949 = vcmp.gt.f32.partialorder %v1745, 0.0
        %vm1950 = vcmp.gt.f32.partialorder %v1747, 0.0
        %vm1951 = vcmp.gt.f32.partialorder %v1749, 0.0
        %vm1952 = vcmp.gt.f32.partialorder %v1751, 0.0
        %vm1953 = vcmp.gt.f32.partialorder %v1753, 0.0
        %vm1954 = vcmp.gt.f32.partialorder %v1755, 0.0
        %vm1955 = vcmp.gt.f32.partialorder %v1757, 0.0
        %vm1956 = vcmp.gt.f32.partialorder %v1759, 0.0
        %vm1957 = vcmp.gt.f32.partialorder %v1761, 0.0
        %vm1958 = vcmp.gt.f32.partialorder %v1763, 0.0
        %vm1959 = vcmp.gt.f32.partialorder %v1765, 0.0
        %vm1960 = vcmp.gt.f32.partialorder %v1767, 0.0
        %vm1961 = vcmp.gt.f32.partialorder %v1769, 0.0
        %vm1962 = vcmp.gt.f32.partialorder %v1771, 0.0
        %vm1963 = vcmp.gt.f32.partialorder %v1773, 0.0
        %vm1964 = vcmp.gt.f32.partialorder %v1775, 0.0
        %vm1965 = vcmp.gt.f32.partialorder %v1777, 0.0
        %vm1966 = vcmp.gt.f32.partialorder %v1779, 0.0
        %vm1967 = vcmp.gt.f32.partialorder %v1781, 0.0
        %vm1968 = vcmp.gt.f32.partialorder %v1783, 0.0
        %vm1969 = vcmp.gt.f32.partialorder %v1785, 0.0
        %vm1970 = vcmp.gt.f32.partialorder %v1787, 0.0
        %vm1971 = vcmp.gt.f32.partialorder %v1789, 0.0
        %vm1972 = vcmp.gt.f32.partialorder %v1791, 0.0
        %vm1973 = vcmp.gt.f32.partialorder %v1793, 0.0
        %vm1974 = vcmp.gt.f32.partialorder %v1795, 0.0
        %vm1975 = vcmp.gt.f32.partialorder %v1797, 0.0
        %vm1976 = vcmp.gt.f32.partialorder %v1799, 0.0
        %vm1977 = vcmp.gt.f32.partialorder %v1801, 0.0
        %vm1978 = vcmp.gt.f32.partialorder %v1803, 0.0
        %vm1979 = vcmp.gt.f32.partialorder %v1805, 0.0
        %vm1980 = vcmp.gt.f32.partialorder %v1807, 0.0
        %vm1981 = vcmp.gt.f32.partialorder %v1809, 0.0
        %vm1982 = vcmp.gt.f32.partialorder %v1811, 0.0
        %vm1983 = vcmp.gt.f32.partialorder %v1813, 0.0
        %vm1984 = vcmp.gt.f32.partialorder %v1815, 0.0
        %vm1985 = vcmp.gt.f32.partialorder %v1817, 0.0
        %vm1986 = vcmp.gt.f32.partialorder %v1819, 0.0
        %vm1987 = vcmp.gt.f32.partialorder %v1821, 0.0
        %vm1988 = vcmp.gt.f32.partialorder %v1823, 0.0
        %vm1989 = vcmp.gt.f32.partialorder %v1825, 0.0
        %vm1990 = vcmp.gt.f32.partialorder %v1827, 0.0
        %vm1991 = vcmp.gt.f32.partialorder %v1829, 0.0
        %vm1992 = vcmp.gt.f32.partialorder %v1831, 0.0
        %vm1993 = vcmp.gt.f32.partialorder %v1833, 0.0
        %vm1994 = vcmp.gt.f32.partialorder %v1835, 0.0
        %vm1995 = vcmp.gt.f32.partialorder %v1837, 0.0
        %vm1996 = vcmp.gt.f32.partialorder %v1839, 0.0
        %vm1997 = vcmp.gt.f32.partialorder %v1841, 0.0
        %vm1998 = vcmp.gt.f32.partialorder %v1843, 0.0
        %vm1999 = vcmp.gt.f32.partialorder %v1845, 0.0
        %vm2000 = vcmp.gt.f32.partialorder %v1847, 0.0
        %vm2001 = vcmp.gt.f32.partialorder %v1849, 0.0
        %vm2002 = vcmp.gt.f32.partialorder %v1851, 0.0
        %vm2003 = vcmp.gt.f32.partialorder %v1853, 0.0
        %vm2004 = vcmp.gt.f32.partialorder %v1855, 0.0
        %vm2005 = vcmp.gt.f32.partialorder %v1857, 0.0
        %vm2006 = vcmp.gt.f32.partialorder %v1859, 0.0
        %vm2007 = vcmp.gt.f32.partialorder %v1861, 0.0
        %vm2008 = vcmp.gt.f32.partialorder %v1863, 0.0
        %vm2009 = vcmp.gt.f32.partialorder %v1865, 0.0
        %vm2010 = vcmp.gt.f32.partialorder %v1867, 0.0
        %vm2011 = vcmp.gt.f32.partialorder %v1869, 0.0
        %vm2012 = vcmp.gt.f32.partialorder %v1871, 0.0
        %vm2013 = vcmp.gt.f32.partialorder %v1873, 0.0
        %vm2014 = vcmp.gt.f32.partialorder %v1875, 0.0
        %vm2015 = vcmp.gt.f32.partialorder %v1877, 0.0
        %vm2016 = vcmp.gt.f32.partialorder %v1879, 0.0
        %vm2017 = vcmp.gt.f32.partialorder %v1881, 0.0
        %vm2018 = vcmp.gt.f32.partialorder %v1883, 0.0
        %vm2019 = vcmp.gt.f32.partialorder %v1885, 0.0
        %vm2020 = vcmp.gt.f32.partialorder %v1887, 0.0
        %vm2021 = vcmp.gt.f32.partialorder %v1889, 0.0
        %vm2022 = vcmp.gt.f32.partialorder %v1891, 0.0
        %vm2023 = vcmp.gt.f32.partialorder %v1893, 0.0
        %vm2024 = vcmp.gt.f32.partialorder %v1895, 0.0
        %vm2025 = vcmp.gt.f32.partialorder %v1897, 0.0
        %v2026 = vcombine.high %v197, %v197
        %v2028 = vunpack.c.l.s4 1966171168
        %v2029 = vunpack.c.0.s8 %v2028
        %v2030 = vlaneseq
        %v2031 = vshrl.u32 %v2030, 7
        %v2032 = vsub.s32 %v2029, %v2031
        %v2033 = vrot.slane %v197, %v2032
        %v2035 = vunpack.c.l.s4 1966171168
        %v2036 = vunpack.c.0.s8 %v2035
        %v2037 = vlaneseq
        %v2038 = vshrl.u32 %v2037, 7
        %v2039 = vsub.s32 %v2036, %v2038
        %v2040 = vrot.slane %v2026, %v2039
        %v2041 = vcombine.high %v2033, %v2033
        %v2042 = vcombine.high %v2040, %v2040
        %v2044 = vunpack.c.l.s4 1966171168
        %v2045 = vunpack.c.0.s8 %v2044
        %v2046 = vlaneseq
        %v2047 = vshrl.u32 %v2046, 7
        %v2048 = vsub.s32 %v2045, %v2047
        %v2049 = vrot.slane %v2033, %v2048
        %v2051 = vunpack.c.l.s4 1966171168
        %v2052 = vunpack.c.0.s8 %v2051
        %v2053 = vlaneseq
        %v2054 = vshrl.u32 %v2053, 7
        %v2055 = vsub.s32 %v2052, %v2054
        %v2056 = vrot.slane %v2040, %v2055
        %v2058 = vunpack.c.l.s4 1966171168
        %v2059 = vunpack.c.0.s8 %v2058
        %v2060 = vlaneseq
        %v2061 = vshrl.u32 %v2060, 7
        %v2062 = vsub.s32 %v2059, %v2061
        %v2063 = vrot.slane %v2041, %v2062
        %v2065 = vunpack.c.l.s4 1966171168
        %v2066 = vunpack.c.0.s8 %v2065
        %v2067 = vlaneseq
        %v2068 = vshrl.u32 %v2067, 7
        %v2069 = vsub.s32 %v2066, %v2068
        %v2070 = vrot.slane %v2042, %v2069
        %v2071 = vcombine.high %v2049, %v2049
        %v2072 = vcombine.high %v2056, %v2056
        %v2073 = vcombine.high %v2063, %v2063
        %v2074 = vcombine.high %v2070, %v2070
        %v2075 = vlaneseq
        %v2076 = vshrl.u32 %v2075, 7
        %v2077 = vsub.s32 0, %v2076
        %v2078 = vrot.slane %v2049, %v2077
        %v2079 = vlaneseq
        %v2080 = vshrl.u32 %v2079, 7
        %v2081 = vsub.s32 0, %v2080
        %v2082 = vrot.slane %v2063, %v2081
        %v2083 = vlaneseq
        %v2084 = vshrl.u32 %v2083, 7
        %v2085 = vsub.s32 0, %v2084
        %v2086 = vrot.slane %v2071, %v2085
        %v2087 = vlaneseq
        %v2088 = vshrl.u32 %v2087, 7
        %v2089 = vsub.s32 0, %v2088
        %v2090 = vrot.slane %v2073, %v2089
        %v2091 = vlaneseq
        %v2092 = vshrl.u32 %v2091, 7
        %v2093 = vsub.s32 0, %v2092
        %v2094 = vrot.slane %v2056, %v2093
        %v2095 = vlaneseq
        %v2096 = vshrl.u32 %v2095, 7
        %v2097 = vsub.s32 0, %v2096
        %v2098 = vrot.slane %v2070, %v2097
        %v2099 = vlaneseq
        %v2100 = vshrl.u32 %v2099, 7
        %v2101 = vsub.s32 0, %v2100
        %v2102 = vrot.slane %v2072, %v2101
        %v2103 = vlaneseq
        %v2104 = vshrl.u32 %v2103, 7
        %v2105 = vsub.s32 0, %v2104
        %v2106 = vrot.slane %v2074, %v2105
        %vm2107 = vcmp.eq.s32.totalorder %v239, %v2078
        %vm2108 = vcmp.eq.s32.totalorder %v243, %v2078
        %vm2109 = vcmp.eq.s32.totalorder %v247, %v2078
        %vm2110 = vcmp.eq.s32.totalorder %v251, %v2078
        %vm2111 = vcmp.eq.s32.totalorder %v255, %v2078
        %vm2112 = vcmp.eq.s32.totalorder %v259, %v2078
        %vm2113 = vcmp.eq.s32.totalorder %v263, %v2078
        %vm2114 = vcmp.eq.s32.totalorder %v267, %v2078
        %vm2115 = vcmp.eq.s32.totalorder %v271, %v2078
        %vm2116 = vcmp.eq.s32.totalorder %v275, %v2078
        %vm2117 = vcmp.eq.s32.totalorder %v279, %v2078
        %vm2118 = vcmp.eq.s32.totalorder %v283, %v2078
        %vm2119 = vcmp.eq.s32.totalorder %v287, %v2078
        %vm2120 = vcmp.eq.s32.totalorder %v291, %v2078
        %vm2121 = vcmp.eq.s32.totalorder %v295, %v2078
        %vm2122 = vcmp.eq.s32.totalorder %v299, %v2078
        %vm2123 = vcmp.eq.s32.totalorder %v306, %v2082
        %vm2124 = vcmp.eq.s32.totalorder %v310, %v2082
        %vm2125 = vcmp.eq.s32.totalorder %v314, %v2082
        %vm2126 = vcmp.eq.s32.totalorder %v318, %v2082
        %vm2127 = vcmp.eq.s32.totalorder %v322, %v2082
        %vm2128 = vcmp.eq.s32.totalorder %v326, %v2082
        %vm2129 = vcmp.eq.s32.totalorder %v330, %v2082
        %vm2130 = vcmp.eq.s32.totalorder %v334, %v2082
        %vm2131 = vcmp.eq.s32.totalorder %v338, %v2082
        %vm2132 = vcmp.eq.s32.totalorder %v342, %v2082
        %vm2133 = vcmp.eq.s32.totalorder %v346, %v2082
        %vm2134 = vcmp.eq.s32.totalorder %v350, %v2082
        %vm2135 = vcmp.eq.s32.totalorder %v354, %v2082
        %vm2136 = vcmp.eq.s32.totalorder %v358, %v2082
        %vm2137 = vcmp.eq.s32.totalorder %v362, %v2082
        %vm2138 = vcmp.eq.s32.totalorder %v366, %v2082
        %vm2139 = vcmp.eq.s32.totalorder %v373, %v2086
        %vm2140 = vcmp.eq.s32.totalorder %v377, %v2086
        %vm2141 = vcmp.eq.s32.totalorder %v381, %v2086
        %vm2142 = vcmp.eq.s32.totalorder %v385, %v2086
        %vm2143 = vcmp.eq.s32.totalorder %v389, %v2086
        %vm2144 = vcmp.eq.s32.totalorder %v393, %v2086
        %vm2145 = vcmp.eq.s32.totalorder %v397, %v2086
        %vm2146 = vcmp.eq.s32.totalorder %v401, %v2086
        %vm2147 = vcmp.eq.s32.totalorder %v405, %v2086
        %vm2148 = vcmp.eq.s32.totalorder %v409, %v2086
        %vm2149 = vcmp.eq.s32.totalorder %v413, %v2086
        %vm2150 = vcmp.eq.s32.totalorder %v417, %v2086
        %vm2151 = vcmp.eq.s32.totalorder %v421, %v2086
        %vm2152 = vcmp.eq.s32.totalorder %v425, %v2086
        %vm2153 = vcmp.eq.s32.totalorder %v429, %v2086
        %vm2154 = vcmp.eq.s32.totalorder %v433, %v2086
        %vm2155 = vcmp.eq.s32.totalorder %v440, %v2090
        %vm2156 = vcmp.eq.s32.totalorder %v444, %v2090
        %vm2157 = vcmp.eq.s32.totalorder %v448, %v2090
        %vm2158 = vcmp.eq.s32.totalorder %v452, %v2090
        %vm2159 = vcmp.eq.s32.totalorder %v456, %v2090
        %vm2160 = vcmp.eq.s32.totalorder %v460, %v2090
        %vm2161 = vcmp.eq.s32.totalorder %v464, %v2090
        %vm2162 = vcmp.eq.s32.totalorder %v468, %v2090
        %vm2163 = vcmp.eq.s32.totalorder %v472, %v2090
        %vm2164 = vcmp.eq.s32.totalorder %v476, %v2090
        %vm2165 = vcmp.eq.s32.totalorder %v480, %v2090
        %vm2166 = vcmp.eq.s32.totalorder %v484, %v2090
        %vm2167 = vcmp.eq.s32.totalorder %v488, %v2090
        %vm2168 = vcmp.eq.s32.totalorder %v492, %v2090
        %vm2169 = vcmp.eq.s32.totalorder %v496, %v2090
        %vm2170 = vcmp.eq.s32.totalorder %v500, %v2090
        %vm2171 = vcmp.eq.s32.totalorder %v507, %v2094
        %vm2172 = vcmp.eq.s32.totalorder %v511, %v2094
        %vm2173 = vcmp.eq.s32.totalorder %v515, %v2094
        %vm2174 = vcmp.eq.s32.totalorder %v519, %v2094
        %vm2175 = vcmp.eq.s32.totalorder %v523, %v2094
        %vm2176 = vcmp.eq.s32.totalorder %v527, %v2094
        %vm2177 = vcmp.eq.s32.totalorder %v531, %v2094
        %vm2178 = vcmp.eq.s32.totalorder %v535, %v2094
        %vm2179 = vcmp.eq.s32.totalorder %v539, %v2094
        %vm2180 = vcmp.eq.s32.totalorder %v543, %v2094
        %vm2181 = vcmp.eq.s32.totalorder %v547, %v2094
        %vm2182 = vcmp.eq.s32.totalorder %v551, %v2094
        %vm2183 = vcmp.eq.s32.totalorder %v555, %v2094
        %vm2184 = vcmp.eq.s32.totalorder %v559, %v2094
        %vm2185 = vcmp.eq.s32.totalorder %v563, %v2094
        %vm2186 = vcmp.eq.s32.totalorder %v567, %v2094
        %vm2187 = vcmp.eq.s32.totalorder %v574, %v2098
        %vm2188 = vcmp.eq.s32.totalorder %v578, %v2098
        %vm2189 = vcmp.eq.s32.totalorder %v582, %v2098
        %vm2190 = vcmp.eq.s32.totalorder %v586, %v2098
        %vm2191 = vcmp.eq.s32.totalorder %v590, %v2098
        %vm2192 = vcmp.eq.s32.totalorder %v594, %v2098
        %vm2193 = vcmp.eq.s32.totalorder %v598, %v2098
        %vm2194 = vcmp.eq.s32.totalorder %v602, %v2098
        %vm2195 = vcmp.eq.s32.totalorder %v606, %v2098
        %vm2196 = vcmp.eq.s32.totalorder %v610, %v2098
        %vm2197 = vcmp.eq.s32.totalorder %v614, %v2098
        %vm2198 = vcmp.eq.s32.totalorder %v618, %v2098
        %vm2199 = vcmp.eq.s32.totalorder %v622, %v2098
        %vm2200 = vcmp.eq.s32.totalorder %v626, %v2098
        %vm2201 = vcmp.eq.s32.totalorder %v630, %v2098
        %vm2202 = vcmp.eq.s32.totalorder %v634, %v2098
        %vm2203 = vcmp.eq.s32.totalorder %v641, %v2102
        %vm2204 = vcmp.eq.s32.totalorder %v645, %v2102
        %vm2205 = vcmp.eq.s32.totalorder %v649, %v2102
        %vm2206 = vcmp.eq.s32.totalorder %v653, %v2102
        %vm2207 = vcmp.eq.s32.totalorder %v657, %v2102
        %vm2208 = vcmp.eq.s32.totalorder %v661, %v2102
        %vm2209 = vcmp.eq.s32.totalorder %v665, %v2102
        %vm2210 = vcmp.eq.s32.totalorder %v669, %v2102
        %vm2211 = vcmp.eq.s32.totalorder %v673, %v2102
        %vm2212 = vcmp.eq.s32.totalorder %v677, %v2102
        %vm2213 = vcmp.eq.s32.totalorder %v681, %v2102
        %vm2214 = vcmp.eq.s32.totalorder %v685, %v2102
        %vm2215 = vcmp.eq.s32.totalorder %v689, %v2102
        %vm2216 = vcmp.eq.s32.totalorder %v693, %v2102
        %vm2217 = vcmp.eq.s32.totalorder %v697, %v2102
        %vm2218 = vcmp.eq.s32.totalorder %v701, %v2102
        %vm2219 = vcmp.eq.s32.totalorder %v708, %v2106
        %vm2220 = vcmp.eq.s32.totalorder %v712, %v2106
        %vm2221 = vcmp.eq.s32.totalorder %v716, %v2106
        %vm2222 = vcmp.eq.s32.totalorder %v720, %v2106
        %vm2223 = vcmp.eq.s32.totalorder %v724, %v2106
        %vm2224 = vcmp.eq.s32.totalorder %v728, %v2106
        %vm2225 = vcmp.eq.s32.totalorder %v732, %v2106
        %vm2226 = vcmp.eq.s32.totalorder %v736, %v2106
        %vm2227 = vcmp.eq.s32.totalorder %v740, %v2106
        %vm2228 = vcmp.eq.s32.totalorder %v744, %v2106
        %vm2229 = vcmp.eq.s32.totalorder %v748, %v2106
        %vm2230 = vcmp.eq.s32.totalorder %v752, %v2106
        %vm2231 = vcmp.eq.s32.totalorder %v756, %v2106
        %vm2232 = vcmp.eq.s32.totalorder %v760, %v2106
        %vm2233 = vcmp.eq.s32.totalorder %v764, %v2106
        %vm2234 = vcmp.eq.s32.totalorder %v768, %v2106
        %v2235 = vsel %vm217, 1, 0
        %v2236 = vsel %vm218, 1, 0
        %v2237 = vsel %vm219, 1, 0
        %v2238 = vsel %vm220, 1, 0
        %v2239 = vsel %vm221, 1, 0
        %v2240 = vsel %vm222, 1, 0
        %v2241 = vsel %vm223, 1, 0
        %v2242 = vsel %vm224, 1, 0
        %v2243 = vsel %vm225, 1, 0
        %v2244 = vsel %vm226, 1, 0
        %v2245 = vsel %vm227, 1, 0
        %v2246 = vsel %vm228, 1, 0
        %v2247 = vsel %vm229, 1, 0
        %v2248 = vsel %vm230, 1, 0
        %v2249 = vsel %vm231, 1, 0
        %v2250 = vsel %vm232, 1, 0
        %vm2251 = vcmp.eq.s32.totalorder %v2235, 1
        %vm2252 = vcmp.eq.s32.totalorder %v2236, 1
        %vm2253 = vcmp.eq.s32.totalorder %v2237, 1
        %vm2254 = vcmp.eq.s32.totalorder %v2238, 1
        %vm2255 = vcmp.eq.s32.totalorder %v2239, 1
        %vm2256 = vcmp.eq.s32.totalorder %v2240, 1
        %vm2257 = vcmp.eq.s32.totalorder %v2241, 1
        %vm2258 = vcmp.eq.s32.totalorder %v2242, 1
        %vm2259 = vcmp.eq.s32.totalorder %v2243, 1
        %vm2260 = vcmp.eq.s32.totalorder %v2244, 1
        %vm2261 = vcmp.eq.s32.totalorder %v2245, 1
        %vm2262 = vcmp.eq.s32.totalorder %v2246, 1
        %vm2263 = vcmp.eq.s32.totalorder %v2247, 1
        %vm2264 = vcmp.eq.s32.totalorder %v2248, 1
        %vm2265 = vcmp.eq.s32.totalorder %v2249, 1
        %vm2266 = vcmp.eq.s32.totalorder %v2250, 1
        %vm2267 = vmand %vm2107, %vm2251
        %vm2268 = vmand %vm2108, %vm2252
        %vm2269 = vmand %vm2109, %vm2253
        %vm2270 = vmand %vm2110, %vm2254
        %vm2271 = vmand %vm2111, %vm2255
        %vm2272 = vmand %vm2112, %vm2256
        %vm2273 = vmand %vm2113, %vm2257
        %vm2274 = vmand %vm2114, %vm2258
        %vm2275 = vmand %vm2115, %vm2259
        %vm2276 = vmand %vm2116, %vm2260
        %vm2277 = vmand %vm2117, %vm2261
        %vm2278 = vmand %vm2118, %vm2262
        %vm2279 = vmand %vm2119, %vm2263
        %vm2280 = vmand %vm2120, %vm2264
        %vm2281 = vmand %vm2121, %vm2265
        %vm2282 = vmand %vm2122, %vm2266
        %vm2283 = vmand %vm2123, %vm2251
        %vm2284 = vmand %vm2124, %vm2252
        %vm2285 = vmand %vm2125, %vm2253
        %vm2286 = vmand %vm2126, %vm2254
        %vm2287 = vmand %vm2127, %vm2255
        %vm2288 = vmand %vm2128, %vm2256
        %vm2289 = vmand %vm2129, %vm2257
        %vm2290 = vmand %vm2130, %vm2258
        %vm2291 = vmand %vm2131, %vm2259
        %vm2292 = vmand %vm2132, %vm2260
        %vm2293 = vmand %vm2133, %vm2261
        %vm2294 = vmand %vm2134, %vm2262
        %vm2295 = vmand %vm2135, %vm2263
        %vm2296 = vmand %vm2136, %vm2264
        %vm2297 = vmand %vm2137, %vm2265
        %vm2298 = vmand %vm2138, %vm2266
        %vm2299 = vmand %vm2139, %vm2251
        %vm2300 = vmand %vm2140, %vm2252
        %vm2301 = vmand %vm2141, %vm2253
        %vm2302 = vmand %vm2142, %vm2254
        %vm2303 = vmand %vm2143, %vm2255
        %vm2304 = vmand %vm2144, %vm2256
        %vm2305 = vmand %vm2145, %vm2257
        %vm2306 = vmand %vm2146, %vm2258
        %vm2307 = vmand %vm2147, %vm2259
        %vm2308 = vmand %vm2148, %vm2260
        %vm2309 = vmand %vm2149, %vm2261
        %vm2310 = vmand %vm2150, %vm2262
        %vm2311 = vmand %vm2151, %vm2263
        %vm2312 = vmand %vm2152, %vm2264
        %vm2313 = vmand %vm2153, %vm2265
        %vm2314 = vmand %vm2154, %vm2266
        %vm2315 = vmand %vm2155, %vm2251
        %vm2316 = vmand %vm2156, %vm2252
        %vm2317 = vmand %vm2157, %vm2253
        %vm2318 = vmand %vm2158, %vm2254
        %vm2319 = vmand %vm2159, %vm2255
        %vm2320 = vmand %vm2160, %vm2256
        %vm2321 = vmand %vm2161, %vm2257
        %vm2322 = vmand %vm2162, %vm2258
        %vm2323 = vmand %vm2163, %vm2259
        %vm2324 = vmand %vm2164, %vm2260
        %vm2325 = vmand %vm2165, %vm2261
        %vm2326 = vmand %vm2166, %vm2262
        %vm2327 = vmand %vm2167, %vm2263
        %vm2328 = vmand %vm2168, %vm2264
        %vm2329 = vmand %vm2169, %vm2265
        %vm2330 = vmand %vm2170, %vm2266
        %vm2331 = vmand %vm2171, %vm2251
        %vm2332 = vmand %vm2172, %vm2252
        %vm2333 = vmand %vm2173, %vm2253
        %vm2334 = vmand %vm2174, %vm2254
        %vm2335 = vmand %vm2175, %vm2255
        %vm2336 = vmand %vm2176, %vm2256
        %vm2337 = vmand %vm2177, %vm2257
        %vm2338 = vmand %vm2178, %vm2258
        %vm2339 = vmand %vm2179, %vm2259
        %vm2340 = vmand %vm2180, %vm2260
        %vm2341 = vmand %vm2181, %vm2261
        %vm2342 = vmand %vm2182, %vm2262
        %vm2343 = vmand %vm2183, %vm2263
        %vm2344 = vmand %vm2184, %vm2264
        %vm2345 = vmand %vm2185, %vm2265
        %vm2346 = vmand %vm2186, %vm2266
        %vm2347 = vmand %vm2187, %vm2251
        %vm2348 = vmand %vm2188, %vm2252
        %vm2349 = vmand %vm2189, %vm2253
        %vm2350 = vmand %vm2190, %vm2254
        %vm2351 = vmand %vm2191, %vm2255
        %vm2352 = vmand %vm2192, %vm2256
        %vm2353 = vmand %vm2193, %vm2257
        %vm2354 = vmand %vm2194, %vm2258
        %vm2355 = vmand %vm2195, %vm2259
        %vm2356 = vmand %vm2196, %vm2260
        %vm2357 = vmand %vm2197, %vm2261
        %vm2358 = vmand %vm2198, %vm2262
        %vm2359 = vmand %vm2199, %vm2263
        %vm2360 = vmand %vm2200, %vm2264
        %vm2361 = vmand %vm2201, %vm2265
        %vm2362 = vmand %vm2202, %vm2266
        %vm2363 = vmand %vm2203, %vm2251
        %vm2364 = vmand %vm2204, %vm2252
        %vm2365 = vmand %vm2205, %vm2253
        %vm2366 = vmand %vm2206, %vm2254
        %vm2367 = vmand %vm2207, %vm2255
        %vm2368 = vmand %vm2208, %vm2256
        %vm2369 = vmand %vm2209, %vm2257
        %vm2370 = vmand %vm2210, %vm2258
        %vm2371 = vmand %vm2211, %vm2259
        %vm2372 = vmand %vm2212, %vm2260
        %vm2373 = vmand %vm2213, %vm2261
        %vm2374 = vmand %vm2214, %vm2262
        %vm2375 = vmand %vm2215, %vm2263
        %vm2376 = vmand %vm2216, %vm2264
        %vm2377 = vmand %vm2217, %vm2265
        %vm2378 = vmand %vm2218, %vm2266
        %vm2379 = vmand %vm2219, %vm2251
        %vm2380 = vmand %vm2220, %vm2252
        %vm2381 = vmand %vm2221, %vm2253
        %vm2382 = vmand %vm2222, %vm2254
        %vm2383 = vmand %vm2223, %vm2255
        %vm2384 = vmand %vm2224, %vm2256
        %vm2385 = vmand %vm2225, %vm2257
        %vm2386 = vmand %vm2226, %vm2258
        %vm2387 = vmand %vm2227, %vm2259
        %vm2388 = vmand %vm2228, %vm2260
        %vm2389 = vmand %vm2229, %vm2261
        %vm2390 = vmand %vm2230, %vm2262
        %vm2391 = vmand %vm2231, %vm2263
        %vm2392 = vmand %vm2232, %vm2264
        %vm2393 = vmand %vm2233, %vm2265
        %vm2394 = vmand %vm2234, %vm2266
        %v2395 = vsel %vm2267, 1.0, 0.0
        %v2396 = vsel %vm2268, 1.0, 0.0
        %v2397 = vsel %vm2269, 1.0, 0.0
        %v2398 = vsel %vm2270, 1.0, 0.0
        %v2399 = vsel %vm2271, 1.0, 0.0
        %v2400 = vsel %vm2272, 1.0, 0.0
        %v2401 = vsel %vm2273, 1.0, 0.0
        %v2402 = vsel %vm2274, 1.0, 0.0
        %v2403 = vsel %vm2275, 1.0, 0.0
        %v2404 = vsel %vm2276, 1.0, 0.0
        %v2405 = vsel %vm2277, 1.0, 0.0
        %v2406 = vsel %vm2278, 1.0, 0.0
        %v2407 = vsel %vm2279, 1.0, 0.0
        %v2408 = vsel %vm2280, 1.0, 0.0
        %v2409 = vsel %vm2281, 1.0, 0.0
        %v2410 = vsel %vm2282, 1.0, 0.0
        %v2411 = vsel %vm2283, 1.0, 0.0
        %v2412 = vsel %vm2284, 1.0, 0.0
        %v2413 = vsel %vm2285, 1.0, 0.0
        %v2414 = vsel %vm2286, 1.0, 0.0
        %v2415 = vsel %vm2287, 1.0, 0.0
        %v2416 = vsel %vm2288, 1.0, 0.0
        %v2417 = vsel %vm2289, 1.0, 0.0
        %v2418 = vsel %vm2290, 1.0, 0.0
        %v2419 = vsel %vm2291, 1.0, 0.0
        %v2420 = vsel %vm2292, 1.0, 0.0
        %v2421 = vsel %vm2293, 1.0, 0.0
        %v2422 = vsel %vm2294, 1.0, 0.0
        %v2423 = vsel %vm2295, 1.0, 0.0
        %v2424 = vsel %vm2296, 1.0, 0.0
        %v2425 = vsel %vm2297, 1.0, 0.0
        %v2426 = vsel %vm2298, 1.0, 0.0
        %v2427 = vsel %vm2299, 1.0, 0.0
        %v2428 = vsel %vm2300, 1.0, 0.0
        %v2429 = vsel %vm2301, 1.0, 0.0
        %v2430 = vsel %vm2302, 1.0, 0.0
        %v2431 = vsel %vm2303, 1.0, 0.0
        %v2432 = vsel %vm2304, 1.0, 0.0
        %v2433 = vsel %vm2305, 1.0, 0.0
        %v2434 = vsel %vm2306, 1.0, 0.0
        %v2435 = vsel %vm2307, 1.0, 0.0
        %v2436 = vsel %vm2308, 1.0, 0.0
        %v2437 = vsel %vm2309, 1.0, 0.0
        %v2438 = vsel %vm2310, 1.0, 0.0
        %v2439 = vsel %vm2311, 1.0, 0.0
        %v2440 = vsel %vm2312, 1.0, 0.0
        %v2441 = vsel %vm2313, 1.0, 0.0
        %v2442 = vsel %vm2314, 1.0, 0.0
        %v2443 = vsel %vm2315, 1.0, 0.0
        %v2444 = vsel %vm2316, 1.0, 0.0
        %v2445 = vsel %vm2317, 1.0, 0.0
        %v2446 = vsel %vm2318, 1.0, 0.0
        %v2447 = vsel %vm2319, 1.0, 0.0
        %v2448 = vsel %vm2320, 1.0, 0.0
        %v2449 = vsel %vm2321, 1.0, 0.0
        %v2450 = vsel %vm2322, 1.0, 0.0
        %v2451 = vsel %vm2323, 1.0, 0.0
        %v2452 = vsel %vm2324, 1.0, 0.0
        %v2453 = vsel %vm2325, 1.0, 0.0
        %v2454 = vsel %vm2326, 1.0, 0.0
        %v2455 = vsel %vm2327, 1.0, 0.0
        %v2456 = vsel %vm2328, 1.0, 0.0
        %v2457 = vsel %vm2329, 1.0, 0.0
        %v2458 = vsel %vm2330, 1.0, 0.0
        %v2459 = vsel %vm2331, 1.0, 0.0
        %v2460 = vsel %vm2332, 1.0, 0.0
        %v2461 = vsel %vm2333, 1.0, 0.0
        %v2462 = vsel %vm2334, 1.0, 0.0
        %v2463 = vsel %vm2335, 1.0, 0.0
        %v2464 = vsel %vm2336, 1.0, 0.0
        %v2465 = vsel %vm2337, 1.0, 0.0
        %v2466 = vsel %vm2338, 1.0, 0.0
        %v2467 = vsel %vm2339, 1.0, 0.0
        %v2468 = vsel %vm2340, 1.0, 0.0
        %v2469 = vsel %vm2341, 1.0, 0.0
        %v2470 = vsel %vm2342, 1.0, 0.0
        %v2471 = vsel %vm2343, 1.0, 0.0
        %v2472 = vsel %vm2344, 1.0, 0.0
        %v2473 = vsel %vm2345, 1.0, 0.0
        %v2474 = vsel %vm2346, 1.0, 0.0
        %v2475 = vsel %vm2347, 1.0, 0.0
        %v2476 = vsel %vm2348, 1.0, 0.0
        %v2477 = vsel %vm2349, 1.0, 0.0
        %v2478 = vsel %vm2350, 1.0, 0.0
        %v2479 = vsel %vm2351, 1.0, 0.0
        %v2480 = vsel %vm2352, 1.0, 0.0
        %v2481 = vsel %vm2353, 1.0, 0.0
        %v2482 = vsel %vm2354, 1.0, 0.0
        %v2483 = vsel %vm2355, 1.0, 0.0
        %v2484 = vsel %vm2356, 1.0, 0.0
        %v2485 = vsel %vm2357, 1.0, 0.0
        %v2486 = vsel %vm2358, 1.0, 0.0
        %v2487 = vsel %vm2359, 1.0, 0.0
        %v2488 = vsel %vm2360, 1.0, 0.0
        %v2489 = vsel %vm2361, 1.0, 0.0
        %v2490 = vsel %vm2362, 1.0, 0.0
        %v2491 = vsel %vm2363, 1.0, 0.0
        %v2492 = vsel %vm2364, 1.0, 0.0
        %v2493 = vsel %vm2365, 1.0, 0.0
        %v2494 = vsel %vm2366, 1.0, 0.0
        %v2495 = vsel %vm2367, 1.0, 0.0
        %v2496 = vsel %vm2368, 1.0, 0.0
        %v2497 = vsel %vm2369, 1.0, 0.0
        %v2498 = vsel %vm2370, 1.0, 0.0
        %v2499 = vsel %vm2371, 1.0, 0.0
        %v2500 = vsel %vm2372, 1.0, 0.0
        %v2501 = vsel %vm2373, 1.0, 0.0
        %v2502 = vsel %vm2374, 1.0, 0.0
        %v2503 = vsel %vm2375, 1.0, 0.0
        %v2504 = vsel %vm2376, 1.0, 0.0
        %v2505 = vsel %vm2377, 1.0, 0.0
        %v2506 = vsel %vm2378, 1.0, 0.0
        %v2507 = vsel %vm2379, 1.0, 0.0
        %v2508 = vsel %vm2380, 1.0, 0.0
        %v2509 = vsel %vm2381, 1.0, 0.0
        %v2510 = vsel %vm2382, 1.0, 0.0
        %v2511 = vsel %vm2383, 1.0, 0.0
        %v2512 = vsel %vm2384, 1.0, 0.0
        %v2513 = vsel %vm2385, 1.0, 0.0
        %v2514 = vsel %vm2386, 1.0, 0.0
        %v2515 = vsel %vm2387, 1.0, 0.0
        %v2516 = vsel %vm2388, 1.0, 0.0
        %v2517 = vsel %vm2389, 1.0, 0.0
        %v2518 = vsel %vm2390, 1.0, 0.0
        %v2519 = vsel %vm2391, 1.0, 0.0
        %v2520 = vsel %vm2392, 1.0, 0.0
        %v2521 = vsel %vm2393, 1.0, 0.0
        %v2522 = vsel %vm2394, 1.0, 0.0
        %2523 = vmax.xlane.f32.xlu0 %v2395
        %v2524 = vpop.xlane.xlu0 %2523
        %2525 = vmax.xlane.f32.xlu0 %v2396
        %v2526 = vpop.xlane.xlu0 %2525
        %2527 = vmax.xlane.f32.xlu0 %v2397
        %v2528 = vpop.xlane.xlu0 %2527
        %2529 = vmax.xlane.f32.xlu0 %v2398
        %v2530 = vpop.xlane.xlu0 %2529
        %2531 = vmax.xlane.f32.xlu0 %v2399
        %v2532 = vpop.xlane.xlu0 %2531
        %2533 = vmax.xlane.f32.xlu0 %v2400
        %v2534 = vpop.xlane.xlu0 %2533
        %2535 = vmax.xlane.f32.xlu0 %v2401
        %v2536 = vpop.xlane.xlu0 %2535
        %2537 = vmax.xlane.f32.xlu0 %v2402
        %v2538 = vpop.xlane.xlu0 %2537
        %2539 = vmax.xlane.f32.xlu0 %v2403
        %v2540 = vpop.xlane.xlu0 %2539
        %2541 = vmax.xlane.f32.xlu0 %v2404
        %v2542 = vpop.xlane.xlu0 %2541
        %2543 = vmax.xlane.f32.xlu0 %v2405
        %v2544 = vpop.xlane.xlu0 %2543
        %2545 = vmax.xlane.f32.xlu0 %v2406
        %v2546 = vpop.xlane.xlu0 %2545
        %2547 = vmax.xlane.f32.xlu0 %v2407
        %v2548 = vpop.xlane.xlu0 %2547
        %2549 = vmax.xlane.f32.xlu0 %v2408
        %v2550 = vpop.xlane.xlu0 %2549
        %2551 = vmax.xlane.f32.xlu0 %v2409
        %v2552 = vpop.xlane.xlu0 %2551
        %2553 = vmax.xlane.f32.xlu0 %v2410
        %v2554 = vpop.xlane.xlu0 %2553
        %2555 = vmax.xlane.f32.xlu0 %v2411
        %v2556 = vpop.xlane.xlu0 %2555
        %2557 = vmax.xlane.f32.xlu0 %v2412
        %v2558 = vpop.xlane.xlu0 %2557
        %2559 = vmax.xlane.f32.xlu0 %v2413
        %v2560 = vpop.xlane.xlu0 %2559
        %2561 = vmax.xlane.f32.xlu0 %v2414
        %v2562 = vpop.xlane.xlu0 %2561
        %2563 = vmax.xlane.f32.xlu0 %v2415
        %v2564 = vpop.xlane.xlu0 %2563
        %2565 = vmax.xlane.f32.xlu0 %v2416
        %v2566 = vpop.xlane.xlu0 %2565
        %2567 = vmax.xlane.f32.xlu0 %v2417
        %v2568 = vpop.xlane.xlu0 %2567
        %2569 = vmax.xlane.f32.xlu0 %v2418
        %v2570 = vpop.xlane.xlu0 %2569
        %2571 = vmax.xlane.f32.xlu0 %v2419
        %v2572 = vpop.xlane.xlu0 %2571
        %2573 = vmax.xlane.f32.xlu0 %v2420
        %v2574 = vpop.xlane.xlu0 %2573
        %2575 = vmax.xlane.f32.xlu0 %v2421
        %v2576 = vpop.xlane.xlu0 %2575
        %2577 = vmax.xlane.f32.xlu0 %v2422
        %v2578 = vpop.xlane.xlu0 %2577
        %2579 = vmax.xlane.f32.xlu0 %v2423
        %v2580 = vpop.xlane.xlu0 %2579
        %2581 = vmax.xlane.f32.xlu0 %v2424
        %v2582 = vpop.xlane.xlu0 %2581
        %2583 = vmax.xlane.f32.xlu0 %v2425
        %v2584 = vpop.xlane.xlu0 %2583
        %2585 = vmax.xlane.f32.xlu0 %v2426
        %v2586 = vpop.xlane.xlu0 %2585
        %2587 = vmax.xlane.f32.xlu0 %v2427
        %v2588 = vpop.xlane.xlu0 %2587
        %2589 = vmax.xlane.f32.xlu0 %v2428
        %v2590 = vpop.xlane.xlu0 %2589
        %2591 = vmax.xlane.f32.xlu0 %v2429
        %v2592 = vpop.xlane.xlu0 %2591
        %2593 = vmax.xlane.f32.xlu0 %v2430
        %v2594 = vpop.xlane.xlu0 %2593
        %2595 = vmax.xlane.f32.xlu0 %v2431
        %v2596 = vpop.xlane.xlu0 %2595
        %2597 = vmax.xlane.f32.xlu0 %v2432
        %v2598 = vpop.xlane.xlu0 %2597
        %2599 = vmax.xlane.f32.xlu0 %v2433
        %v2600 = vpop.xlane.xlu0 %2599
        %2601 = vmax.xlane.f32.xlu0 %v2434
        %v2602 = vpop.xlane.xlu0 %2601
        %2603 = vmax.xlane.f32.xlu0 %v2435
        %v2604 = vpop.xlane.xlu0 %2603
        %2605 = vmax.xlane.f32.xlu0 %v2436
        %v2606 = vpop.xlane.xlu0 %2605
        %2607 = vmax.xlane.f32.xlu0 %v2437
        %v2608 = vpop.xlane.xlu0 %2607
        %2609 = vmax.xlane.f32.xlu0 %v2438
        %v2610 = vpop.xlane.xlu0 %2609
        %2611 = vmax.xlane.f32.xlu0 %v2439
        %v2612 = vpop.xlane.xlu0 %2611
        %2613 = vmax.xlane.f32.xlu0 %v2440
        %v2614 = vpop.xlane.xlu0 %2613
        %2615 = vmax.xlane.f32.xlu0 %v2441
        %v2616 = vpop.xlane.xlu0 %2615
        %2617 = vmax.xlane.f32.xlu0 %v2442
        %v2618 = vpop.xlane.xlu0 %2617
        %2619 = vmax.xlane.f32.xlu0 %v2443
        %v2620 = vpop.xlane.xlu0 %2619
        %2621 = vmax.xlane.f32.xlu0 %v2444
        %v2622 = vpop.xlane.xlu0 %2621
        %2623 = vmax.xlane.f32.xlu0 %v2445
        %v2624 = vpop.xlane.xlu0 %2623
        %2625 = vmax.xlane.f32.xlu0 %v2446
        %v2626 = vpop.xlane.xlu0 %2625
        %2627 = vmax.xlane.f32.xlu0 %v2447
        %v2628 = vpop.xlane.xlu0 %2627
        %2629 = vmax.xlane.f32.xlu0 %v2448
        %v2630 = vpop.xlane.xlu0 %2629
        %2631 = vmax.xlane.f32.xlu0 %v2449
        %v2632 = vpop.xlane.xlu0 %2631
        %2633 = vmax.xlane.f32.xlu0 %v2450
        %v2634 = vpop.xlane.xlu0 %2633
        %2635 = vmax.xlane.f32.xlu0 %v2451
        %v2636 = vpop.xlane.xlu0 %2635
        %2637 = vmax.xlane.f32.xlu0 %v2452
        %v2638 = vpop.xlane.xlu0 %2637
        %2639 = vmax.xlane.f32.xlu0 %v2453
        %v2640 = vpop.xlane.xlu0 %2639
        %2641 = vmax.xlane.f32.xlu0 %v2454
        %v2642 = vpop.xlane.xlu0 %2641
        %2643 = vmax.xlane.f32.xlu0 %v2455
        %v2644 = vpop.xlane.xlu0 %2643
        %2645 = vmax.xlane.f32.xlu0 %v2456
        %v2646 = vpop.xlane.xlu0 %2645
        %2647 = vmax.xlane.f32.xlu0 %v2457
        %v2648 = vpop.xlane.xlu0 %2647
        %2649 = vmax.xlane.f32.xlu0 %v2458
        %v2650 = vpop.xlane.xlu0 %2649
        %2651 = vmax.xlane.f32.xlu0 %v2459
        %v2652 = vpop.xlane.xlu0 %2651
        %2653 = vmax.xlane.f32.xlu0 %v2460
        %v2654 = vpop.xlane.xlu0 %2653
        %2655 = vmax.xlane.f32.xlu0 %v2461
        %v2656 = vpop.xlane.xlu0 %2655
        %2657 = vmax.xlane.f32.xlu0 %v2462
        %v2658 = vpop.xlane.xlu0 %2657
        %2659 = vmax.xlane.f32.xlu0 %v2463
        %v2660 = vpop.xlane.xlu0 %2659
        %2661 = vmax.xlane.f32.xlu0 %v2464
        %v2662 = vpop.xlane.xlu0 %2661
        %2663 = vmax.xlane.f32.xlu0 %v2465
        %v2664 = vpop.xlane.xlu0 %2663
        %2665 = vmax.xlane.f32.xlu0 %v2466
        %v2666 = vpop.xlane.xlu0 %2665
        %2667 = vmax.xlane.f32.xlu0 %v2467
        %v2668 = vpop.xlane.xlu0 %2667
        %2669 = vmax.xlane.f32.xlu0 %v2468
        %v2670 = vpop.xlane.xlu0 %2669
        %2671 = vmax.xlane.f32.xlu0 %v2469
        %v2672 = vpop.xlane.xlu0 %2671
        %2673 = vmax.xlane.f32.xlu0 %v2470
        %v2674 = vpop.xlane.xlu0 %2673
        %2675 = vmax.xlane.f32.xlu0 %v2471
        %v2676 = vpop.xlane.xlu0 %2675
        %2677 = vmax.xlane.f32.xlu0 %v2472
        %v2678 = vpop.xlane.xlu0 %2677
        %2679 = vmax.xlane.f32.xlu0 %v2473
        %v2680 = vpop.xlane.xlu0 %2679
        %2681 = vmax.xlane.f32.xlu0 %v2474
        %v2682 = vpop.xlane.xlu0 %2681
        %2683 = vmax.xlane.f32.xlu0 %v2475
        %v2684 = vpop.xlane.xlu0 %2683
        %2685 = vmax.xlane.f32.xlu0 %v2476
        %v2686 = vpop.xlane.xlu0 %2685
        %2687 = vmax.xlane.f32.xlu0 %v2477
        %v2688 = vpop.xlane.xlu0 %2687
        %2689 = vmax.xlane.f32.xlu0 %v2478
        %v2690 = vpop.xlane.xlu0 %2689
        %2691 = vmax.xlane.f32.xlu0 %v2479
        %v2692 = vpop.xlane.xlu0 %2691
        %2693 = vmax.xlane.f32.xlu0 %v2480
        %v2694 = vpop.xlane.xlu0 %2693
        %2695 = vmax.xlane.f32.xlu0 %v2481
        %v2696 = vpop.xlane.xlu0 %2695
        %2697 = vmax.xlane.f32.xlu0 %v2482
        %v2698 = vpop.xlane.xlu0 %2697
        %2699 = vmax.xlane.f32.xlu0 %v2483
        %v2700 = vpop.xlane.xlu0 %2699
        %2701 = vmax.xlane.f32.xlu0 %v2484
        %v2702 = vpop.xlane.xlu0 %2701
        %2703 = vmax.xlane.f32.xlu0 %v2485
        %v2704 = vpop.xlane.xlu0 %2703
        %2705 = vmax.xlane.f32.xlu0 %v2486
        %v2706 = vpop.xlane.xlu0 %2705
        %2707 = vmax.xlane.f32.xlu0 %v2487
        %v2708 = vpop.xlane.xlu0 %2707
        %2709 = vmax.xlane.f32.xlu0 %v2488
        %v2710 = vpop.xlane.xlu0 %2709
        %2711 = vmax.xlane.f32.xlu0 %v2489
        %v2712 = vpop.xlane.xlu0 %2711
        %2713 = vmax.xlane.f32.xlu0 %v2490
        %v2714 = vpop.xlane.xlu0 %2713
        %2715 = vmax.xlane.f32.xlu0 %v2491
        %v2716 = vpop.xlane.xlu0 %2715
        %2717 = vmax.xlane.f32.xlu0 %v2492
        %v2718 = vpop.xlane.xlu0 %2717
        %2719 = vmax.xlane.f32.xlu0 %v2493
        %v2720 = vpop.xlane.xlu0 %2719
        %2721 = vmax.xlane.f32.xlu0 %v2494
        %v2722 = vpop.xlane.xlu0 %2721
        %2723 = vmax.xlane.f32.xlu0 %v2495
        %v2724 = vpop.xlane.xlu0 %2723
        %2725 = vmax.xlane.f32.xlu0 %v2496
        %v2726 = vpop.xlane.xlu0 %2725
        %2727 = vmax.xlane.f32.xlu0 %v2497
        %v2728 = vpop.xlane.xlu0 %2727
        %2729 = vmax.xlane.f32.xlu0 %v2498
        %v2730 = vpop.xlane.xlu0 %2729
        %2731 = vmax.xlane.f32.xlu0 %v2499
        %v2732 = vpop.xlane.xlu0 %2731
        %2733 = vmax.xlane.f32.xlu0 %v2500
        %v2734 = vpop.xlane.xlu0 %2733
        %2735 = vmax.xlane.f32.xlu0 %v2501
        %v2736 = vpop.xlane.xlu0 %2735
        %2737 = vmax.xlane.f32.xlu0 %v2502
        %v2738 = vpop.xlane.xlu0 %2737
        %2739 = vmax.xlane.f32.xlu0 %v2503
        %v2740 = vpop.xlane.xlu0 %2739
        %2741 = vmax.xlane.f32.xlu0 %v2504
        %v2742 = vpop.xlane.xlu0 %2741
        %2743 = vmax.xlane.f32.xlu0 %v2505
        %v2744 = vpop.xlane.xlu0 %2743
        %2745 = vmax.xlane.f32.xlu0 %v2506
        %v2746 = vpop.xlane.xlu0 %2745
        %2747 = vmax.xlane.f32.xlu0 %v2507
        %v2748 = vpop.xlane.xlu0 %2747
        %2749 = vmax.xlane.f32.xlu0 %v2508
        %v2750 = vpop.xlane.xlu0 %2749
        %2751 = vmax.xlane.f32.xlu0 %v2509
        %v2752 = vpop.xlane.xlu0 %2751
        %2753 = vmax.xlane.f32.xlu0 %v2510
        %v2754 = vpop.xlane.xlu0 %2753
        %2755 = vmax.xlane.f32.xlu0 %v2511
        %v2756 = vpop.xlane.xlu0 %2755
        %2757 = vmax.xlane.f32.xlu0 %v2512
        %v2758 = vpop.xlane.xlu0 %2757
        %2759 = vmax.xlane.f32.xlu0 %v2513
        %v2760 = vpop.xlane.xlu0 %2759
        %2761 = vmax.xlane.f32.xlu0 %v2514
        %v2762 = vpop.xlane.xlu0 %2761
        %2763 = vmax.xlane.f32.xlu0 %v2515
        %v2764 = vpop.xlane.xlu0 %2763
        %2765 = vmax.xlane.f32.xlu0 %v2516
        %v2766 = vpop.xlane.xlu0 %2765
        %2767 = vmax.xlane.f32.xlu0 %v2517
        %v2768 = vpop.xlane.xlu0 %2767
        %2769 = vmax.xlane.f32.xlu0 %v2518
        %v2770 = vpop.xlane.xlu0 %2769
        %2771 = vmax.xlane.f32.xlu0 %v2519
        %v2772 = vpop.xlane.xlu0 %2771
        %2773 = vmax.xlane.f32.xlu0 %v2520
        %v2774 = vpop.xlane.xlu0 %2773
        %2775 = vmax.xlane.f32.xlu0 %v2521
        %v2776 = vpop.xlane.xlu0 %2775
        %2777 = vmax.xlane.f32.xlu0 %v2522
        %v2778 = vpop.xlane.xlu0 %2777
        %vm2779 = vcmp.gt.f32.partialorder %v2524, 0.0
        %vm2780 = vcmp.gt.f32.partialorder %v2526, 0.0
        %vm2781 = vcmp.gt.f32.partialorder %v2528, 0.0
        %vm2782 = vcmp.gt.f32.partialorder %v2530, 0.0
        %vm2783 = vcmp.gt.f32.partialorder %v2532, 0.0
        %vm2784 = vcmp.gt.f32.partialorder %v2534, 0.0
        %vm2785 = vcmp.gt.f32.partialorder %v2536, 0.0
        %vm2786 = vcmp.gt.f32.partialorder %v2538, 0.0
        %vm2787 = vcmp.gt.f32.partialorder %v2540, 0.0
        %vm2788 = vcmp.gt.f32.partialorder %v2542, 0.0
        %vm2789 = vcmp.gt.f32.partialorder %v2544, 0.0
        %vm2790 = vcmp.gt.f32.partialorder %v2546, 0.0
        %vm2791 = vcmp.gt.f32.partialorder %v2548, 0.0
        %vm2792 = vcmp.gt.f32.partialorder %v2550, 0.0
        %vm2793 = vcmp.gt.f32.partialorder %v2552, 0.0
        %vm2794 = vcmp.gt.f32.partialorder %v2554, 0.0
        %vm2795 = vcmp.gt.f32.partialorder %v2556, 0.0
        %vm2796 = vcmp.gt.f32.partialorder %v2558, 0.0
        %vm2797 = vcmp.gt.f32.partialorder %v2560, 0.0
        %vm2798 = vcmp.gt.f32.partialorder %v2562, 0.0
        %vm2799 = vcmp.gt.f32.partialorder %v2564, 0.0
        %vm2800 = vcmp.gt.f32.partialorder %v2566, 0.0
        %vm2801 = vcmp.gt.f32.partialorder %v2568, 0.0
        %vm2802 = vcmp.gt.f32.partialorder %v2570, 0.0
        %vm2803 = vcmp.gt.f32.partialorder %v2572, 0.0
        %vm2804 = vcmp.gt.f32.partialorder %v2574, 0.0
        %vm2805 = vcmp.gt.f32.partialorder %v2576, 0.0
        %vm2806 = vcmp.gt.f32.partialorder %v2578, 0.0
        %vm2807 = vcmp.gt.f32.partialorder %v2580, 0.0
        %vm2808 = vcmp.gt.f32.partialorder %v2582, 0.0
        %vm2809 = vcmp.gt.f32.partialorder %v2584, 0.0
        %vm2810 = vcmp.gt.f32.partialorder %v2586, 0.0
        %vm2811 = vcmp.gt.f32.partialorder %v2588, 0.0
        %vm2812 = vcmp.gt.f32.partialorder %v2590, 0.0
        %vm2813 = vcmp.gt.f32.partialorder %v2592, 0.0
        %vm2814 = vcmp.gt.f32.partialorder %v2594, 0.0
        %vm2815 = vcmp.gt.f32.partialorder %v2596, 0.0
        %vm2816 = vcmp.gt.f32.partialorder %v2598, 0.0
        %vm2817 = vcmp.gt.f32.partialorder %v2600, 0.0
        %vm2818 = vcmp.gt.f32.partialorder %v2602, 0.0
        %vm2819 = vcmp.gt.f32.partialorder %v2604, 0.0
        %vm2820 = vcmp.gt.f32.partialorder %v2606, 0.0
        %vm2821 = vcmp.gt.f32.partialorder %v2608, 0.0
        %vm2822 = vcmp.gt.f32.partialorder %v2610, 0.0
        %vm2823 = vcmp.gt.f32.partialorder %v2612, 0.0
        %vm2824 = vcmp.gt.f32.partialorder %v2614, 0.0
        %vm2825 = vcmp.gt.f32.partialorder %v2616, 0.0
        %vm2826 = vcmp.gt.f32.partialorder %v2618, 0.0
        %vm2827 = vcmp.gt.f32.partialorder %v2620, 0.0
        %vm2828 = vcmp.gt.f32.partialorder %v2622, 0.0
        %vm2829 = vcmp.gt.f32.partialorder %v2624, 0.0
        %vm2830 = vcmp.gt.f32.partialorder %v2626, 0.0
        %vm2831 = vcmp.gt.f32.partialorder %v2628, 0.0
        %vm2832 = vcmp.gt.f32.partialorder %v2630, 0.0
        %vm2833 = vcmp.gt.f32.partialorder %v2632, 0.0
        %vm2834 = vcmp.gt.f32.partialorder %v2634, 0.0
        %vm2835 = vcmp.gt.f32.partialorder %v2636, 0.0
        %vm2836 = vcmp.gt.f32.partialorder %v2638, 0.0
        %vm2837 = vcmp.gt.f32.partialorder %v2640, 0.0
        %vm2838 = vcmp.gt.f32.partialorder %v2642, 0.0
        %vm2839 = vcmp.gt.f32.partialorder %v2644, 0.0
        %vm2840 = vcmp.gt.f32.partialorder %v2646, 0.0
        %vm2841 = vcmp.gt.f32.partialorder %v2648, 0.0
        %vm2842 = vcmp.gt.f32.partialorder %v2650, 0.0
        %vm2843 = vcmp.gt.f32.partialorder %v2652, 0.0
        %vm2844 = vcmp.gt.f32.partialorder %v2654, 0.0
        %vm2845 = vcmp.gt.f32.partialorder %v2656, 0.0
        %vm2846 = vcmp.gt.f32.partialorder %v2658, 0.0
        %vm2847 = vcmp.gt.f32.partialorder %v2660, 0.0
        %vm2848 = vcmp.gt.f32.partialorder %v2662, 0.0
        %vm2849 = vcmp.gt.f32.partialorder %v2664, 0.0
        %vm2850 = vcmp.gt.f32.partialorder %v2666, 0.0
        %vm2851 = vcmp.gt.f32.partialorder %v2668, 0.0
        %vm2852 = vcmp.gt.f32.partialorder %v2670, 0.0
        %vm2853 = vcmp.gt.f32.partialorder %v2672, 0.0
        %vm2854 = vcmp.gt.f32.partialorder %v2674, 0.0
        %vm2855 = vcmp.gt.f32.partialorder %v2676, 0.0
        %vm2856 = vcmp.gt.f32.partialorder %v2678, 0.0
        %vm2857 = vcmp.gt.f32.partialorder %v2680, 0.0
        %vm2858 = vcmp.gt.f32.partialorder %v2682, 0.0
        %vm2859 = vcmp.gt.f32.partialorder %v2684, 0.0
        %vm2860 = vcmp.gt.f32.partialorder %v2686, 0.0
        %vm2861 = vcmp.gt.f32.partialorder %v2688, 0.0
        %vm2862 = vcmp.gt.f32.partialorder %v2690, 0.0
        %vm2863 = vcmp.gt.f32.partialorder %v2692, 0.0
        %vm2864 = vcmp.gt.f32.partialorder %v2694, 0.0
        %vm2865 = vcmp.gt.f32.partialorder %v2696, 0.0
        %vm2866 = vcmp.gt.f32.partialorder %v2698, 0.0
        %vm2867 = vcmp.gt.f32.partialorder %v2700, 0.0
        %vm2868 = vcmp.gt.f32.partialorder %v2702, 0.0
        %vm2869 = vcmp.gt.f32.partialorder %v2704, 0.0
        %vm2870 = vcmp.gt.f32.partialorder %v2706, 0.0
        %vm2871 = vcmp.gt.f32.partialorder %v2708, 0.0
        %vm2872 = vcmp.gt.f32.partialorder %v2710, 0.0
        %vm2873 = vcmp.gt.f32.partialorder %v2712, 0.0
        %vm2874 = vcmp.gt.f32.partialorder %v2714, 0.0
        %vm2875 = vcmp.gt.f32.partialorder %v2716, 0.0
        %vm2876 = vcmp.gt.f32.partialorder %v2718, 0.0
        %vm2877 = vcmp.gt.f32.partialorder %v2720, 0.0
        %vm2878 = vcmp.gt.f32.partialorder %v2722, 0.0
        %vm2879 = vcmp.gt.f32.partialorder %v2724, 0.0
        %vm2880 = vcmp.gt.f32.partialorder %v2726, 0.0
        %vm2881 = vcmp.gt.f32.partialorder %v2728, 0.0
        %vm2882 = vcmp.gt.f32.partialorder %v2730, 0.0
        %vm2883 = vcmp.gt.f32.partialorder %v2732, 0.0
        %vm2884 = vcmp.gt.f32.partialorder %v2734, 0.0
        %vm2885 = vcmp.gt.f32.partialorder %v2736, 0.0
        %vm2886 = vcmp.gt.f32.partialorder %v2738, 0.0
        %vm2887 = vcmp.gt.f32.partialorder %v2740, 0.0
        %vm2888 = vcmp.gt.f32.partialorder %v2742, 0.0
        %vm2889 = vcmp.gt.f32.partialorder %v2744, 0.0
        %vm2890 = vcmp.gt.f32.partialorder %v2746, 0.0
        %vm2891 = vcmp.gt.f32.partialorder %v2748, 0.0
        %vm2892 = vcmp.gt.f32.partialorder %v2750, 0.0
        %vm2893 = vcmp.gt.f32.partialorder %v2752, 0.0
        %vm2894 = vcmp.gt.f32.partialorder %v2754, 0.0
        %vm2895 = vcmp.gt.f32.partialorder %v2756, 0.0
        %vm2896 = vcmp.gt.f32.partialorder %v2758, 0.0
        %vm2897 = vcmp.gt.f32.partialorder %v2760, 0.0
        %vm2898 = vcmp.gt.f32.partialorder %v2762, 0.0
        %vm2899 = vcmp.gt.f32.partialorder %v2764, 0.0
        %vm2900 = vcmp.gt.f32.partialorder %v2766, 0.0
        %vm2901 = vcmp.gt.f32.partialorder %v2768, 0.0
        %vm2902 = vcmp.gt.f32.partialorder %v2770, 0.0
        %vm2903 = vcmp.gt.f32.partialorder %v2772, 0.0
        %vm2904 = vcmp.gt.f32.partialorder %v2774, 0.0
        %vm2905 = vcmp.gt.f32.partialorder %v2776, 0.0
        %vm2906 = vcmp.gt.f32.partialorder %v2778, 0.0
        %vm2907 = vcmp.eq.s32.totalorder %v775, %v1357
        %vm2908 = vcmp.eq.s32.totalorder %v779, %v1357
        %vm2909 = vcmp.eq.s32.totalorder %v783, %v1357
        %vm2910 = vcmp.eq.s32.totalorder %v787, %v1357
        %vm2911 = vcmp.eq.s32.totalorder %v791, %v1357
        %vm2912 = vcmp.eq.s32.totalorder %v795, %v1357
        %vm2913 = vcmp.eq.s32.totalorder %v799, %v1357
        %vm2914 = vcmp.eq.s32.totalorder %v803, %v1357
        %vm2915 = vcmp.eq.s32.totalorder %v807, %v1357
        %vm2916 = vcmp.eq.s32.totalorder %v811, %v1357
        %vm2917 = vcmp.eq.s32.totalorder %v815, %v1357
        %vm2918 = vcmp.eq.s32.totalorder %v819, %v1357
        %vm2919 = vcmp.eq.s32.totalorder %v823, %v1357
        %vm2920 = vcmp.eq.s32.totalorder %v827, %v1357
        %vm2921 = vcmp.eq.s32.totalorder %v831, %v1357
        %vm2922 = vcmp.eq.s32.totalorder %v835, %v1357
        %vm2923 = vcmp.eq.s32.totalorder %v842, %v1361
        %vm2924 = vcmp.eq.s32.totalorder %v846, %v1361
        %vm2925 = vcmp.eq.s32.totalorder %v850, %v1361
        %vm2926 = vcmp.eq.s32.totalorder %v854, %v1361
        %vm2927 = vcmp.eq.s32.totalorder %v858, %v1361
        %vm2928 = vcmp.eq.s32.totalorder %v862, %v1361
        %vm2929 = vcmp.eq.s32.totalorder %v866, %v1361
        %vm2930 = vcmp.eq.s32.totalorder %v870, %v1361
        %vm2931 = vcmp.eq.s32.totalorder %v874, %v1361
        %vm2932 = vcmp.eq.s32.totalorder %v878, %v1361
        %vm2933 = vcmp.eq.s32.totalorder %v882, %v1361
        %vm2934 = vcmp.eq.s32.totalorder %v886, %v1361
        %vm2935 = vcmp.eq.s32.totalorder %v890, %v1361
        %vm2936 = vcmp.eq.s32.totalorder %v894, %v1361
        %vm2937 = vcmp.eq.s32.totalorder %v898, %v1361
        %vm2938 = vcmp.eq.s32.totalorder %v902, %v1361
        %vm2939 = vcmp.eq.s32.totalorder %v909, %v1365
        %vm2940 = vcmp.eq.s32.totalorder %v913, %v1365
        %vm2941 = vcmp.eq.s32.totalorder %v917, %v1365
        %vm2942 = vcmp.eq.s32.totalorder %v921, %v1365
        %vm2943 = vcmp.eq.s32.totalorder %v925, %v1365
        %vm2944 = vcmp.eq.s32.totalorder %v929, %v1365
        %vm2945 = vcmp.eq.s32.totalorder %v933, %v1365
        %vm2946 = vcmp.eq.s32.totalorder %v937, %v1365
        %vm2947 = vcmp.eq.s32.totalorder %v941, %v1365
        %vm2948 = vcmp.eq.s32.totalorder %v945, %v1365
        %vm2949 = vcmp.eq.s32.totalorder %v949, %v1365
        %vm2950 = vcmp.eq.s32.totalorder %v953, %v1365
        %vm2951 = vcmp.eq.s32.totalorder %v957, %v1365
        %vm2952 = vcmp.eq.s32.totalorder %v961, %v1365
        %vm2953 = vcmp.eq.s32.totalorder %v965, %v1365
        %vm2954 = vcmp.eq.s32.totalorder %v969, %v1365
        %vm2955 = vcmp.eq.s32.totalorder %v976, %v1369
        %vm2956 = vcmp.eq.s32.totalorder %v980, %v1369
        %vm2957 = vcmp.eq.s32.totalorder %v984, %v1369
        %vm2958 = vcmp.eq.s32.totalorder %v988, %v1369
        %vm2959 = vcmp.eq.s32.totalorder %v992, %v1369
        %vm2960 = vcmp.eq.s32.totalorder %v996, %v1369
        %vm2961 = vcmp.eq.s32.totalorder %v1000, %v1369
        %vm2962 = vcmp.eq.s32.totalorder %v1004, %v1369
        %vm2963 = vcmp.eq.s32.totalorder %v1008, %v1369
        %vm2964 = vcmp.eq.s32.totalorder %v1012, %v1369
        %vm2965 = vcmp.eq.s32.totalorder %v1016, %v1369
        %vm2966 = vcmp.eq.s32.totalorder %v1020, %v1369
        %vm2967 = vcmp.eq.s32.totalorder %v1024, %v1369
        %vm2968 = vcmp.eq.s32.totalorder %v1028, %v1369
        %vm2969 = vcmp.eq.s32.totalorder %v1032, %v1369
        %vm2970 = vcmp.eq.s32.totalorder %v1036, %v1369
        %vm2971 = vcmp.eq.s32.totalorder %v1043, %v1373
        %vm2972 = vcmp.eq.s32.totalorder %v1047, %v1373
        %vm2973 = vcmp.eq.s32.totalorder %v1051, %v1373
        %vm2974 = vcmp.eq.s32.totalorder %v1055, %v1373
        %vm2975 = vcmp.eq.s32.totalorder %v1059, %v1373
        %vm2976 = vcmp.eq.s32.totalorder %v1063, %v1373
        %vm2977 = vcmp.eq.s32.totalorder %v1067, %v1373
        %vm2978 = vcmp.eq.s32.totalorder %v1071, %v1373
        %vm2979 = vcmp.eq.s32.totalorder %v1075, %v1373
        %vm2980 = vcmp.eq.s32.totalorder %v1079, %v1373
        %vm2981 = vcmp.eq.s32.totalorder %v1083, %v1373
        %vm2982 = vcmp.eq.s32.totalorder %v1087, %v1373
        %vm2983 = vcmp.eq.s32.totalorder %v1091, %v1373
        %vm2984 = vcmp.eq.s32.totalorder %v1095, %v1373
        %vm2985 = vcmp.eq.s32.totalorder %v1099, %v1373
        %vm2986 = vcmp.eq.s32.totalorder %v1103, %v1373
        %vm2987 = vcmp.eq.s32.totalorder %v1110, %v1377
        %vm2988 = vcmp.eq.s32.totalorder %v1114, %v1377
        %vm2989 = vcmp.eq.s32.totalorder %v1118, %v1377
        %vm2990 = vcmp.eq.s32.totalorder %v1122, %v1377
        %vm2991 = vcmp.eq.s32.totalorder %v1126, %v1377
        %vm2992 = vcmp.eq.s32.totalorder %v1130, %v1377
        %vm2993 = vcmp.eq.s32.totalorder %v1134, %v1377
        %vm2994 = vcmp.eq.s32.totalorder %v1138, %v1377
        %vm2995 = vcmp.eq.s32.totalorder %v1142, %v1377
        %vm2996 = vcmp.eq.s32.totalorder %v1146, %v1377
        %vm2997 = vcmp.eq.s32.totalorder %v1150, %v1377
        %vm2998 = vcmp.eq.s32.totalorder %v1154, %v1377
        %vm2999 = vcmp.eq.s32.totalorder %v1158, %v1377
        %vm3000 = vcmp.eq.s32.totalorder %v1162, %v1377
        %vm3001 = vcmp.eq.s32.totalorder %v1166, %v1377
        %vm3002 = vcmp.eq.s32.totalorder %v1170, %v1377
        %vm3003 = vcmp.eq.s32.totalorder %v1177, %v1381
        %vm3004 = vcmp.eq.s32.totalorder %v1181, %v1381
        %vm3005 = vcmp.eq.s32.totalorder %v1185, %v1381
        %vm3006 = vcmp.eq.s32.totalorder %v1189, %v1381
        %vm3007 = vcmp.eq.s32.totalorder %v1193, %v1381
        %vm3008 = vcmp.eq.s32.totalorder %v1197, %v1381
        %vm3009 = vcmp.eq.s32.totalorder %v1201, %v1381
        %vm3010 = vcmp.eq.s32.totalorder %v1205, %v1381
        %vm3011 = vcmp.eq.s32.totalorder %v1209, %v1381
        %vm3012 = vcmp.eq.s32.totalorder %v1213, %v1381
        %vm3013 = vcmp.eq.s32.totalorder %v1217, %v1381
        %vm3014 = vcmp.eq.s32.totalorder %v1221, %v1381
        %vm3015 = vcmp.eq.s32.totalorder %v1225, %v1381
        %vm3016 = vcmp.eq.s32.totalorder %v1229, %v1381
        %vm3017 = vcmp.eq.s32.totalorder %v1233, %v1381
        %vm3018 = vcmp.eq.s32.totalorder %v1237, %v1381
        %vm3019 = vcmp.eq.s32.totalorder %v1244, %v1385
        %vm3020 = vcmp.eq.s32.totalorder %v1248, %v1385
        %vm3021 = vcmp.eq.s32.totalorder %v1252, %v1385
        %vm3022 = vcmp.eq.s32.totalorder %v1256, %v1385
        %vm3023 = vcmp.eq.s32.totalorder %v1260, %v1385
        %vm3024 = vcmp.eq.s32.totalorder %v1264, %v1385
        %vm3025 = vcmp.eq.s32.totalorder %v1268, %v1385
        %vm3026 = vcmp.eq.s32.totalorder %v1272, %v1385
        %vm3027 = vcmp.eq.s32.totalorder %v1276, %v1385
        %vm3028 = vcmp.eq.s32.totalorder %v1280, %v1385
        %vm3029 = vcmp.eq.s32.totalorder %v1284, %v1385
        %vm3030 = vcmp.eq.s32.totalorder %v1288, %v1385
        %vm3031 = vcmp.eq.s32.totalorder %v1292, %v1385
        %vm3032 = vcmp.eq.s32.totalorder %v1296, %v1385
        %vm3033 = vcmp.eq.s32.totalorder %v1300, %v1385
        %vm3034 = vcmp.eq.s32.totalorder %v1304, %v1385
        %vm3035 = vmand %vm2907, %vm2251
        %vm3036 = vmand %vm2908, %vm2252
        %vm3037 = vmand %vm2909, %vm2253
        %vm3038 = vmand %vm2910, %vm2254
        %vm3039 = vmand %vm2911, %vm2255
        %vm3040 = vmand %vm2912, %vm2256
        %vm3041 = vmand %vm2913, %vm2257
        %vm3042 = vmand %vm2914, %vm2258
        %vm3043 = vmand %vm2915, %vm2259
        %vm3044 = vmand %vm2916, %vm2260
        %vm3045 = vmand %vm2917, %vm2261
        %vm3046 = vmand %vm2918, %vm2262
        %vm3047 = vmand %vm2919, %vm2263
        %vm3048 = vmand %vm2920, %vm2264
        %vm3049 = vmand %vm2921, %vm2265
        %vm3050 = vmand %vm2922, %vm2266
        %vm3051 = vmand %vm2923, %vm2251
        %vm3052 = vmand %vm2924, %vm2252
        %vm3053 = vmand %vm2925, %vm2253
        %vm3054 = vmand %vm2926, %vm2254
        %vm3055 = vmand %vm2927, %vm2255
        %vm3056 = vmand %vm2928, %vm2256
        %vm3057 = vmand %vm2929, %vm2257
        %vm3058 = vmand %vm2930, %vm2258
        %vm3059 = vmand %vm2931, %vm2259
        %vm3060 = vmand %vm2932, %vm2260
        %vm3061 = vmand %vm2933, %vm2261
        %vm3062 = vmand %vm2934, %vm2262
        %vm3063 = vmand %vm2935, %vm2263
        %vm3064 = vmand %vm2936, %vm2264
        %vm3065 = vmand %vm2937, %vm2265
        %vm3066 = vmand %vm2938, %vm2266
        %vm3067 = vmand %vm2939, %vm2251
        %vm3068 = vmand %vm2940, %vm2252
        %vm3069 = vmand %vm2941, %vm2253
        %vm3070 = vmand %vm2942, %vm2254
        %vm3071 = vmand %vm2943, %vm2255
        %vm3072 = vmand %vm2944, %vm2256
        %vm3073 = vmand %vm2945, %vm2257
        %vm3074 = vmand %vm2946, %vm2258
        %vm3075 = vmand %vm2947, %vm2259
        %vm3076 = vmand %vm2948, %vm2260
        %vm3077 = vmand %vm2949, %vm2261
        %vm3078 = vmand %vm2950, %vm2262
        %vm3079 = vmand %vm2951, %vm2263
        %vm3080 = vmand %vm2952, %vm2264
        %vm3081 = vmand %vm2953, %vm2265
        %vm3082 = vmand %vm2954, %vm2266
        %vm3083 = vmand %vm2955, %vm2251
        %vm3084 = vmand %vm2956, %vm2252
        %vm3085 = vmand %vm2957, %vm2253
        %vm3086 = vmand %vm2958, %vm2254
        %vm3087 = vmand %vm2959, %vm2255
        %vm3088 = vmand %vm2960, %vm2256
        %vm3089 = vmand %vm2961, %vm2257
        %vm3090 = vmand %vm2962, %vm2258
        %vm3091 = vmand %vm2963, %vm2259
        %vm3092 = vmand %vm2964, %vm2260
        %vm3093 = vmand %vm2965, %vm2261
        %vm3094 = vmand %vm2966, %vm2262
        %vm3095 = vmand %vm2967, %vm2263
        %vm3096 = vmand %vm2968, %vm2264
        %vm3097 = vmand %vm2969, %vm2265
        %vm3098 = vmand %vm2970, %vm2266
        %vm3099 = vmand %vm2971, %vm2251
        %vm3100 = vmand %vm2972, %vm2252
        %vm3101 = vmand %vm2973, %vm2253
        %vm3102 = vmand %vm2974, %vm2254
        %vm3103 = vmand %vm2975, %vm2255
        %vm3104 = vmand %vm2976, %vm2256
        %vm3105 = vmand %vm2977, %vm2257
        %vm3106 = vmand %vm2978, %vm2258
        %vm3107 = vmand %vm2979, %vm2259
        %vm3108 = vmand %vm2980, %vm2260
        %vm3109 = vmand %vm2981, %vm2261
        %vm3110 = vmand %vm2982, %vm2262
        %vm3111 = vmand %vm2983, %vm2263
        %vm3112 = vmand %vm2984, %vm2264
        %vm3113 = vmand %vm2985, %vm2265
        %vm3114 = vmand %vm2986, %vm2266
        %vm3115 = vmand %vm2987, %vm2251
        %vm3116 = vmand %vm2988, %vm2252
        %vm3117 = vmand %vm2989, %vm2253
        %vm3118 = vmand %vm2990, %vm2254
        %vm3119 = vmand %vm2991, %vm2255
        %vm3120 = vmand %vm2992, %vm2256
        %vm3121 = vmand %vm2993, %vm2257
        %vm3122 = vmand %vm2994, %vm2258
        %vm3123 = vmand %vm2995, %vm2259
        %vm3124 = vmand %vm2996, %vm2260
        %vm3125 = vmand %vm2997, %vm2261
        %vm3126 = vmand %vm2998, %vm2262
        %vm3127 = vmand %vm2999, %vm2263
        %vm3128 = vmand %vm3000, %vm2264
        %vm3129 = vmand %vm3001, %vm2265
        %vm3130 = vmand %vm3002, %vm2266
        %vm3131 = vmand %vm3003, %vm2251
        %vm3132 = vmand %vm3004, %vm2252
        %vm3133 = vmand %vm3005, %vm2253
        %vm3134 = vmand %vm3006, %vm2254
        %vm3135 = vmand %vm3007, %vm2255
        %vm3136 = vmand %vm3008, %vm2256
        %vm3137 = vmand %vm3009, %vm2257
        %vm3138 = vmand %vm3010, %vm2258
        %vm3139 = vmand %vm3011, %vm2259
        %vm3140 = vmand %vm3012, %vm2260
        %vm3141 = vmand %vm3013, %vm2261
        %vm3142 = vmand %vm3014, %vm2262
        %vm3143 = vmand %vm3015, %vm2263
        %vm3144 = vmand %vm3016, %vm2264
        %vm3145 = vmand %vm3017, %vm2265
        %vm3146 = vmand %vm3018, %vm2266
        %vm3147 = vmand %vm3019, %vm2251
        %vm3148 = vmand %vm3020, %vm2252
        %vm3149 = vmand %vm3021, %vm2253
        %vm3150 = vmand %vm3022, %vm2254
        %vm3151 = vmand %vm3023, %vm2255
        %vm3152 = vmand %vm3024, %vm2256
        %vm3153 = vmand %vm3025, %vm2257
        %vm3154 = vmand %vm3026, %vm2258
        %vm3155 = vmand %vm3027, %vm2259
        %vm3156 = vmand %vm3028, %vm2260
        %vm3157 = vmand %vm3029, %vm2261
        %vm3158 = vmand %vm3030, %vm2262
        %vm3159 = vmand %vm3031, %vm2263
        %vm3160 = vmand %vm3032, %vm2264
        %vm3161 = vmand %vm3033, %vm2265
        %vm3162 = vmand %vm3034, %vm2266
        %v3163 = vsel %vm3035, 1.0, 0.0
        %v3164 = vsel %vm3036, 1.0, 0.0
        %v3165 = vsel %vm3037, 1.0, 0.0
        %v3166 = vsel %vm3038, 1.0, 0.0
        %v3167 = vsel %vm3039, 1.0, 0.0
        %v3168 = vsel %vm3040, 1.0, 0.0
        %v3169 = vsel %vm3041, 1.0, 0.0
        %v3170 = vsel %vm3042, 1.0, 0.0
        %v3171 = vsel %vm3043, 1.0, 0.0
        %v3172 = vsel %vm3044, 1.0, 0.0
        %v3173 = vsel %vm3045, 1.0, 0.0
        %v3174 = vsel %vm3046, 1.0, 0.0
        %v3175 = vsel %vm3047, 1.0, 0.0
        %v3176 = vsel %vm3048, 1.0, 0.0
        %v3177 = vsel %vm3049, 1.0, 0.0
        %v3178 = vsel %vm3050, 1.0, 0.0
        %v3179 = vsel %vm3051, 1.0, 0.0
        %v3180 = vsel %vm3052, 1.0, 0.0
        %v3181 = vsel %vm3053, 1.0, 0.0
        %v3182 = vsel %vm3054, 1.0, 0.0
        %v3183 = vsel %vm3055, 1.0, 0.0
        %v3184 = vsel %vm3056, 1.0, 0.0
        %v3185 = vsel %vm3057, 1.0, 0.0
        %v3186 = vsel %vm3058, 1.0, 0.0
        %v3187 = vsel %vm3059, 1.0, 0.0
        %v3188 = vsel %vm3060, 1.0, 0.0
        %v3189 = vsel %vm3061, 1.0, 0.0
        %v3190 = vsel %vm3062, 1.0, 0.0
        %v3191 = vsel %vm3063, 1.0, 0.0
        %v3192 = vsel %vm3064, 1.0, 0.0
        %v3193 = vsel %vm3065, 1.0, 0.0
        %v3194 = vsel %vm3066, 1.0, 0.0
        %v3195 = vsel %vm3067, 1.0, 0.0
        %v3196 = vsel %vm3068, 1.0, 0.0
        %v3197 = vsel %vm3069, 1.0, 0.0
        %v3198 = vsel %vm3070, 1.0, 0.0
        %v3199 = vsel %vm3071, 1.0, 0.0
        %v3200 = vsel %vm3072, 1.0, 0.0
        %v3201 = vsel %vm3073, 1.0, 0.0
        %v3202 = vsel %vm3074, 1.0, 0.0
        %v3203 = vsel %vm3075, 1.0, 0.0
        %v3204 = vsel %vm3076, 1.0, 0.0
        %v3205 = vsel %vm3077, 1.0, 0.0
        %v3206 = vsel %vm3078, 1.0, 0.0
        %v3207 = vsel %vm3079, 1.0, 0.0
        %v3208 = vsel %vm3080, 1.0, 0.0
        %v3209 = vsel %vm3081, 1.0, 0.0
        %v3210 = vsel %vm3082, 1.0, 0.0
        %v3211 = vsel %vm3083, 1.0, 0.0
        %v3212 = vsel %vm3084, 1.0, 0.0
        %v3213 = vsel %vm3085, 1.0, 0.0
        %v3214 = vsel %vm3086, 1.0, 0.0
        %v3215 = vsel %vm3087, 1.0, 0.0
        %v3216 = vsel %vm3088, 1.0, 0.0
        %v3217 = vsel %vm3089, 1.0, 0.0
        %v3218 = vsel %vm3090, 1.0, 0.0
        %v3219 = vsel %vm3091, 1.0, 0.0
        %v3220 = vsel %vm3092, 1.0, 0.0
        %v3221 = vsel %vm3093, 1.0, 0.0
        %v3222 = vsel %vm3094, 1.0, 0.0
        %v3223 = vsel %vm3095, 1.0, 0.0
        %v3224 = vsel %vm3096, 1.0, 0.0
        %v3225 = vsel %vm3097, 1.0, 0.0
        %v3226 = vsel %vm3098, 1.0, 0.0
        %v3227 = vsel %vm3099, 1.0, 0.0
        %v3228 = vsel %vm3100, 1.0, 0.0
        %v3229 = vsel %vm3101, 1.0, 0.0
        %v3230 = vsel %vm3102, 1.0, 0.0
        %v3231 = vsel %vm3103, 1.0, 0.0
        %v3232 = vsel %vm3104, 1.0, 0.0
        %v3233 = vsel %vm3105, 1.0, 0.0
        %v3234 = vsel %vm3106, 1.0, 0.0
        %v3235 = vsel %vm3107, 1.0, 0.0
        %v3236 = vsel %vm3108, 1.0, 0.0
        %v3237 = vsel %vm3109, 1.0, 0.0
        %v3238 = vsel %vm3110, 1.0, 0.0
        %v3239 = vsel %vm3111, 1.0, 0.0
        %v3240 = vsel %vm3112, 1.0, 0.0
        %v3241 = vsel %vm3113, 1.0, 0.0
        %v3242 = vsel %vm3114, 1.0, 0.0
        %v3243 = vsel %vm3115, 1.0, 0.0
        %v3244 = vsel %vm3116, 1.0, 0.0
        %v3245 = vsel %vm3117, 1.0, 0.0
        %v3246 = vsel %vm3118, 1.0, 0.0
        %v3247 = vsel %vm3119, 1.0, 0.0
        %v3248 = vsel %vm3120, 1.0, 0.0
        %v3249 = vsel %vm3121, 1.0, 0.0
        %v3250 = vsel %vm3122, 1.0, 0.0
        %v3251 = vsel %vm3123, 1.0, 0.0
        %v3252 = vsel %vm3124, 1.0, 0.0
        %v3253 = vsel %vm3125, 1.0, 0.0
        %v3254 = vsel %vm3126, 1.0, 0.0
        %v3255 = vsel %vm3127, 1.0, 0.0
        %v3256 = vsel %vm3128, 1.0, 0.0
        %v3257 = vsel %vm3129, 1.0, 0.0
        %v3258 = vsel %vm3130, 1.0, 0.0
        %v3259 = vsel %vm3131, 1.0, 0.0
        %v3260 = vsel %vm3132, 1.0, 0.0
        %v3261 = vsel %vm3133, 1.0, 0.0
        %v3262 = vsel %vm3134, 1.0, 0.0
        %v3263 = vsel %vm3135, 1.0, 0.0
        %v3264 = vsel %vm3136, 1.0, 0.0
        %v3265 = vsel %vm3137, 1.0, 0.0
        %v3266 = vsel %vm3138, 1.0, 0.0
        %v3267 = vsel %vm3139, 1.0, 0.0
        %v3268 = vsel %vm3140, 1.0, 0.0
        %v3269 = vsel %vm3141, 1.0, 0.0
        %v3270 = vsel %vm3142, 1.0, 0.0
        %v3271 = vsel %vm3143, 1.0, 0.0
        %v3272 = vsel %vm3144, 1.0, 0.0
        %v3273 = vsel %vm3145, 1.0, 0.0
        %v3274 = vsel %vm3146, 1.0, 0.0
        %v3275 = vsel %vm3147, 1.0, 0.0
        %v3276 = vsel %vm3148, 1.0, 0.0
        %v3277 = vsel %vm3149, 1.0, 0.0
        %v3278 = vsel %vm3150, 1.0, 0.0
        %v3279 = vsel %vm3151, 1.0, 0.0
        %v3280 = vsel %vm3152, 1.0, 0.0
        %v3281 = vsel %vm3153, 1.0, 0.0
        %v3282 = vsel %vm3154, 1.0, 0.0
        %v3283 = vsel %vm3155, 1.0, 0.0
        %v3284 = vsel %vm3156, 1.0, 0.0
        %v3285 = vsel %vm3157, 1.0, 0.0
        %v3286 = vsel %vm3158, 1.0, 0.0
        %v3287 = vsel %vm3159, 1.0, 0.0
        %v3288 = vsel %vm3160, 1.0, 0.0
        %v3289 = vsel %vm3161, 1.0, 0.0
        %v3290 = vsel %vm3162, 1.0, 0.0
        %3291 = vmax.xlane.f32.xlu0 %v3163
        %v3292 = vpop.xlane.xlu0 %3291
        %3293 = vmax.xlane.f32.xlu0 %v3164
        %v3294 = vpop.xlane.xlu0 %3293
        %3295 = vmax.xlane.f32.xlu0 %v3165
        %v3296 = vpop.xlane.xlu0 %3295
        %3297 = vmax.xlane.f32.xlu0 %v3166
        %v3298 = vpop.xlane.xlu0 %3297
        %3299 = vmax.xlane.f32.xlu0 %v3167
        %v3300 = vpop.xlane.xlu0 %3299
        %3301 = vmax.xlane.f32.xlu0 %v3168
        %v3302 = vpop.xlane.xlu0 %3301
        %3303 = vmax.xlane.f32.xlu0 %v3169
        %v3304 = vpop.xlane.xlu0 %3303
        %3305 = vmax.xlane.f32.xlu0 %v3170
        %v3306 = vpop.xlane.xlu0 %3305
        %3307 = vmax.xlane.f32.xlu0 %v3171
        %v3308 = vpop.xlane.xlu0 %3307
        %3309 = vmax.xlane.f32.xlu0 %v3172
        %v3310 = vpop.xlane.xlu0 %3309
        %3311 = vmax.xlane.f32.xlu0 %v3173
        %v3312 = vpop.xlane.xlu0 %3311
        %3313 = vmax.xlane.f32.xlu0 %v3174
        %v3314 = vpop.xlane.xlu0 %3313
        %3315 = vmax.xlane.f32.xlu0 %v3175
        %v3316 = vpop.xlane.xlu0 %3315
        %3317 = vmax.xlane.f32.xlu0 %v3176
        %v3318 = vpop.xlane.xlu0 %3317
        %3319 = vmax.xlane.f32.xlu0 %v3177
        %v3320 = vpop.xlane.xlu0 %3319
        %3321 = vmax.xlane.f32.xlu0 %v3178
        %v3322 = vpop.xlane.xlu0 %3321
        %3323 = vmax.xlane.f32.xlu0 %v3179
        %v3324 = vpop.xlane.xlu0 %3323
        %3325 = vmax.xlane.f32.xlu0 %v3180
        %v3326 = vpop.xlane.xlu0 %3325
        %3327 = vmax.xlane.f32.xlu0 %v3181
        %v3328 = vpop.xlane.xlu0 %3327
        %3329 = vmax.xlane.f32.xlu0 %v3182
        %v3330 = vpop.xlane.xlu0 %3329
        %3331 = vmax.xlane.f32.xlu0 %v3183
        %v3332 = vpop.xlane.xlu0 %3331
        %3333 = vmax.xlane.f32.xlu0 %v3184
        %v3334 = vpop.xlane.xlu0 %3333
        %3335 = vmax.xlane.f32.xlu0 %v3185
        %v3336 = vpop.xlane.xlu0 %3335
        %3337 = vmax.xlane.f32.xlu0 %v3186
        %v3338 = vpop.xlane.xlu0 %3337
        %3339 = vmax.xlane.f32.xlu0 %v3187
        %v3340 = vpop.xlane.xlu0 %3339
        %3341 = vmax.xlane.f32.xlu0 %v3188
        %v3342 = vpop.xlane.xlu0 %3341
        %3343 = vmax.xlane.f32.xlu0 %v3189
        %v3344 = vpop.xlane.xlu0 %3343
        %3345 = vmax.xlane.f32.xlu0 %v3190
        %v3346 = vpop.xlane.xlu0 %3345
        %3347 = vmax.xlane.f32.xlu0 %v3191
        %v3348 = vpop.xlane.xlu0 %3347
        %3349 = vmax.xlane.f32.xlu0 %v3192
        %v3350 = vpop.xlane.xlu0 %3349
        %3351 = vmax.xlane.f32.xlu0 %v3193
        %v3352 = vpop.xlane.xlu0 %3351
        %3353 = vmax.xlane.f32.xlu0 %v3194
        %v3354 = vpop.xlane.xlu0 %3353
        %3355 = vmax.xlane.f32.xlu0 %v3195
        %v3356 = vpop.xlane.xlu0 %3355
        %3357 = vmax.xlane.f32.xlu0 %v3196
        %v3358 = vpop.xlane.xlu0 %3357
        %3359 = vmax.xlane.f32.xlu0 %v3197
        %v3360 = vpop.xlane.xlu0 %3359
        %3361 = vmax.xlane.f32.xlu0 %v3198
        %v3362 = vpop.xlane.xlu0 %3361
        %3363 = vmax.xlane.f32.xlu0 %v3199
        %v3364 = vpop.xlane.xlu0 %3363
        %3365 = vmax.xlane.f32.xlu0 %v3200
        %v3366 = vpop.xlane.xlu0 %3365
        %3367 = vmax.xlane.f32.xlu0 %v3201
        %v3368 = vpop.xlane.xlu0 %3367
        %3369 = vmax.xlane.f32.xlu0 %v3202
        %v3370 = vpop.xlane.xlu0 %3369
        %3371 = vmax.xlane.f32.xlu0 %v3203
        %v3372 = vpop.xlane.xlu0 %3371
        %3373 = vmax.xlane.f32.xlu0 %v3204
        %v3374 = vpop.xlane.xlu0 %3373
        %3375 = vmax.xlane.f32.xlu0 %v3205
        %v3376 = vpop.xlane.xlu0 %3375
        %3377 = vmax.xlane.f32.xlu0 %v3206
        %v3378 = vpop.xlane.xlu0 %3377
        %3379 = vmax.xlane.f32.xlu0 %v3207
        %v3380 = vpop.xlane.xlu0 %3379
        %3381 = vmax.xlane.f32.xlu0 %v3208
        %v3382 = vpop.xlane.xlu0 %3381
        %3383 = vmax.xlane.f32.xlu0 %v3209
        %v3384 = vpop.xlane.xlu0 %3383
        %3385 = vmax.xlane.f32.xlu0 %v3210
        %v3386 = vpop.xlane.xlu0 %3385
        %3387 = vmax.xlane.f32.xlu0 %v3211
        %v3388 = vpop.xlane.xlu0 %3387
        %3389 = vmax.xlane.f32.xlu0 %v3212
        %v3390 = vpop.xlane.xlu0 %3389
        %3391 = vmax.xlane.f32.xlu0 %v3213
        %v3392 = vpop.xlane.xlu0 %3391
        %3393 = vmax.xlane.f32.xlu0 %v3214
        %v3394 = vpop.xlane.xlu0 %3393
        %3395 = vmax.xlane.f32.xlu0 %v3215
        %v3396 = vpop.xlane.xlu0 %3395
        %3397 = vmax.xlane.f32.xlu0 %v3216
        %v3398 = vpop.xlane.xlu0 %3397
        %3399 = vmax.xlane.f32.xlu0 %v3217
        %v3400 = vpop.xlane.xlu0 %3399
        %3401 = vmax.xlane.f32.xlu0 %v3218
        %v3402 = vpop.xlane.xlu0 %3401
        %3403 = vmax.xlane.f32.xlu0 %v3219
        %v3404 = vpop.xlane.xlu0 %3403
        %3405 = vmax.xlane.f32.xlu0 %v3220
        %v3406 = vpop.xlane.xlu0 %3405
        %3407 = vmax.xlane.f32.xlu0 %v3221
        %v3408 = vpop.xlane.xlu0 %3407
        %3409 = vmax.xlane.f32.xlu0 %v3222
        %v3410 = vpop.xlane.xlu0 %3409
        %3411 = vmax.xlane.f32.xlu0 %v3223
        %v3412 = vpop.xlane.xlu0 %3411
        %3413 = vmax.xlane.f32.xlu0 %v3224
        %v3414 = vpop.xlane.xlu0 %3413
        %3415 = vmax.xlane.f32.xlu0 %v3225
        %v3416 = vpop.xlane.xlu0 %3415
        %3417 = vmax.xlane.f32.xlu0 %v3226
        %v3418 = vpop.xlane.xlu0 %3417
        %3419 = vmax.xlane.f32.xlu0 %v3227
        %v3420 = vpop.xlane.xlu0 %3419
        %3421 = vmax.xlane.f32.xlu0 %v3228
        %v3422 = vpop.xlane.xlu0 %3421
        %3423 = vmax.xlane.f32.xlu0 %v3229
        %v3424 = vpop.xlane.xlu0 %3423
        %3425 = vmax.xlane.f32.xlu0 %v3230
        %v3426 = vpop.xlane.xlu0 %3425
        %3427 = vmax.xlane.f32.xlu0 %v3231
        %v3428 = vpop.xlane.xlu0 %3427
        %3429 = vmax.xlane.f32.xlu0 %v3232
        %v3430 = vpop.xlane.xlu0 %3429
        %3431 = vmax.xlane.f32.xlu0 %v3233
        %v3432 = vpop.xlane.xlu0 %3431
        %3433 = vmax.xlane.f32.xlu0 %v3234
        %v3434 = vpop.xlane.xlu0 %3433
        %3435 = vmax.xlane.f32.xlu0 %v3235
        %v3436 = vpop.xlane.xlu0 %3435
        %3437 = vmax.xlane.f32.xlu0 %v3236
        %v3438 = vpop.xlane.xlu0 %3437
        %3439 = vmax.xlane.f32.xlu0 %v3237
        %v3440 = vpop.xlane.xlu0 %3439
        %3441 = vmax.xlane.f32.xlu0 %v3238
        %v3442 = vpop.xlane.xlu0 %3441
        %3443 = vmax.xlane.f32.xlu0 %v3239
        %v3444 = vpop.xlane.xlu0 %3443
        %3445 = vmax.xlane.f32.xlu0 %v3240
        %v3446 = vpop.xlane.xlu0 %3445
        %3447 = vmax.xlane.f32.xlu0 %v3241
        %v3448 = vpop.xlane.xlu0 %3447
        %3449 = vmax.xlane.f32.xlu0 %v3242
        %v3450 = vpop.xlane.xlu0 %3449
        %3451 = vmax.xlane.f32.xlu0 %v3243
        %v3452 = vpop.xlane.xlu0 %3451
        %3453 = vmax.xlane.f32.xlu0 %v3244
        %v3454 = vpop.xlane.xlu0 %3453
        %3455 = vmax.xlane.f32.xlu0 %v3245
        %v3456 = vpop.xlane.xlu0 %3455
        %3457 = vmax.xlane.f32.xlu0 %v3246
        %v3458 = vpop.xlane.xlu0 %3457
        %3459 = vmax.xlane.f32.xlu0 %v3247
        %v3460 = vpop.xlane.xlu0 %3459
        %3461 = vmax.xlane.f32.xlu0 %v3248
        %v3462 = vpop.xlane.xlu0 %3461
        %3463 = vmax.xlane.f32.xlu0 %v3249
        %v3464 = vpop.xlane.xlu0 %3463
        %3465 = vmax.xlane.f32.xlu0 %v3250
        %v3466 = vpop.xlane.xlu0 %3465
        %3467 = vmax.xlane.f32.xlu0 %v3251
        %v3468 = vpop.xlane.xlu0 %3467
        %3469 = vmax.xlane.f32.xlu0 %v3252
        %v3470 = vpop.xlane.xlu0 %3469
        %3471 = vmax.xlane.f32.xlu0 %v3253
        %v3472 = vpop.xlane.xlu0 %3471
        %3473 = vmax.xlane.f32.xlu0 %v3254
        %v3474 = vpop.xlane.xlu0 %3473
        %3475 = vmax.xlane.f32.xlu0 %v3255
        %v3476 = vpop.xlane.xlu0 %3475
        %3477 = vmax.xlane.f32.xlu0 %v3256
        %v3478 = vpop.xlane.xlu0 %3477
        %3479 = vmax.xlane.f32.xlu0 %v3257
        %v3480 = vpop.xlane.xlu0 %3479
        %3481 = vmax.xlane.f32.xlu0 %v3258
        %v3482 = vpop.xlane.xlu0 %3481
        %3483 = vmax.xlane.f32.xlu0 %v3259
        %v3484 = vpop.xlane.xlu0 %3483
        %3485 = vmax.xlane.f32.xlu0 %v3260
        %v3486 = vpop.xlane.xlu0 %3485
        %3487 = vmax.xlane.f32.xlu0 %v3261
        %v3488 = vpop.xlane.xlu0 %3487
        %3489 = vmax.xlane.f32.xlu0 %v3262
        %v3490 = vpop.xlane.xlu0 %3489
        %3491 = vmax.xlane.f32.xlu0 %v3263
        %v3492 = vpop.xlane.xlu0 %3491
        %3493 = vmax.xlane.f32.xlu0 %v3264
        %v3494 = vpop.xlane.xlu0 %3493
        %3495 = vmax.xlane.f32.xlu0 %v3265
        %v3496 = vpop.xlane.xlu0 %3495
        %3497 = vmax.xlane.f32.xlu0 %v3266
        %v3498 = vpop.xlane.xlu0 %3497
        %3499 = vmax.xlane.f32.xlu0 %v3267
        %v3500 = vpop.xlane.xlu0 %3499
        %3501 = vmax.xlane.f32.xlu0 %v3268
        %v3502 = vpop.xlane.xlu0 %3501
        %3503 = vmax.xlane.f32.xlu0 %v3269
        %v3504 = vpop.xlane.xlu0 %3503
        %3505 = vmax.xlane.f32.xlu0 %v3270
        %v3506 = vpop.xlane.xlu0 %3505
        %3507 = vmax.xlane.f32.xlu0 %v3271
        %v3508 = vpop.xlane.xlu0 %3507
        %3509 = vmax.xlane.f32.xlu0 %v3272
        %v3510 = vpop.xlane.xlu0 %3509
        %3511 = vmax.xlane.f32.xlu0 %v3273
        %v3512 = vpop.xlane.xlu0 %3511
        %3513 = vmax.xlane.f32.xlu0 %v3274
        %v3514 = vpop.xlane.xlu0 %3513
        %3515 = vmax.xlane.f32.xlu0 %v3275
        %v3516 = vpop.xlane.xlu0 %3515
        %3517 = vmax.xlane.f32.xlu0 %v3276
        %v3518 = vpop.xlane.xlu0 %3517
        %3519 = vmax.xlane.f32.xlu0 %v3277
        %v3520 = vpop.xlane.xlu0 %3519
        %3521 = vmax.xlane.f32.xlu0 %v3278
        %v3522 = vpop.xlane.xlu0 %3521
        %3523 = vmax.xlane.f32.xlu0 %v3279
        %v3524 = vpop.xlane.xlu0 %3523
        %3525 = vmax.xlane.f32.xlu0 %v3280
        %v3526 = vpop.xlane.xlu0 %3525
        %3527 = vmax.xlane.f32.xlu0 %v3281
        %v3528 = vpop.xlane.xlu0 %3527
        %3529 = vmax.xlane.f32.xlu0 %v3282
        %v3530 = vpop.xlane.xlu0 %3529
        %3531 = vmax.xlane.f32.xlu0 %v3283
        %v3532 = vpop.xlane.xlu0 %3531
        %3533 = vmax.xlane.f32.xlu0 %v3284
        %v3534 = vpop.xlane.xlu0 %3533
        %3535 = vmax.xlane.f32.xlu0 %v3285
        %v3536 = vpop.xlane.xlu0 %3535
        %3537 = vmax.xlane.f32.xlu0 %v3286
        %v3538 = vpop.xlane.xlu0 %3537
        %3539 = vmax.xlane.f32.xlu0 %v3287
        %v3540 = vpop.xlane.xlu0 %3539
        %3541 = vmax.xlane.f32.xlu0 %v3288
        %v3542 = vpop.xlane.xlu0 %3541
        %3543 = vmax.xlane.f32.xlu0 %v3289
        %v3544 = vpop.xlane.xlu0 %3543
        %3545 = vmax.xlane.f32.xlu0 %v3290
        %v3546 = vpop.xlane.xlu0 %3545
        %vm3547 = vcmp.gt.f32.partialorder %v3292, 0.0
        %vm3548 = vcmp.gt.f32.partialorder %v3294, 0.0
        %vm3549 = vcmp.gt.f32.partialorder %v3296, 0.0
        %vm3550 = vcmp.gt.f32.partialorder %v3298, 0.0
        %vm3551 = vcmp.gt.f32.partialorder %v3300, 0.0
        %vm3552 = vcmp.gt.f32.partialorder %v3302, 0.0
        %vm3553 = vcmp.gt.f32.partialorder %v3304, 0.0
        %vm3554 = vcmp.gt.f32.partialorder %v3306, 0.0
        %vm3555 = vcmp.gt.f32.partialorder %v3308, 0.0
        %vm3556 = vcmp.gt.f32.partialorder %v3310, 0.0
        %vm3557 = vcmp.gt.f32.partialorder %v3312, 0.0
        %vm3558 = vcmp.gt.f32.partialorder %v3314, 0.0
        %vm3559 = vcmp.gt.f32.partialorder %v3316, 0.0
        %vm3560 = vcmp.gt.f32.partialorder %v3318, 0.0
        %vm3561 = vcmp.gt.f32.partialorder %v3320, 0.0
        %vm3562 = vcmp.gt.f32.partialorder %v3322, 0.0
        %vm3563 = vcmp.gt.f32.partialorder %v3324, 0.0
        %vm3564 = vcmp.gt.f32.partialorder %v3326, 0.0
        %vm3565 = vcmp.gt.f32.partialorder %v3328, 0.0
        %vm3566 = vcmp.gt.f32.partialorder %v3330, 0.0
        %vm3567 = vcmp.gt.f32.partialorder %v3332, 0.0
        %vm3568 = vcmp.gt.f32.partialorder %v3334, 0.0
        %vm3569 = vcmp.gt.f32.partialorder %v3336, 0.0
        %vm3570 = vcmp.gt.f32.partialorder %v3338, 0.0
        %vm3571 = vcmp.gt.f32.partialorder %v3340, 0.0
        %vm3572 = vcmp.gt.f32.partialorder %v3342, 0.0
        %vm3573 = vcmp.gt.f32.partialorder %v3344, 0.0
        %vm3574 = vcmp.gt.f32.partialorder %v3346, 0.0
        %vm3575 = vcmp.gt.f32.partialorder %v3348, 0.0
        %vm3576 = vcmp.gt.f32.partialorder %v3350, 0.0
        %vm3577 = vcmp.gt.f32.partialorder %v3352, 0.0
        %vm3578 = vcmp.gt.f32.partialorder %v3354, 0.0
        %vm3579 = vcmp.gt.f32.partialorder %v3356, 0.0
        %vm3580 = vcmp.gt.f32.partialorder %v3358, 0.0
        %vm3581 = vcmp.gt.f32.partialorder %v3360, 0.0
        %vm3582 = vcmp.gt.f32.partialorder %v3362, 0.0
        %vm3583 = vcmp.gt.f32.partialorder %v3364, 0.0
        %vm3584 = vcmp.gt.f32.partialorder %v3366, 0.0
        %vm3585 = vcmp.gt.f32.partialorder %v3368, 0.0
        %vm3586 = vcmp.gt.f32.partialorder %v3370, 0.0
        %vm3587 = vcmp.gt.f32.partialorder %v3372, 0.0
        %vm3588 = vcmp.gt.f32.partialorder %v3374, 0.0
        %vm3589 = vcmp.gt.f32.partialorder %v3376, 0.0
        %vm3590 = vcmp.gt.f32.partialorder %v3378, 0.0
        %vm3591 = vcmp.gt.f32.partialorder %v3380, 0.0
        %vm3592 = vcmp.gt.f32.partialorder %v3382, 0.0
        %vm3593 = vcmp.gt.f32.partialorder %v3384, 0.0
        %vm3594 = vcmp.gt.f32.partialorder %v3386, 0.0
        %vm3595 = vcmp.gt.f32.partialorder %v3388, 0.0
        %vm3596 = vcmp.gt.f32.partialorder %v3390, 0.0
        %vm3597 = vcmp.gt.f32.partialorder %v3392, 0.0
        %vm3598 = vcmp.gt.f32.partialorder %v3394, 0.0
        %vm3599 = vcmp.gt.f32.partialorder %v3396, 0.0
        %vm3600 = vcmp.gt.f32.partialorder %v3398, 0.0
        %vm3601 = vcmp.gt.f32.partialorder %v3400, 0.0
        %vm3602 = vcmp.gt.f32.partialorder %v3402, 0.0
        %vm3603 = vcmp.gt.f32.partialorder %v3404, 0.0
        %vm3604 = vcmp.gt.f32.partialorder %v3406, 0.0
        %vm3605 = vcmp.gt.f32.partialorder %v3408, 0.0
        %vm3606 = vcmp.gt.f32.partialorder %v3410, 0.0
        %vm3607 = vcmp.gt.f32.partialorder %v3412, 0.0
        %vm3608 = vcmp.gt.f32.partialorder %v3414, 0.0
        %vm3609 = vcmp.gt.f32.partialorder %v3416, 0.0
        %vm3610 = vcmp.gt.f32.partialorder %v3418, 0.0
        %vm3611 = vcmp.gt.f32.partialorder %v3420, 0.0
        %vm3612 = vcmp.gt.f32.partialorder %v3422, 0.0
        %vm3613 = vcmp.gt.f32.partialorder %v3424, 0.0
        %vm3614 = vcmp.gt.f32.partialorder %v3426, 0.0
        %vm3615 = vcmp.gt.f32.partialorder %v3428, 0.0
        %vm3616 = vcmp.gt.f32.partialorder %v3430, 0.0
        %vm3617 = vcmp.gt.f32.partialorder %v3432, 0.0
        %vm3618 = vcmp.gt.f32.partialorder %v3434, 0.0
        %vm3619 = vcmp.gt.f32.partialorder %v3436, 0.0
        %vm3620 = vcmp.gt.f32.partialorder %v3438, 0.0
        %vm3621 = vcmp.gt.f32.partialorder %v3440, 0.0
        %vm3622 = vcmp.gt.f32.partialorder %v3442, 0.0
        %vm3623 = vcmp.gt.f32.partialorder %v3444, 0.0
        %vm3624 = vcmp.gt.f32.partialorder %v3446, 0.0
        %vm3625 = vcmp.gt.f32.partialorder %v3448, 0.0
        %vm3626 = vcmp.gt.f32.partialorder %v3450, 0.0
        %vm3627 = vcmp.gt.f32.partialorder %v3452, 0.0
        %vm3628 = vcmp.gt.f32.partialorder %v3454, 0.0
        %vm3629 = vcmp.gt.f32.partialorder %v3456, 0.0
        %vm3630 = vcmp.gt.f32.partialorder %v3458, 0.0
        %vm3631 = vcmp.gt.f32.partialorder %v3460, 0.0
        %vm3632 = vcmp.gt.f32.partialorder %v3462, 0.0
        %vm3633 = vcmp.gt.f32.partialorder %v3464, 0.0
        %vm3634 = vcmp.gt.f32.partialorder %v3466, 0.0
        %vm3635 = vcmp.gt.f32.partialorder %v3468, 0.0
        %vm3636 = vcmp.gt.f32.partialorder %v3470, 0.0
        %vm3637 = vcmp.gt.f32.partialorder %v3472, 0.0
        %vm3638 = vcmp.gt.f32.partialorder %v3474, 0.0
        %vm3639 = vcmp.gt.f32.partialorder %v3476, 0.0
        %vm3640 = vcmp.gt.f32.partialorder %v3478, 0.0
        %vm3641 = vcmp.gt.f32.partialorder %v3480, 0.0
        %vm3642 = vcmp.gt.f32.partialorder %v3482, 0.0
        %vm3643 = vcmp.gt.f32.partialorder %v3484, 0.0
        %vm3644 = vcmp.gt.f32.partialorder %v3486, 0.0
        %vm3645 = vcmp.gt.f32.partialorder %v3488, 0.0
        %vm3646 = vcmp.gt.f32.partialorder %v3490, 0.0
        %vm3647 = vcmp.gt.f32.partialorder %v3492, 0.0
        %vm3648 = vcmp.gt.f32.partialorder %v3494, 0.0
        %vm3649 = vcmp.gt.f32.partialorder %v3496, 0.0
        %vm3650 = vcmp.gt.f32.partialorder %v3498, 0.0
        %vm3651 = vcmp.gt.f32.partialorder %v3500, 0.0
        %vm3652 = vcmp.gt.f32.partialorder %v3502, 0.0
        %vm3653 = vcmp.gt.f32.partialorder %v3504, 0.0
        %vm3654 = vcmp.gt.f32.partialorder %v3506, 0.0
        %vm3655 = vcmp.gt.f32.partialorder %v3508, 0.0
        %vm3656 = vcmp.gt.f32.partialorder %v3510, 0.0
        %vm3657 = vcmp.gt.f32.partialorder %v3512, 0.0
        %vm3658 = vcmp.gt.f32.partialorder %v3514, 0.0
        %vm3659 = vcmp.gt.f32.partialorder %v3516, 0.0
        %vm3660 = vcmp.gt.f32.partialorder %v3518, 0.0
        %vm3661 = vcmp.gt.f32.partialorder %v3520, 0.0
        %vm3662 = vcmp.gt.f32.partialorder %v3522, 0.0
        %vm3663 = vcmp.gt.f32.partialorder %v3524, 0.0
        %vm3664 = vcmp.gt.f32.partialorder %v3526, 0.0
        %vm3665 = vcmp.gt.f32.partialorder %v3528, 0.0
        %vm3666 = vcmp.gt.f32.partialorder %v3530, 0.0
        %vm3667 = vcmp.gt.f32.partialorder %v3532, 0.0
        %vm3668 = vcmp.gt.f32.partialorder %v3534, 0.0
        %vm3669 = vcmp.gt.f32.partialorder %v3536, 0.0
        %vm3670 = vcmp.gt.f32.partialorder %v3538, 0.0
        %vm3671 = vcmp.gt.f32.partialorder %v3540, 0.0
        %vm3672 = vcmp.gt.f32.partialorder %v3542, 0.0
        %vm3673 = vcmp.gt.f32.partialorder %v3544, 0.0
        %vm3674 = vcmp.gt.f32.partialorder %v3546, 0.0
        %vm3675 = vcmp.ne.s32.totalorder %v197, 0
        %vm3676 = vcmp.ne.s32.totalorder %v196, 0
        %vm3677 = vmxor %vm2779, 1
        %vm3678 = vmxor %vm2780, 1
        %vm3679 = vmxor %vm2781, 1
        %vm3680 = vmxor %vm2782, 1
        %vm3681 = vmxor %vm2783, 1
        %vm3682 = vmxor %vm2784, 1
        %vm3683 = vmxor %vm2785, 1
        %vm3684 = vmxor %vm2786, 1
        %vm3685 = vmxor %vm2787, 1
        %vm3686 = vmxor %vm2788, 1
        %vm3687 = vmxor %vm2789, 1
        %vm3688 = vmxor %vm2790, 1
        %vm3689 = vmxor %vm2791, 1
        %vm3690 = vmxor %vm2792, 1
        %vm3691 = vmxor %vm2793, 1
        %vm3692 = vmxor %vm2794, 1
        %vm3693 = vmxor %vm2795, 1
        %vm3694 = vmxor %vm2796, 1
        %vm3695 = vmxor %vm2797, 1
        %vm3696 = vmxor %vm2798, 1
        %vm3697 = vmxor %vm2799, 1
        %vm3698 = vmxor %vm2800, 1
        %vm3699 = vmxor %vm2801, 1
        %vm3700 = vmxor %vm2802, 1
        %vm3701 = vmxor %vm2803, 1
        %vm3702 = vmxor %vm2804, 1
        %vm3703 = vmxor %vm2805, 1
        %vm3704 = vmxor %vm2806, 1
        %vm3705 = vmxor %vm2807, 1
        %vm3706 = vmxor %vm2808, 1
        %vm3707 = vmxor %vm2809, 1
        %vm3708 = vmxor %vm2810, 1
        %vm3709 = vmxor %vm2811, 1
        %vm3710 = vmxor %vm2812, 1
        %vm3711 = vmxor %vm2813, 1
        %vm3712 = vmxor %vm2814, 1
        %vm3713 = vmxor %vm2815, 1
        %vm3714 = vmxor %vm2816, 1
        %vm3715 = vmxor %vm2817, 1
        %vm3716 = vmxor %vm2818, 1
        %vm3717 = vmxor %vm2819, 1
        %vm3718 = vmxor %vm2820, 1
        %vm3719 = vmxor %vm2821, 1
        %vm3720 = vmxor %vm2822, 1
        %vm3721 = vmxor %vm2823, 1
        %vm3722 = vmxor %vm2824, 1
        %vm3723 = vmxor %vm2825, 1
        %vm3724 = vmxor %vm2826, 1
        %vm3725 = vmxor %vm2827, 1
        %vm3726 = vmxor %vm2828, 1
        %vm3727 = vmxor %vm2829, 1
        %vm3728 = vmxor %vm2830, 1
        %vm3729 = vmxor %vm2831, 1
        %vm3730 = vmxor %vm2832, 1
        %vm3731 = vmxor %vm2833, 1
        %vm3732 = vmxor %vm2834, 1
        %vm3733 = vmxor %vm2835, 1
        %vm3734 = vmxor %vm2836, 1
        %vm3735 = vmxor %vm2837, 1
        %vm3736 = vmxor %vm2838, 1
        %vm3737 = vmxor %vm2839, 1
        %vm3738 = vmxor %vm2840, 1
        %vm3739 = vmxor %vm2841, 1
        %vm3740 = vmxor %vm2842, 1
        %vm3741 = vmxor %vm2843, 1
        %vm3742 = vmxor %vm2844, 1
        %vm3743 = vmxor %vm2845, 1
        %vm3744 = vmxor %vm2846, 1
        %vm3745 = vmxor %vm2847, 1
        %vm3746 = vmxor %vm2848, 1
        %vm3747 = vmxor %vm2849, 1
        %vm3748 = vmxor %vm2850, 1
        %vm3749 = vmxor %vm2851, 1
        %vm3750 = vmxor %vm2852, 1
        %vm3751 = vmxor %vm2853, 1
        %vm3752 = vmxor %vm2854, 1
        %vm3753 = vmxor %vm2855, 1
        %vm3754 = vmxor %vm2856, 1
        %vm3755 = vmxor %vm2857, 1
        %vm3756 = vmxor %vm2858, 1
        %vm3757 = vmxor %vm2859, 1
        %vm3758 = vmxor %vm2860, 1
        %vm3759 = vmxor %vm2861, 1
        %vm3760 = vmxor %vm2862, 1
        %vm3761 = vmxor %vm2863, 1
        %vm3762 = vmxor %vm2864, 1
        %vm3763 = vmxor %vm2865, 1
        %vm3764 = vmxor %vm2866, 1
        %vm3765 = vmxor %vm2867, 1
        %vm3766 = vmxor %vm2868, 1
        %vm3767 = vmxor %vm2869, 1
        %vm3768 = vmxor %vm2870, 1
        %vm3769 = vmxor %vm2871, 1
        %vm3770 = vmxor %vm2872, 1
        %vm3771 = vmxor %vm2873, 1
        %vm3772 = vmxor %vm2874, 1
        %vm3773 = vmxor %vm2875, 1
        %vm3774 = vmxor %vm2876, 1
        %vm3775 = vmxor %vm2877, 1
        %vm3776 = vmxor %vm2878, 1
        %vm3777 = vmxor %vm2879, 1
        %vm3778 = vmxor %vm2880, 1
        %vm3779 = vmxor %vm2881, 1
        %vm3780 = vmxor %vm2882, 1
        %vm3781 = vmxor %vm2883, 1
        %vm3782 = vmxor %vm2884, 1
        %vm3783 = vmxor %vm2885, 1
        %vm3784 = vmxor %vm2886, 1
        %vm3785 = vmxor %vm2887, 1
        %vm3786 = vmxor %vm2888, 1
        %vm3787 = vmxor %vm2889, 1
        %vm3788 = vmxor %vm2890, 1
        %vm3789 = vmxor %vm2891, 1
        %vm3790 = vmxor %vm2892, 1
        %vm3791 = vmxor %vm2893, 1
        %vm3792 = vmxor %vm2894, 1
        %vm3793 = vmxor %vm2895, 1
        %vm3794 = vmxor %vm2896, 1
        %vm3795 = vmxor %vm2897, 1
        %vm3796 = vmxor %vm2898, 1
        %vm3797 = vmxor %vm2899, 1
        %vm3798 = vmxor %vm2900, 1
        %vm3799 = vmxor %vm2901, 1
        %vm3800 = vmxor %vm2902, 1
        %vm3801 = vmxor %vm2903, 1
        %vm3802 = vmxor %vm2904, 1
        %vm3803 = vmxor %vm2905, 1
        %vm3804 = vmxor %vm2906, 1
        %v3805 = vsel %vm3677, 1, 0
        %v3806 = vsel %vm3678, 1, 0
        %v3807 = vsel %vm3679, 1, 0
        %v3808 = vsel %vm3680, 1, 0
        %v3809 = vsel %vm3681, 1, 0
        %v3810 = vsel %vm3682, 1, 0
        %v3811 = vsel %vm3683, 1, 0
        %v3812 = vsel %vm3684, 1, 0
        %v3813 = vsel %vm3685, 1, 0
        %v3814 = vsel %vm3686, 1, 0
        %v3815 = vsel %vm3687, 1, 0
        %v3816 = vsel %vm3688, 1, 0
        %v3817 = vsel %vm3689, 1, 0
        %v3818 = vsel %vm3690, 1, 0
        %v3819 = vsel %vm3691, 1, 0
        %v3820 = vsel %vm3692, 1, 0
        %v3821 = vsel %vm3693, 1, 0
        %v3822 = vsel %vm3694, 1, 0
        %v3823 = vsel %vm3695, 1, 0
        %v3824 = vsel %vm3696, 1, 0
        %v3825 = vsel %vm3697, 1, 0
        %v3826 = vsel %vm3698, 1, 0
        %v3827 = vsel %vm3699, 1, 0
        %v3828 = vsel %vm3700, 1, 0
        %v3829 = vsel %vm3701, 1, 0
        %v3830 = vsel %vm3702, 1, 0
        %v3831 = vsel %vm3703, 1, 0
        %v3832 = vsel %vm3704, 1, 0
        %v3833 = vsel %vm3705, 1, 0
        %v3834 = vsel %vm3706, 1, 0
        %v3835 = vsel %vm3707, 1, 0
        %v3836 = vsel %vm3708, 1, 0
        %v3837 = vsel %vm3709, 1, 0
        %v3838 = vsel %vm3710, 1, 0
        %v3839 = vsel %vm3711, 1, 0
        %v3840 = vsel %vm3712, 1, 0
        %v3841 = vsel %vm3713, 1, 0
        %v3842 = vsel %vm3714, 1, 0
        %v3843 = vsel %vm3715, 1, 0
        %v3844 = vsel %vm3716, 1, 0
        %v3845 = vsel %vm3717, 1, 0
        %v3846 = vsel %vm3718, 1, 0
        %v3847 = vsel %vm3719, 1, 0
        %v3848 = vsel %vm3720, 1, 0
        %v3849 = vsel %vm3721, 1, 0
        %v3850 = vsel %vm3722, 1, 0
        %v3851 = vsel %vm3723, 1, 0
        %v3852 = vsel %vm3724, 1, 0
        %v3853 = vsel %vm3725, 1, 0
        %v3854 = vsel %vm3726, 1, 0
        %v3855 = vsel %vm3727, 1, 0
        %v3856 = vsel %vm3728, 1, 0
        %v3857 = vsel %vm3729, 1, 0
        %v3858 = vsel %vm3730, 1, 0
        %v3859 = vsel %vm3731, 1, 0
        %v3860 = vsel %vm3732, 1, 0
        %v3861 = vsel %vm3733, 1, 0
        %v3862 = vsel %vm3734, 1, 0
        %v3863 = vsel %vm3735, 1, 0
        %v3864 = vsel %vm3736, 1, 0
        %v3865 = vsel %vm3737, 1, 0
        %v3866 = vsel %vm3738, 1, 0
        %v3867 = vsel %vm3739, 1, 0
        %v3868 = vsel %vm3740, 1, 0
        %v3869 = vsel %vm3741, 1, 0
        %v3870 = vsel %vm3742, 1, 0
        %v3871 = vsel %vm3743, 1, 0
        %v3872 = vsel %vm3744, 1, 0
        %v3873 = vsel %vm3745, 1, 0
        %v3874 = vsel %vm3746, 1, 0
        %v3875 = vsel %vm3747, 1, 0
        %v3876 = vsel %vm3748, 1, 0
        %v3877 = vsel %vm3749, 1, 0
        %v3878 = vsel %vm3750, 1, 0
        %v3879 = vsel %vm3751, 1, 0
        %v3880 = vsel %vm3752, 1, 0
        %v3881 = vsel %vm3753, 1, 0
        %v3882 = vsel %vm3754, 1, 0
        %v3883 = vsel %vm3755, 1, 0
        %v3884 = vsel %vm3756, 1, 0
        %v3885 = vsel %vm3757, 1, 0
        %v3886 = vsel %vm3758, 1, 0
        %v3887 = vsel %vm3759, 1, 0
        %v3888 = vsel %vm3760, 1, 0
        %v3889 = vsel %vm3761, 1, 0
        %v3890 = vsel %vm3762, 1, 0
        %v3891 = vsel %vm3763, 1, 0
        %v3892 = vsel %vm3764, 1, 0
        %v3893 = vsel %vm3765, 1, 0
        %v3894 = vsel %vm3766, 1, 0
        %v3895 = vsel %vm3767, 1, 0
        %v3896 = vsel %vm3768, 1, 0
        %v3897 = vsel %vm3769, 1, 0
        %v3898 = vsel %vm3770, 1, 0
        %v3899 = vsel %vm3771, 1, 0
        %v3900 = vsel %vm3772, 1, 0
        %v3901 = vsel %vm3773, 1, 0
        %v3902 = vsel %vm3774, 1, 0
        %v3903 = vsel %vm3775, 1, 0
        %v3904 = vsel %vm3776, 1, 0
        %v3905 = vsel %vm3777, 1, 0
        %v3906 = vsel %vm3778, 1, 0
        %v3907 = vsel %vm3779, 1, 0
        %v3908 = vsel %vm3780, 1, 0
        %v3909 = vsel %vm3781, 1, 0
        %v3910 = vsel %vm3782, 1, 0
        %v3911 = vsel %vm3783, 1, 0
        %v3912 = vsel %vm3784, 1, 0
        %v3913 = vsel %vm3785, 1, 0
        %v3914 = vsel %vm3786, 1, 0
        %v3915 = vsel %vm3787, 1, 0
        %v3916 = vsel %vm3788, 1, 0
        %v3917 = vsel %vm3789, 1, 0
        %v3918 = vsel %vm3790, 1, 0
        %v3919 = vsel %vm3791, 1, 0
        %v3920 = vsel %vm3792, 1, 0
        %v3921 = vsel %vm3793, 1, 0
        %v3922 = vsel %vm3794, 1, 0
        %v3923 = vsel %vm3795, 1, 0
        %v3924 = vsel %vm3796, 1, 0
        %v3925 = vsel %vm3797, 1, 0
        %v3926 = vsel %vm3798, 1, 0
        %v3927 = vsel %vm3799, 1, 0
        %v3928 = vsel %vm3800, 1, 0
        %v3929 = vsel %vm3801, 1, 0
        %v3930 = vsel %vm3802, 1, 0
        %v3931 = vsel %vm3803, 1, 0
        %v3932 = vsel %vm3804, 1, 0
        %v3933 = vlaneseq
        %v3934 = vshrl.u32 %v3933, 7
        %v3935 = vsub.s32 %v216, %v3934
        %v3936 = vrot.slane %v3805, %v3935
        %v3937 = vadd.s32 %v216, 4294967288
        %v3938 = vlaneseq
        %v3939 = vshrl.u32 %v3938, 7
        %v3940 = vsub.s32 %v3937, %v3939
        %v3941 = vrot.slane %v3806, %v3940
        %vm3942 = vcmask 130112
        %v3943 = vsel %vm3942, %v3941, %v3936
        %v3944 = vadd.s32 %v216, 4294967280
        %v3945 = vlaneseq
        %v3946 = vshrl.u32 %v3945, 7
        %v3947 = vsub.s32 %v3944, %v3946
        %v3948 = vrot.slane %v3807, %v3947
        %vm3949 = vcmask 195712
        %v3950 = vsel %vm3949, %v3948, %v3943
        %v3951 = vadd.s32 %v216, 4294967272
        %v3952 = vlaneseq
        %v3953 = vshrl.u32 %v3952, 7
        %v3954 = vsub.s32 %v3951, %v3953
        %v3955 = vrot.slane %v3808, %v3954
        %vm3956 = vcmask 261312
        %v3957 = vsel %vm3956, %v3955, %v3950
        %v3958 = vadd.s32 %v216, 4294967264
        %v3959 = vlaneseq
        %v3960 = vshrl.u32 %v3959, 7
        %v3961 = vsub.s32 %v3958, %v3960
        %v3962 = vrot.slane %v3809, %v3961
        %vm3963 = vcmask 326912
        %v3964 = vsel %vm3963, %v3962, %v3957
        %v3965 = vadd.s32 %v216, 4294967256
        %v3966 = vlaneseq
        %v3967 = vshrl.u32 %v3966, 7
        %v3968 = vsub.s32 %v3965, %v3967
        %v3969 = vrot.slane %v3810, %v3968
        %vm3970 = vcmask 392512
        %v3971 = vsel %vm3970, %v3969, %v3964
        %v3972 = vadd.s32 %v216, 4294967248
        %v3973 = vlaneseq
        %v3974 = vshrl.u32 %v3973, 7
        %v3975 = vsub.s32 %v3972, %v3974
        %v3976 = vrot.slane %v3811, %v3975
        %vm3977 = vcmask 458112
        %v3978 = vsel %vm3977, %v3976, %v3971
        %v3979 = vadd.s32 %v216, 4294967240
        %v3980 = vlaneseq
        %v3981 = vshrl.u32 %v3980, 7
        %v3982 = vsub.s32 %v3979, %v3981
        %v3983 = vrot.slane %v3812, %v3982
        %vm3984 = vcmask 523712
        %v3985 = vsel %vm3984, %v3983, %v3978
        %v3986 = vadd.s32 %v216, 4294967232
        %v3987 = vlaneseq
        %v3988 = vshrl.u32 %v3987, 7
        %v3989 = vsub.s32 %v3986, %v3988
        %v3990 = vrot.slane %v3813, %v3989
        %vm3991 = vcmask 589312
        %v3992 = vsel %vm3991, %v3990, %v3985
        %v3993 = vadd.s32 %v216, 4294967224
        %v3994 = vlaneseq
        %v3995 = vshrl.u32 %v3994, 7
        %v3996 = vsub.s32 %v3993, %v3995
        %v3997 = vrot.slane %v3814, %v3996
        %vm3998 = vcmask 654912
        %v3999 = vsel %vm3998, %v3997, %v3992
        %v4000 = vadd.s32 %v216, 4294967216
        %v4001 = vlaneseq
        %v4002 = vshrl.u32 %v4001, 7
        %v4003 = vsub.s32 %v4000, %v4002
        %v4004 = vrot.slane %v3815, %v4003
        %vm4005 = vcmask 720512
        %v4006 = vsel %vm4005, %v4004, %v3999
        %v4007 = vadd.s32 %v216, 4294967208
        %v4008 = vlaneseq
        %v4009 = vshrl.u32 %v4008, 7
        %v4010 = vsub.s32 %v4007, %v4009
        %v4011 = vrot.slane %v3816, %v4010
        %vm4012 = vcmask 786112
        %v4013 = vsel %vm4012, %v4011, %v4006
        %v4014 = vadd.s32 %v216, 4294967200
        %v4015 = vlaneseq
        %v4016 = vshrl.u32 %v4015, 7
        %v4017 = vsub.s32 %v4014, %v4016
        %v4018 = vrot.slane %v3817, %v4017
        %vm4019 = vcmask 851712
        %v4020 = vsel %vm4019, %v4018, %v4013
        %v4021 = vadd.s32 %v216, 4294967192
        %v4022 = vlaneseq
        %v4023 = vshrl.u32 %v4022, 7
        %v4024 = vsub.s32 %v4021, %v4023
        %v4025 = vrot.slane %v3818, %v4024
        %vm4026 = vcmask 917312
        %v4027 = vsel %vm4026, %v4025, %v4020
        %v4028 = vadd.s32 %v216, 4294967184
        %v4029 = vlaneseq
        %v4030 = vshrl.u32 %v4029, 7
        %v4031 = vsub.s32 %v4028, %v4030
        %v4032 = vrot.slane %v3819, %v4031
        %vm4033 = vcmask 982912
        %v4034 = vsel %vm4033, %v4032, %v4027
        %v4035 = vadd.s32 %v216, 4294967176
        %v4036 = vlaneseq
        %v4037 = vshrl.u32 %v4036, 7
        %v4038 = vsub.s32 %v4035, %v4037
        %v4039 = vrot.slane %v3820, %v4038
        %vm4040 = vcmask 1048512
        %v4041 = vsel %vm4040, %v4039, %v4034
        %v4042 = vlaneseq
        %v4043 = vshrl.u32 %v4042, 7
        %v4044 = vsub.s32 %v216, %v4043
        %v4045 = vrot.slane %v3821, %v4044
        %v4046 = vlaneseq
        %v4047 = vshrl.u32 %v4046, 7
        %v4048 = vsub.s32 %v3937, %v4047
        %v4049 = vrot.slane %v3822, %v4048
        %v4050 = vsel %vm3942, %v4049, %v4045
        %v4051 = vlaneseq
        %v4052 = vshrl.u32 %v4051, 7
        %v4053 = vsub.s32 %v3944, %v4052
        %v4054 = vrot.slane %v3823, %v4053
        %v4055 = vsel %vm3949, %v4054, %v4050
        %v4056 = vlaneseq
        %v4057 = vshrl.u32 %v4056, 7
        %v4058 = vsub.s32 %v3951, %v4057
        %v4059 = vrot.slane %v3824, %v4058
        %v4060 = vsel %vm3956, %v4059, %v4055
        %v4061 = vlaneseq
        %v4062 = vshrl.u32 %v4061, 7
        %v4063 = vsub.s32 %v3958, %v4062
        %v4064 = vrot.slane %v3825, %v4063
        %v4065 = vsel %vm3963, %v4064, %v4060
        %v4066 = vlaneseq
        %v4067 = vshrl.u32 %v4066, 7
        %v4068 = vsub.s32 %v3965, %v4067
        %v4069 = vrot.slane %v3826, %v4068
        %v4070 = vsel %vm3970, %v4069, %v4065
        %v4071 = vlaneseq
        %v4072 = vshrl.u32 %v4071, 7
        %v4073 = vsub.s32 %v3972, %v4072
        %v4074 = vrot.slane %v3827, %v4073
        %v4075 = vsel %vm3977, %v4074, %v4070
        %v4076 = vlaneseq
        %v4077 = vshrl.u32 %v4076, 7
        %v4078 = vsub.s32 %v3979, %v4077
        %v4079 = vrot.slane %v3828, %v4078
        %v4080 = vsel %vm3984, %v4079, %v4075
        %v4081 = vlaneseq
        %v4082 = vshrl.u32 %v4081, 7
        %v4083 = vsub.s32 %v3986, %v4082
        %v4084 = vrot.slane %v3829, %v4083
        %v4085 = vsel %vm3991, %v4084, %v4080
        %v4086 = vlaneseq
        %v4087 = vshrl.u32 %v4086, 7
        %v4088 = vsub.s32 %v3993, %v4087
        %v4089 = vrot.slane %v3830, %v4088
        %v4090 = vsel %vm3998, %v4089, %v4085
        %v4091 = vlaneseq
        %v4092 = vshrl.u32 %v4091, 7
        %v4093 = vsub.s32 %v4000, %v4092
        %v4094 = vrot.slane %v3831, %v4093
        %v4095 = vsel %vm4005, %v4094, %v4090
        %v4096 = vlaneseq
        %v4097 = vshrl.u32 %v4096, 7
        %v4098 = vsub.s32 %v4007, %v4097
        %v4099 = vrot.slane %v3832, %v4098
        %v4100 = vsel %vm4012, %v4099, %v4095
        %v4101 = vlaneseq
        %v4102 = vshrl.u32 %v4101, 7
        %v4103 = vsub.s32 %v4014, %v4102
        %v4104 = vrot.slane %v3833, %v4103
        %v4105 = vsel %vm4019, %v4104, %v4100
        %v4106 = vlaneseq
        %v4107 = vshrl.u32 %v4106, 7
        %v4108 = vsub.s32 %v4021, %v4107
        %v4109 = vrot.slane %v3834, %v4108
        %v4110 = vsel %vm4026, %v4109, %v4105
        %v4111 = vlaneseq
        %v4112 = vshrl.u32 %v4111, 7
        %v4113 = vsub.s32 %v4028, %v4112
        %v4114 = vrot.slane %v3835, %v4113
        %v4115 = vsel %vm4033, %v4114, %v4110
        %v4116 = vlaneseq
        %v4117 = vshrl.u32 %v4116, 7
        %v4118 = vsub.s32 %v4035, %v4117
        %v4119 = vrot.slane %v3836, %v4118
        %v4120 = vsel %vm4040, %v4119, %v4115
        %v4121 = vlaneseq
        %v4122 = vshrl.u32 %v4121, 7
        %v4123 = vsub.s32 %v216, %v4122
        %v4124 = vrot.slane %v3837, %v4123
        %v4125 = vlaneseq
        %v4126 = vshrl.u32 %v4125, 7
        %v4127 = vsub.s32 %v3937, %v4126
        %v4128 = vrot.slane %v3838, %v4127
        %v4129 = vsel %vm3942, %v4128, %v4124
        %v4130 = vlaneseq
        %v4131 = vshrl.u32 %v4130, 7
        %v4132 = vsub.s32 %v3944, %v4131
        %v4133 = vrot.slane %v3839, %v4132
        %v4134 = vsel %vm3949, %v4133, %v4129
        %v4135 = vlaneseq
        %v4136 = vshrl.u32 %v4135, 7
        %v4137 = vsub.s32 %v3951, %v4136
        %v4138 = vrot.slane %v3840, %v4137
        %v4139 = vsel %vm3956, %v4138, %v4134
        %v4140 = vlaneseq
        %v4141 = vshrl.u32 %v4140, 7
        %v4142 = vsub.s32 %v3958, %v4141
        %v4143 = vrot.slane %v3841, %v4142
        %v4144 = vsel %vm3963, %v4143, %v4139
        %v4145 = vlaneseq
        %v4146 = vshrl.u32 %v4145, 7
        %v4147 = vsub.s32 %v3965, %v4146
        %v4148 = vrot.slane %v3842, %v4147
        %v4149 = vsel %vm3970, %v4148, %v4144
        %v4150 = vlaneseq
        %v4151 = vshrl.u32 %v4150, 7
        %v4152 = vsub.s32 %v3972, %v4151
        %v4153 = vrot.slane %v3843, %v4152
        %v4154 = vsel %vm3977, %v4153, %v4149
        %v4155 = vlaneseq
        %v4156 = vshrl.u32 %v4155, 7
        %v4157 = vsub.s32 %v3979, %v4156
        %v4158 = vrot.slane %v3844, %v4157
        %v4159 = vsel %vm3984, %v4158, %v4154
        %v4160 = vlaneseq
        %v4161 = vshrl.u32 %v4160, 7
        %v4162 = vsub.s32 %v3986, %v4161
        %v4163 = vrot.slane %v3845, %v4162
        %v4164 = vsel %vm3991, %v4163, %v4159
        %v4165 = vlaneseq
        %v4166 = vshrl.u32 %v4165, 7
        %v4167 = vsub.s32 %v3993, %v4166
        %v4168 = vrot.slane %v3846, %v4167
        %v4169 = vsel %vm3998, %v4168, %v4164
        %v4170 = vlaneseq
        %v4171 = vshrl.u32 %v4170, 7
        %v4172 = vsub.s32 %v4000, %v4171
        %v4173 = vrot.slane %v3847, %v4172
        %v4174 = vsel %vm4005, %v4173, %v4169
        %v4175 = vlaneseq
        %v4176 = vshrl.u32 %v4175, 7
        %v4177 = vsub.s32 %v4007, %v4176
        %v4178 = vrot.slane %v3848, %v4177
        %v4179 = vsel %vm4012, %v4178, %v4174
        %v4180 = vlaneseq
        %v4181 = vshrl.u32 %v4180, 7
        %v4182 = vsub.s32 %v4014, %v4181
        %v4183 = vrot.slane %v3849, %v4182
        %v4184 = vsel %vm4019, %v4183, %v4179
        %v4185 = vlaneseq
        %v4186 = vshrl.u32 %v4185, 7
        %v4187 = vsub.s32 %v4021, %v4186
        %v4188 = vrot.slane %v3850, %v4187
        %v4189 = vsel %vm4026, %v4188, %v4184
        %v4190 = vlaneseq
        %v4191 = vshrl.u32 %v4190, 7
        %v4192 = vsub.s32 %v4028, %v4191
        %v4193 = vrot.slane %v3851, %v4192
        %v4194 = vsel %vm4033, %v4193, %v4189
        %v4195 = vlaneseq
        %v4196 = vshrl.u32 %v4195, 7
        %v4197 = vsub.s32 %v4035, %v4196
        %v4198 = vrot.slane %v3852, %v4197
        %v4199 = vsel %vm4040, %v4198, %v4194
        %v4200 = vlaneseq
        %v4201 = vshrl.u32 %v4200, 7
        %v4202 = vsub.s32 %v216, %v4201
        %v4203 = vrot.slane %v3853, %v4202
        %v4204 = vlaneseq
        %v4205 = vshrl.u32 %v4204, 7
        %v4206 = vsub.s32 %v3937, %v4205
        %v4207 = vrot.slane %v3854, %v4206
        %v4208 = vsel %vm3942, %v4207, %v4203
        %v4209 = vlaneseq
        %v4210 = vshrl.u32 %v4209, 7
        %v4211 = vsub.s32 %v3944, %v4210
        %v4212 = vrot.slane %v3855, %v4211
        %v4213 = vsel %vm3949, %v4212, %v4208
        %v4214 = vlaneseq
        %v4215 = vshrl.u32 %v4214, 7
        %v4216 = vsub.s32 %v3951, %v4215
        %v4217 = vrot.slane %v3856, %v4216
        %v4218 = vsel %vm3956, %v4217, %v4213
        %v4219 = vlaneseq
        %v4220 = vshrl.u32 %v4219, 7
        %v4221 = vsub.s32 %v3958, %v4220
        %v4222 = vrot.slane %v3857, %v4221
        %v4223 = vsel %vm3963, %v4222, %v4218
        %v4224 = vlaneseq
        %v4225 = vshrl.u32 %v4224, 7
        %v4226 = vsub.s32 %v3965, %v4225
        %v4227 = vrot.slane %v3858, %v4226
        %v4228 = vsel %vm3970, %v4227, %v4223
        %v4229 = vlaneseq
        %v4230 = vshrl.u32 %v4229, 7
        %v4231 = vsub.s32 %v3972, %v4230
        %v4232 = vrot.slane %v3859, %v4231
        %v4233 = vsel %vm3977, %v4232, %v4228
        %v4234 = vlaneseq
        %v4235 = vshrl.u32 %v4234, 7
        %v4236 = vsub.s32 %v3979, %v4235
        %v4237 = vrot.slane %v3860, %v4236
        %v4238 = vsel %vm3984, %v4237, %v4233
        %v4239 = vlaneseq
        %v4240 = vshrl.u32 %v4239, 7
        %v4241 = vsub.s32 %v3986, %v4240
        %v4242 = vrot.slane %v3861, %v4241
        %v4243 = vsel %vm3991, %v4242, %v4238
        %v4244 = vlaneseq
        %v4245 = vshrl.u32 %v4244, 7
        %v4246 = vsub.s32 %v3993, %v4245
        %v4247 = vrot.slane %v3862, %v4246
        %v4248 = vsel %vm3998, %v4247, %v4243
        %v4249 = vlaneseq
        %v4250 = vshrl.u32 %v4249, 7
        %v4251 = vsub.s32 %v4000, %v4250
        %v4252 = vrot.slane %v3863, %v4251
        %v4253 = vsel %vm4005, %v4252, %v4248
        %v4254 = vlaneseq
        %v4255 = vshrl.u32 %v4254, 7
        %v4256 = vsub.s32 %v4007, %v4255
        %v4257 = vrot.slane %v3864, %v4256
        %v4258 = vsel %vm4012, %v4257, %v4253
        %v4259 = vlaneseq
        %v4260 = vshrl.u32 %v4259, 7
        %v4261 = vsub.s32 %v4014, %v4260
        %v4262 = vrot.slane %v3865, %v4261
        %v4263 = vsel %vm4019, %v4262, %v4258
        %v4264 = vlaneseq
        %v4265 = vshrl.u32 %v4264, 7
        %v4266 = vsub.s32 %v4021, %v4265
        %v4267 = vrot.slane %v3866, %v4266
        %v4268 = vsel %vm4026, %v4267, %v4263
        %v4269 = vlaneseq
        %v4270 = vshrl.u32 %v4269, 7
        %v4271 = vsub.s32 %v4028, %v4270
        %v4272 = vrot.slane %v3867, %v4271
        %v4273 = vsel %vm4033, %v4272, %v4268
        %v4274 = vlaneseq
        %v4275 = vshrl.u32 %v4274, 7
        %v4276 = vsub.s32 %v4035, %v4275
        %v4277 = vrot.slane %v3868, %v4276
        %v4278 = vsel %vm4040, %v4277, %v4273
        %v4279 = vlaneseq
        %v4280 = vshrl.u32 %v4279, 7
        %v4281 = vsub.s32 %v216, %v4280
        %v4282 = vrot.slane %v3869, %v4281
        %v4283 = vlaneseq
        %v4284 = vshrl.u32 %v4283, 7
        %v4285 = vsub.s32 %v3937, %v4284
        %v4286 = vrot.slane %v3870, %v4285
        %v4287 = vsel %vm3942, %v4286, %v4282
        %v4288 = vlaneseq
        %v4289 = vshrl.u32 %v4288, 7
        %v4290 = vsub.s32 %v3944, %v4289
        %v4291 = vrot.slane %v3871, %v4290
        %v4292 = vsel %vm3949, %v4291, %v4287
        %v4293 = vlaneseq
        %v4294 = vshrl.u32 %v4293, 7
        %v4295 = vsub.s32 %v3951, %v4294
        %v4296 = vrot.slane %v3872, %v4295
        %v4297 = vsel %vm3956, %v4296, %v4292
        %v4298 = vlaneseq
        %v4299 = vshrl.u32 %v4298, 7
        %v4300 = vsub.s32 %v3958, %v4299
        %v4301 = vrot.slane %v3873, %v4300
        %v4302 = vsel %vm3963, %v4301, %v4297
        %v4303 = vlaneseq
        %v4304 = vshrl.u32 %v4303, 7
        %v4305 = vsub.s32 %v3965, %v4304
        %v4306 = vrot.slane %v3874, %v4305
        %v4307 = vsel %vm3970, %v4306, %v4302
        %v4308 = vlaneseq
        %v4309 = vshrl.u32 %v4308, 7
        %v4310 = vsub.s32 %v3972, %v4309
        %v4311 = vrot.slane %v3875, %v4310
        %v4312 = vsel %vm3977, %v4311, %v4307
        %v4313 = vlaneseq
        %v4314 = vshrl.u32 %v4313, 7
        %v4315 = vsub.s32 %v3979, %v4314
        %v4316 = vrot.slane %v3876, %v4315
        %v4317 = vsel %vm3984, %v4316, %v4312
        %v4318 = vlaneseq
        %v4319 = vshrl.u32 %v4318, 7
        %v4320 = vsub.s32 %v3986, %v4319
        %v4321 = vrot.slane %v3877, %v4320
        %v4322 = vsel %vm3991, %v4321, %v4317
        %v4323 = vlaneseq
        %v4324 = vshrl.u32 %v4323, 7
        %v4325 = vsub.s32 %v3993, %v4324
        %v4326 = vrot.slane %v3878, %v4325
        %v4327 = vsel %vm3998, %v4326, %v4322
        %v4328 = vlaneseq
        %v4329 = vshrl.u32 %v4328, 7
        %v4330 = vsub.s32 %v4000, %v4329
        %v4331 = vrot.slane %v3879, %v4330
        %v4332 = vsel %vm4005, %v4331, %v4327
        %v4333 = vlaneseq
        %v4334 = vshrl.u32 %v4333, 7
        %v4335 = vsub.s32 %v4007, %v4334
        %v4336 = vrot.slane %v3880, %v4335
        %v4337 = vsel %vm4012, %v4336, %v4332
        %v4338 = vlaneseq
        %v4339 = vshrl.u32 %v4338, 7
        %v4340 = vsub.s32 %v4014, %v4339
        %v4341 = vrot.slane %v3881, %v4340
        %v4342 = vsel %vm4019, %v4341, %v4337
        %v4343 = vlaneseq
        %v4344 = vshrl.u32 %v4343, 7
        %v4345 = vsub.s32 %v4021, %v4344
        %v4346 = vrot.slane %v3882, %v4345
        %v4347 = vsel %vm4026, %v4346, %v4342
        %v4348 = vlaneseq
        %v4349 = vshrl.u32 %v4348, 7
        %v4350 = vsub.s32 %v4028, %v4349
        %v4351 = vrot.slane %v3883, %v4350
        %v4352 = vsel %vm4033, %v4351, %v4347
        %v4353 = vlaneseq
        %v4354 = vshrl.u32 %v4353, 7
        %v4355 = vsub.s32 %v4035, %v4354
        %v4356 = vrot.slane %v3884, %v4355
        %v4357 = vsel %vm4040, %v4356, %v4352
        %v4358 = vlaneseq
        %v4359 = vshrl.u32 %v4358, 7
        %v4360 = vsub.s32 %v216, %v4359
        %v4361 = vrot.slane %v3885, %v4360
        %v4362 = vlaneseq
        %v4363 = vshrl.u32 %v4362, 7
        %v4364 = vsub.s32 %v3937, %v4363
        %v4365 = vrot.slane %v3886, %v4364
        %v4366 = vsel %vm3942, %v4365, %v4361
        %v4367 = vlaneseq
        %v4368 = vshrl.u32 %v4367, 7
        %v4369 = vsub.s32 %v3944, %v4368
        %v4370 = vrot.slane %v3887, %v4369
        %v4371 = vsel %vm3949, %v4370, %v4366
        %v4372 = vlaneseq
        %v4373 = vshrl.u32 %v4372, 7
        %v4374 = vsub.s32 %v3951, %v4373
        %v4375 = vrot.slane %v3888, %v4374
        %v4376 = vsel %vm3956, %v4375, %v4371
        %v4377 = vlaneseq
        %v4378 = vshrl.u32 %v4377, 7
        %v4379 = vsub.s32 %v3958, %v4378
        %v4380 = vrot.slane %v3889, %v4379
        %v4381 = vsel %vm3963, %v4380, %v4376
        %v4382 = vlaneseq
        %v4383 = vshrl.u32 %v4382, 7
        %v4384 = vsub.s32 %v3965, %v4383
        %v4385 = vrot.slane %v3890, %v4384
        %v4386 = vsel %vm3970, %v4385, %v4381
        %v4387 = vlaneseq
        %v4388 = vshrl.u32 %v4387, 7
        %v4389 = vsub.s32 %v3972, %v4388
        %v4390 = vrot.slane %v3891, %v4389
        %v4391 = vsel %vm3977, %v4390, %v4386
        %v4392 = vlaneseq
        %v4393 = vshrl.u32 %v4392, 7
        %v4394 = vsub.s32 %v3979, %v4393
        %v4395 = vrot.slane %v3892, %v4394
        %v4396 = vsel %vm3984, %v4395, %v4391
        %v4397 = vlaneseq
        %v4398 = vshrl.u32 %v4397, 7
        %v4399 = vsub.s32 %v3986, %v4398
        %v4400 = vrot.slane %v3893, %v4399
        %v4401 = vsel %vm3991, %v4400, %v4396
        %v4402 = vlaneseq
        %v4403 = vshrl.u32 %v4402, 7
        %v4404 = vsub.s32 %v3993, %v4403
        %v4405 = vrot.slane %v3894, %v4404
        %v4406 = vsel %vm3998, %v4405, %v4401
        %v4407 = vlaneseq
        %v4408 = vshrl.u32 %v4407, 7
        %v4409 = vsub.s32 %v4000, %v4408
        %v4410 = vrot.slane %v3895, %v4409
        %v4411 = vsel %vm4005, %v4410, %v4406
        %v4412 = vlaneseq
        %v4413 = vshrl.u32 %v4412, 7
        %v4414 = vsub.s32 %v4007, %v4413
        %v4415 = vrot.slane %v3896, %v4414
        %v4416 = vsel %vm4012, %v4415, %v4411
        %v4417 = vlaneseq
        %v4418 = vshrl.u32 %v4417, 7
        %v4419 = vsub.s32 %v4014, %v4418
        %v4420 = vrot.slane %v3897, %v4419
        %v4421 = vsel %vm4019, %v4420, %v4416
        %v4422 = vlaneseq
        %v4423 = vshrl.u32 %v4422, 7
        %v4424 = vsub.s32 %v4021, %v4423
        %v4425 = vrot.slane %v3898, %v4424
        %v4426 = vsel %vm4026, %v4425, %v4421
        %v4427 = vlaneseq
        %v4428 = vshrl.u32 %v4427, 7
        %v4429 = vsub.s32 %v4028, %v4428
        %v4430 = vrot.slane %v3899, %v4429
        %v4431 = vsel %vm4033, %v4430, %v4426
        %v4432 = vlaneseq
        %v4433 = vshrl.u32 %v4432, 7
        %v4434 = vsub.s32 %v4035, %v4433
        %v4435 = vrot.slane %v3900, %v4434
        %v4436 = vsel %vm4040, %v4435, %v4431
        %v4437 = vlaneseq
        %v4438 = vshrl.u32 %v4437, 7
        %v4439 = vsub.s32 %v216, %v4438
        %v4440 = vrot.slane %v3901, %v4439
        %v4441 = vlaneseq
        %v4442 = vshrl.u32 %v4441, 7
        %v4443 = vsub.s32 %v3937, %v4442
        %v4444 = vrot.slane %v3902, %v4443
        %v4445 = vsel %vm3942, %v4444, %v4440
        %v4446 = vlaneseq
        %v4447 = vshrl.u32 %v4446, 7
        %v4448 = vsub.s32 %v3944, %v4447
        %v4449 = vrot.slane %v3903, %v4448
        %v4450 = vsel %vm3949, %v4449, %v4445
        %v4451 = vlaneseq
        %v4452 = vshrl.u32 %v4451, 7
        %v4453 = vsub.s32 %v3951, %v4452
        %v4454 = vrot.slane %v3904, %v4453
        %v4455 = vsel %vm3956, %v4454, %v4450
        %v4456 = vlaneseq
        %v4457 = vshrl.u32 %v4456, 7
        %v4458 = vsub.s32 %v3958, %v4457
        %v4459 = vrot.slane %v3905, %v4458
        %v4460 = vsel %vm3963, %v4459, %v4455
        %v4461 = vlaneseq
        %v4462 = vshrl.u32 %v4461, 7
        %v4463 = vsub.s32 %v3965, %v4462
        %v4464 = vrot.slane %v3906, %v4463
        %v4465 = vsel %vm3970, %v4464, %v4460
        %v4466 = vlaneseq
        %v4467 = vshrl.u32 %v4466, 7
        %v4468 = vsub.s32 %v3972, %v4467
        %v4469 = vrot.slane %v3907, %v4468
        %v4470 = vsel %vm3977, %v4469, %v4465
        %v4471 = vlaneseq
        %v4472 = vshrl.u32 %v4471, 7
        %v4473 = vsub.s32 %v3979, %v4472
        %v4474 = vrot.slane %v3908, %v4473
        %v4475 = vsel %vm3984, %v4474, %v4470
        %v4476 = vlaneseq
        %v4477 = vshrl.u32 %v4476, 7
        %v4478 = vsub.s32 %v3986, %v4477
        %v4479 = vrot.slane %v3909, %v4478
        %v4480 = vsel %vm3991, %v4479, %v4475
        %v4481 = vlaneseq
        %v4482 = vshrl.u32 %v4481, 7
        %v4483 = vsub.s32 %v3993, %v4482
        %v4484 = vrot.slane %v3910, %v4483
        %v4485 = vsel %vm3998, %v4484, %v4480
        %v4486 = vlaneseq
        %v4487 = vshrl.u32 %v4486, 7
        %v4488 = vsub.s32 %v4000, %v4487
        %v4489 = vrot.slane %v3911, %v4488
        %v4490 = vsel %vm4005, %v4489, %v4485
        %v4491 = vlaneseq
        %v4492 = vshrl.u32 %v4491, 7
        %v4493 = vsub.s32 %v4007, %v4492
        %v4494 = vrot.slane %v3912, %v4493
        %v4495 = vsel %vm4012, %v4494, %v4490
        %v4496 = vlaneseq
        %v4497 = vshrl.u32 %v4496, 7
        %v4498 = vsub.s32 %v4014, %v4497
        %v4499 = vrot.slane %v3913, %v4498
        %v4500 = vsel %vm4019, %v4499, %v4495
        %v4501 = vlaneseq
        %v4502 = vshrl.u32 %v4501, 7
        %v4503 = vsub.s32 %v4021, %v4502
        %v4504 = vrot.slane %v3914, %v4503
        %v4505 = vsel %vm4026, %v4504, %v4500
        %v4506 = vlaneseq
        %v4507 = vshrl.u32 %v4506, 7
        %v4508 = vsub.s32 %v4028, %v4507
        %v4509 = vrot.slane %v3915, %v4508
        %v4510 = vsel %vm4033, %v4509, %v4505
        %v4511 = vlaneseq
        %v4512 = vshrl.u32 %v4511, 7
        %v4513 = vsub.s32 %v4035, %v4512
        %v4514 = vrot.slane %v3916, %v4513
        %v4515 = vsel %vm4040, %v4514, %v4510
        %v4516 = vlaneseq
        %v4517 = vshrl.u32 %v4516, 7
        %v4518 = vsub.s32 %v216, %v4517
        %v4519 = vrot.slane %v3917, %v4518
        %v4520 = vlaneseq
        %v4521 = vshrl.u32 %v4520, 7
        %v4522 = vsub.s32 %v3937, %v4521
        %v4523 = vrot.slane %v3918, %v4522
        %v4524 = vsel %vm3942, %v4523, %v4519
        %v4525 = vlaneseq
        %v4526 = vshrl.u32 %v4525, 7
        %v4527 = vsub.s32 %v3944, %v4526
        %v4528 = vrot.slane %v3919, %v4527
        %v4529 = vsel %vm3949, %v4528, %v4524
        %v4530 = vlaneseq
        %v4531 = vshrl.u32 %v4530, 7
        %v4532 = vsub.s32 %v3951, %v4531
        %v4533 = vrot.slane %v3920, %v4532
        %v4534 = vsel %vm3956, %v4533, %v4529
        %v4535 = vlaneseq
        %v4536 = vshrl.u32 %v4535, 7
        %v4537 = vsub.s32 %v3958, %v4536
        %v4538 = vrot.slane %v3921, %v4537
        %v4539 = vsel %vm3963, %v4538, %v4534
        %v4540 = vlaneseq
        %v4541 = vshrl.u32 %v4540, 7
        %v4542 = vsub.s32 %v3965, %v4541
        %v4543 = vrot.slane %v3922, %v4542
        %v4544 = vsel %vm3970, %v4543, %v4539
        %v4545 = vlaneseq
        %v4546 = vshrl.u32 %v4545, 7
        %v4547 = vsub.s32 %v3972, %v4546
        %v4548 = vrot.slane %v3923, %v4547
        %v4549 = vsel %vm3977, %v4548, %v4544
        %v4550 = vlaneseq
        %v4551 = vshrl.u32 %v4550, 7
        %v4552 = vsub.s32 %v3979, %v4551
        %v4553 = vrot.slane %v3924, %v4552
        %v4554 = vsel %vm3984, %v4553, %v4549
        %v4555 = vlaneseq
        %v4556 = vshrl.u32 %v4555, 7
        %v4557 = vsub.s32 %v3986, %v4556
        %v4558 = vrot.slane %v3925, %v4557
        %v4559 = vsel %vm3991, %v4558, %v4554
        %v4560 = vlaneseq
        %v4561 = vshrl.u32 %v4560, 7
        %v4562 = vsub.s32 %v3993, %v4561
        %v4563 = vrot.slane %v3926, %v4562
        %v4564 = vsel %vm3998, %v4563, %v4559
        %v4565 = vlaneseq
        %v4566 = vshrl.u32 %v4565, 7
        %v4567 = vsub.s32 %v4000, %v4566
        %v4568 = vrot.slane %v3927, %v4567
        %v4569 = vsel %vm4005, %v4568, %v4564
        %v4570 = vlaneseq
        %v4571 = vshrl.u32 %v4570, 7
        %v4572 = vsub.s32 %v4007, %v4571
        %v4573 = vrot.slane %v3928, %v4572
        %v4574 = vsel %vm4012, %v4573, %v4569
        %v4575 = vlaneseq
        %v4576 = vshrl.u32 %v4575, 7
        %v4577 = vsub.s32 %v4014, %v4576
        %v4578 = vrot.slane %v3929, %v4577
        %v4579 = vsel %vm4019, %v4578, %v4574
        %v4580 = vlaneseq
        %v4581 = vshrl.u32 %v4580, 7
        %v4582 = vsub.s32 %v4021, %v4581
        %v4583 = vrot.slane %v3930, %v4582
        %v4584 = vsel %vm4026, %v4583, %v4579
        %v4585 = vlaneseq
        %v4586 = vshrl.u32 %v4585, 7
        %v4587 = vsub.s32 %v4028, %v4586
        %v4588 = vrot.slane %v3931, %v4587
        %v4589 = vsel %vm4033, %v4588, %v4584
        %v4590 = vlaneseq
        %v4591 = vshrl.u32 %v4590, 7
        %v4592 = vsub.s32 %v4035, %v4591
        %v4593 = vrot.slane %v3932, %v4592
        %v4594 = vsel %vm4040, %v4593, %v4589
        %vm4595 = vcmask 1041409
        %v4596 = vsel %vm4595, %v4120, %v4041
        %vm4597 = vcmask 1042434
        %v4598 = vsel %vm4597, %v4199, %v4596
        %vm4599 = vcmask 1043459
        %v4600 = vsel %vm4599, %v4278, %v4598
        %vm4601 = vcmask 1044484
        %v4602 = vsel %vm4601, %v4357, %v4600
        %vm4603 = vcmask 1045509
        %v4604 = vsel %vm4603, %v4436, %v4602
        %vm4605 = vcmask 1046534
        %v4606 = vsel %vm4605, %v4515, %v4604
        %vm4607 = vcmask 1047559
        %v4608 = vsel %vm4607, %v4594, %v4606
        %vm4609 = vcmp.ne.s32.totalorder %v4608, 0
        %vm4610 = vmand %vm3675, %vm4609
        %vm4611 = vmxor %vm3547, 1
        %vm4612 = vmxor %vm3548, 1
        %vm4613 = vmxor %vm3549, 1
        %vm4614 = vmxor %vm3550, 1
        %vm4615 = vmxor %vm3551, 1
        %vm4616 = vmxor %vm3552, 1
        %vm4617 = vmxor %vm3553, 1
        %vm4618 = vmxor %vm3554, 1
        %vm4619 = vmxor %vm3555, 1
        %vm4620 = vmxor %vm3556, 1
        %vm4621 = vmxor %vm3557, 1
        %vm4622 = vmxor %vm3558, 1
        %vm4623 = vmxor %vm3559, 1
        %vm4624 = vmxor %vm3560, 1
        %vm4625 = vmxor %vm3561, 1
        %vm4626 = vmxor %vm3562, 1
        %vm4627 = vmxor %vm3563, 1
        %vm4628 = vmxor %vm3564, 1
        %vm4629 = vmxor %vm3565, 1
        %vm4630 = vmxor %vm3566, 1
        %vm4631 = vmxor %vm3567, 1
        %vm4632 = vmxor %vm3568, 1
        %vm4633 = vmxor %vm3569, 1
        %vm4634 = vmxor %vm3570, 1
        %vm4635 = vmxor %vm3571, 1
        %vm4636 = vmxor %vm3572, 1
        %vm4637 = vmxor %vm3573, 1
        %vm4638 = vmxor %vm3574, 1
        %vm4639 = vmxor %vm3575, 1
        %vm4640 = vmxor %vm3576, 1
        %vm4641 = vmxor %vm3577, 1
        %vm4642 = vmxor %vm3578, 1
        %vm4643 = vmxor %vm3579, 1
        %vm4644 = vmxor %vm3580, 1
        %vm4645 = vmxor %vm3581, 1
        %vm4646 = vmxor %vm3582, 1
        %vm4647 = vmxor %vm3583, 1
        %vm4648 = vmxor %vm3584, 1
        %vm4649 = vmxor %vm3585, 1
        %vm4650 = vmxor %vm3586, 1
        %vm4651 = vmxor %vm3587, 1
        %vm4652 = vmxor %vm3588, 1
        %vm4653 = vmxor %vm3589, 1
        %vm4654 = vmxor %vm3590, 1
        %vm4655 = vmxor %vm3591, 1
        %vm4656 = vmxor %vm3592, 1
        %vm4657 = vmxor %vm3593, 1
        %vm4658 = vmxor %vm3594, 1
        %vm4659 = vmxor %vm3595, 1
        %vm4660 = vmxor %vm3596, 1
        %vm4661 = vmxor %vm3597, 1
        %vm4662 = vmxor %vm3598, 1
        %vm4663 = vmxor %vm3599, 1
        %vm4664 = vmxor %vm3600, 1
        %vm4665 = vmxor %vm3601, 1
        %vm4666 = vmxor %vm3602, 1
        %vm4667 = vmxor %vm3603, 1
        %vm4668 = vmxor %vm3604, 1
        %vm4669 = vmxor %vm3605, 1
        %vm4670 = vmxor %vm3606, 1
        %vm4671 = vmxor %vm3607, 1
        %vm4672 = vmxor %vm3608, 1
        %vm4673 = vmxor %vm3609, 1
        %vm4674 = vmxor %vm3610, 1
        %vm4675 = vmxor %vm3611, 1
        %vm4676 = vmxor %vm3612, 1
        %vm4677 = vmxor %vm3613, 1
        %vm4678 = vmxor %vm3614, 1
        %vm4679 = vmxor %vm3615, 1
        %vm4680 = vmxor %vm3616, 1
        %vm4681 = vmxor %vm3617, 1
        %vm4682 = vmxor %vm3618, 1
        %vm4683 = vmxor %vm3619, 1
        %vm4684 = vmxor %vm3620, 1
        %vm4685 = vmxor %vm3621, 1
        %vm4686 = vmxor %vm3622, 1
        %vm4687 = vmxor %vm3623, 1
        %vm4688 = vmxor %vm3624, 1
        %vm4689 = vmxor %vm3625, 1
        %vm4690 = vmxor %vm3626, 1
        %vm4691 = vmxor %vm3627, 1
        %vm4692 = vmxor %vm3628, 1
        %vm4693 = vmxor %vm3629, 1
        %vm4694 = vmxor %vm3630, 1
        %vm4695 = vmxor %vm3631, 1
        %vm4696 = vmxor %vm3632, 1
        %vm4697 = vmxor %vm3633, 1
        %vm4698 = vmxor %vm3634, 1
        %vm4699 = vmxor %vm3635, 1
        %vm4700 = vmxor %vm3636, 1
        %vm4701 = vmxor %vm3637, 1
        %vm4702 = vmxor %vm3638, 1
        %vm4703 = vmxor %vm3639, 1
        %vm4704 = vmxor %vm3640, 1
        %vm4705 = vmxor %vm3641, 1
        %vm4706 = vmxor %vm3642, 1
        %vm4707 = vmxor %vm3643, 1
        %vm4708 = vmxor %vm3644, 1
        %vm4709 = vmxor %vm3645, 1
        %vm4710 = vmxor %vm3646, 1
        %vm4711 = vmxor %vm3647, 1
        %vm4712 = vmxor %vm3648, 1
        %vm4713 = vmxor %vm3649, 1
        %vm4714 = vmxor %vm3650, 1
        %vm4715 = vmxor %vm3651, 1
        %vm4716 = vmxor %vm3652, 1
        %vm4717 = vmxor %vm3653, 1
        %vm4718 = vmxor %vm3654, 1
        %vm4719 = vmxor %vm3655, 1
        %vm4720 = vmxor %vm3656, 1
        %vm4721 = vmxor %vm3657, 1
        %vm4722 = vmxor %vm3658, 1
        %vm4723 = vmxor %vm3659, 1
        %vm4724 = vmxor %vm3660, 1
        %vm4725 = vmxor %vm3661, 1
        %vm4726 = vmxor %vm3662, 1
        %vm4727 = vmxor %vm3663, 1
        %vm4728 = vmxor %vm3664, 1
        %vm4729 = vmxor %vm3665, 1
        %vm4730 = vmxor %vm3666, 1
        %vm4731 = vmxor %vm3667, 1
        %vm4732 = vmxor %vm3668, 1
        %vm4733 = vmxor %vm3669, 1
        %vm4734 = vmxor %vm3670, 1
        %vm4735 = vmxor %vm3671, 1
        %vm4736 = vmxor %vm3672, 1
        %vm4737 = vmxor %vm3673, 1
        %vm4738 = vmxor %vm3674, 1
        %v4739 = vsel %vm4611, 1, 0
        %v4740 = vsel %vm4612, 1, 0
        %v4741 = vsel %vm4613, 1, 0
        %v4742 = vsel %vm4614, 1, 0
        %v4743 = vsel %vm4615, 1, 0
        %v4744 = vsel %vm4616, 1, 0
        %v4745 = vsel %vm4617, 1, 0
        %v4746 = vsel %vm4618, 1, 0
        %v4747 = vsel %vm4619, 1, 0
        %v4748 = vsel %vm4620, 1, 0
        %v4749 = vsel %vm4621, 1, 0
        %v4750 = vsel %vm4622, 1, 0
        %v4751 = vsel %vm4623, 1, 0
        %v4752 = vsel %vm4624, 1, 0
        %v4753 = vsel %vm4625, 1, 0
        %v4754 = vsel %vm4626, 1, 0
        %v4755 = vsel %vm4627, 1, 0
        %v4756 = vsel %vm4628, 1, 0
        %v4757 = vsel %vm4629, 1, 0
        %v4758 = vsel %vm4630, 1, 0
        %v4759 = vsel %vm4631, 1, 0
        %v4760 = vsel %vm4632, 1, 0
        %v4761 = vsel %vm4633, 1, 0
        %v4762 = vsel %vm4634, 1, 0
        %v4763 = vsel %vm4635, 1, 0
        %v4764 = vsel %vm4636, 1, 0
        %v4765 = vsel %vm4637, 1, 0
        %v4766 = vsel %vm4638, 1, 0
        %v4767 = vsel %vm4639, 1, 0
        %v4768 = vsel %vm4640, 1, 0
        %v4769 = vsel %vm4641, 1, 0
        %v4770 = vsel %vm4642, 1, 0
        %v4771 = vsel %vm4643, 1, 0
        %v4772 = vsel %vm4644, 1, 0
        %v4773 = vsel %vm4645, 1, 0
        %v4774 = vsel %vm4646, 1, 0
        %v4775 = vsel %vm4647, 1, 0
        %v4776 = vsel %vm4648, 1, 0
        %v4777 = vsel %vm4649, 1, 0
        %v4778 = vsel %vm4650, 1, 0
        %v4779 = vsel %vm4651, 1, 0
        %v4780 = vsel %vm4652, 1, 0
        %v4781 = vsel %vm4653, 1, 0
        %v4782 = vsel %vm4654, 1, 0
        %v4783 = vsel %vm4655, 1, 0
        %v4784 = vsel %vm4656, 1, 0
        %v4785 = vsel %vm4657, 1, 0
        %v4786 = vsel %vm4658, 1, 0
        %v4787 = vsel %vm4659, 1, 0
        %v4788 = vsel %vm4660, 1, 0
        %v4789 = vsel %vm4661, 1, 0
        %v4790 = vsel %vm4662, 1, 0
        %v4791 = vsel %vm4663, 1, 0
        %v4792 = vsel %vm4664, 1, 0
        %v4793 = vsel %vm4665, 1, 0
        %v4794 = vsel %vm4666, 1, 0
        %v4795 = vsel %vm4667, 1, 0
        %v4796 = vsel %vm4668, 1, 0
        %v4797 = vsel %vm4669, 1, 0
        %v4798 = vsel %vm4670, 1, 0
        %v4799 = vsel %vm4671, 1, 0
        %v4800 = vsel %vm4672, 1, 0
        %v4801 = vsel %vm4673, 1, 0
        %v4802 = vsel %vm4674, 1, 0
        %v4803 = vsel %vm4675, 1, 0
        %v4804 = vsel %vm4676, 1, 0
        %v4805 = vsel %vm4677, 1, 0
        %v4806 = vsel %vm4678, 1, 0
        %v4807 = vsel %vm4679, 1, 0
        %v4808 = vsel %vm4680, 1, 0
        %v4809 = vsel %vm4681, 1, 0
        %v4810 = vsel %vm4682, 1, 0
        %v4811 = vsel %vm4683, 1, 0
        %v4812 = vsel %vm4684, 1, 0
        %v4813 = vsel %vm4685, 1, 0
        %v4814 = vsel %vm4686, 1, 0
        %v4815 = vsel %vm4687, 1, 0
        %v4816 = vsel %vm4688, 1, 0
        %v4817 = vsel %vm4689, 1, 0
        %v4818 = vsel %vm4690, 1, 0
        %v4819 = vsel %vm4691, 1, 0
        %v4820 = vsel %vm4692, 1, 0
        %v4821 = vsel %vm4693, 1, 0
        %v4822 = vsel %vm4694, 1, 0
        %v4823 = vsel %vm4695, 1, 0
        %v4824 = vsel %vm4696, 1, 0
        %v4825 = vsel %vm4697, 1, 0
        %v4826 = vsel %vm4698, 1, 0
        %v4827 = vsel %vm4699, 1, 0
        %v4828 = vsel %vm4700, 1, 0
        %v4829 = vsel %vm4701, 1, 0
        %v4830 = vsel %vm4702, 1, 0
        %v4831 = vsel %vm4703, 1, 0
        %v4832 = vsel %vm4704, 1, 0
        %v4833 = vsel %vm4705, 1, 0
        %v4834 = vsel %vm4706, 1, 0
        %v4835 = vsel %vm4707, 1, 0
        %v4836 = vsel %vm4708, 1, 0
        %v4837 = vsel %vm4709, 1, 0
        %v4838 = vsel %vm4710, 1, 0
        %v4839 = vsel %vm4711, 1, 0
        %v4840 = vsel %vm4712, 1, 0
        %v4841 = vsel %vm4713, 1, 0
        %v4842 = vsel %vm4714, 1, 0
        %v4843 = vsel %vm4715, 1, 0
        %v4844 = vsel %vm4716, 1, 0
        %v4845 = vsel %vm4717, 1, 0
        %v4846 = vsel %vm4718, 1, 0
        %v4847 = vsel %vm4719, 1, 0
        %v4848 = vsel %vm4720, 1, 0
        %v4849 = vsel %vm4721, 1, 0
        %v4850 = vsel %vm4722, 1, 0
        %v4851 = vsel %vm4723, 1, 0
        %v4852 = vsel %vm4724, 1, 0
        %v4853 = vsel %vm4725, 1, 0
        %v4854 = vsel %vm4726, 1, 0
        %v4855 = vsel %vm4727, 1, 0
        %v4856 = vsel %vm4728, 1, 0
        %v4857 = vsel %vm4729, 1, 0
        %v4858 = vsel %vm4730, 1, 0
        %v4859 = vsel %vm4731, 1, 0
        %v4860 = vsel %vm4732, 1, 0
        %v4861 = vsel %vm4733, 1, 0
        %v4862 = vsel %vm4734, 1, 0
        %v4863 = vsel %vm4735, 1, 0
        %v4864 = vsel %vm4736, 1, 0
        %v4865 = vsel %vm4737, 1, 0
        %v4866 = vsel %vm4738, 1, 0
        %v4867 = vlaneseq
        %v4868 = vshrl.u32 %v4867, 7
        %v4869 = vsub.s32 %v216, %v4868
        %v4870 = vrot.slane %v4739, %v4869
        %v4871 = vlaneseq
        %v4872 = vshrl.u32 %v4871, 7
        %v4873 = vsub.s32 %v3937, %v4872
        %v4874 = vrot.slane %v4740, %v4873
        %v4875 = vsel %vm3942, %v4874, %v4870
        %v4876 = vlaneseq
        %v4877 = vshrl.u32 %v4876, 7
        %v4878 = vsub.s32 %v3944, %v4877
        %v4879 = vrot.slane %v4741, %v4878
        %v4880 = vsel %vm3949, %v4879, %v4875
        %v4881 = vlaneseq
        %v4882 = vshrl.u32 %v4881, 7
        %v4883 = vsub.s32 %v3951, %v4882
        %v4884 = vrot.slane %v4742, %v4883
        %v4885 = vsel %vm3956, %v4884, %v4880
        %v4886 = vlaneseq
        %v4887 = vshrl.u32 %v4886, 7
        %v4888 = vsub.s32 %v3958, %v4887
        %v4889 = vrot.slane %v4743, %v4888
        %v4890 = vsel %vm3963, %v4889, %v4885
        %v4891 = vlaneseq
        %v4892 = vshrl.u32 %v4891, 7
        %v4893 = vsub.s32 %v3965, %v4892
        %v4894 = vrot.slane %v4744, %v4893
        %v4895 = vsel %vm3970, %v4894, %v4890
        %v4896 = vlaneseq
        %v4897 = vshrl.u32 %v4896, 7
        %v4898 = vsub.s32 %v3972, %v4897
        %v4899 = vrot.slane %v4745, %v4898
        %v4900 = vsel %vm3977, %v4899, %v4895
        %v4901 = vlaneseq
        %v4902 = vshrl.u32 %v4901, 7
        %v4903 = vsub.s32 %v3979, %v4902
        %v4904 = vrot.slane %v4746, %v4903
        %v4905 = vsel %vm3984, %v4904, %v4900
        %v4906 = vlaneseq
        %v4907 = vshrl.u32 %v4906, 7
        %v4908 = vsub.s32 %v3986, %v4907
        %v4909 = vrot.slane %v4747, %v4908
        %v4910 = vsel %vm3991, %v4909, %v4905
        %v4911 = vlaneseq
        %v4912 = vshrl.u32 %v4911, 7
        %v4913 = vsub.s32 %v3993, %v4912
        %v4914 = vrot.slane %v4748, %v4913
        %v4915 = vsel %vm3998, %v4914, %v4910
        %v4916 = vlaneseq
        %v4917 = vshrl.u32 %v4916, 7
        %v4918 = vsub.s32 %v4000, %v4917
        %v4919 = vrot.slane %v4749, %v4918
        %v4920 = vsel %vm4005, %v4919, %v4915
        %v4921 = vlaneseq
        %v4922 = vshrl.u32 %v4921, 7
        %v4923 = vsub.s32 %v4007, %v4922
        %v4924 = vrot.slane %v4750, %v4923
        %v4925 = vsel %vm4012, %v4924, %v4920
        %v4926 = vlaneseq
        %v4927 = vshrl.u32 %v4926, 7
        %v4928 = vsub.s32 %v4014, %v4927
        %v4929 = vrot.slane %v4751, %v4928
        %v4930 = vsel %vm4019, %v4929, %v4925
        %v4931 = vlaneseq
        %v4932 = vshrl.u32 %v4931, 7
        %v4933 = vsub.s32 %v4021, %v4932
        %v4934 = vrot.slane %v4752, %v4933
        %v4935 = vsel %vm4026, %v4934, %v4930
        %v4936 = vlaneseq
        %v4937 = vshrl.u32 %v4936, 7
        %v4938 = vsub.s32 %v4028, %v4937
        %v4939 = vrot.slane %v4753, %v4938
        %v4940 = vsel %vm4033, %v4939, %v4935
        %v4941 = vlaneseq
        %v4942 = vshrl.u32 %v4941, 7
        %v4943 = vsub.s32 %v4035, %v4942
        %v4944 = vrot.slane %v4754, %v4943
        %v4945 = vsel %vm4040, %v4944, %v4940
        %v4946 = vlaneseq
        %v4947 = vshrl.u32 %v4946, 7
        %v4948 = vsub.s32 %v216, %v4947
        %v4949 = vrot.slane %v4755, %v4948
        %v4950 = vlaneseq
        %v4951 = vshrl.u32 %v4950, 7
        %v4952 = vsub.s32 %v3937, %v4951
        %v4953 = vrot.slane %v4756, %v4952
        %v4954 = vsel %vm3942, %v4953, %v4949
        %v4955 = vlaneseq
        %v4956 = vshrl.u32 %v4955, 7
        %v4957 = vsub.s32 %v3944, %v4956
        %v4958 = vrot.slane %v4757, %v4957
        %v4959 = vsel %vm3949, %v4958, %v4954
        %v4960 = vlaneseq
        %v4961 = vshrl.u32 %v4960, 7
        %v4962 = vsub.s32 %v3951, %v4961
        %v4963 = vrot.slane %v4758, %v4962
        %v4964 = vsel %vm3956, %v4963, %v4959
        %v4965 = vlaneseq
        %v4966 = vshrl.u32 %v4965, 7
        %v4967 = vsub.s32 %v3958, %v4966
        %v4968 = vrot.slane %v4759, %v4967
        %v4969 = vsel %vm3963, %v4968, %v4964
        %v4970 = vlaneseq
        %v4971 = vshrl.u32 %v4970, 7
        %v4972 = vsub.s32 %v3965, %v4971
        %v4973 = vrot.slane %v4760, %v4972
        %v4974 = vsel %vm3970, %v4973, %v4969
        %v4975 = vlaneseq
        %v4976 = vshrl.u32 %v4975, 7
        %v4977 = vsub.s32 %v3972, %v4976
        %v4978 = vrot.slane %v4761, %v4977
        %v4979 = vsel %vm3977, %v4978, %v4974
        %v4980 = vlaneseq
        %v4981 = vshrl.u32 %v4980, 7
        %v4982 = vsub.s32 %v3979, %v4981
        %v4983 = vrot.slane %v4762, %v4982
        %v4984 = vsel %vm3984, %v4983, %v4979
        %v4985 = vlaneseq
        %v4986 = vshrl.u32 %v4985, 7
        %v4987 = vsub.s32 %v3986, %v4986
        %v4988 = vrot.slane %v4763, %v4987
        %v4989 = vsel %vm3991, %v4988, %v4984
        %v4990 = vlaneseq
        %v4991 = vshrl.u32 %v4990, 7
        %v4992 = vsub.s32 %v3993, %v4991
        %v4993 = vrot.slane %v4764, %v4992
        %v4994 = vsel %vm3998, %v4993, %v4989
        %v4995 = vlaneseq
        %v4996 = vshrl.u32 %v4995, 7
        %v4997 = vsub.s32 %v4000, %v4996
        %v4998 = vrot.slane %v4765, %v4997
        %v4999 = vsel %vm4005, %v4998, %v4994
        %v5000 = vlaneseq
        %v5001 = vshrl.u32 %v5000, 7
        %v5002 = vsub.s32 %v4007, %v5001
        %v5003 = vrot.slane %v4766, %v5002
        %v5004 = vsel %vm4012, %v5003, %v4999
        %v5005 = vlaneseq
        %v5006 = vshrl.u32 %v5005, 7
        %v5007 = vsub.s32 %v4014, %v5006
        %v5008 = vrot.slane %v4767, %v5007
        %v5009 = vsel %vm4019, %v5008, %v5004
        %v5010 = vlaneseq
        %v5011 = vshrl.u32 %v5010, 7
        %v5012 = vsub.s32 %v4021, %v5011
        %v5013 = vrot.slane %v4768, %v5012
        %v5014 = vsel %vm4026, %v5013, %v5009
        %v5015 = vlaneseq
        %v5016 = vshrl.u32 %v5015, 7
        %v5017 = vsub.s32 %v4028, %v5016
        %v5018 = vrot.slane %v4769, %v5017
        %v5019 = vsel %vm4033, %v5018, %v5014
        %v5020 = vlaneseq
        %v5021 = vshrl.u32 %v5020, 7
        %v5022 = vsub.s32 %v4035, %v5021
        %v5023 = vrot.slane %v4770, %v5022
        %v5024 = vsel %vm4040, %v5023, %v5019
        %v5025 = vlaneseq
        %v5026 = vshrl.u32 %v5025, 7
        %v5027 = vsub.s32 %v216, %v5026
        %v5028 = vrot.slane %v4771, %v5027
        %v5029 = vlaneseq
        %v5030 = vshrl.u32 %v5029, 7
        %v5031 = vsub.s32 %v3937, %v5030
        %v5032 = vrot.slane %v4772, %v5031
        %v5033 = vsel %vm3942, %v5032, %v5028
        %v5034 = vlaneseq
        %v5035 = vshrl.u32 %v5034, 7
        %v5036 = vsub.s32 %v3944, %v5035
        %v5037 = vrot.slane %v4773, %v5036
        %v5038 = vsel %vm3949, %v5037, %v5033
        %v5039 = vlaneseq
        %v5040 = vshrl.u32 %v5039, 7
        %v5041 = vsub.s32 %v3951, %v5040
        %v5042 = vrot.slane %v4774, %v5041
        %v5043 = vsel %vm3956, %v5042, %v5038
        %v5044 = vlaneseq
        %v5045 = vshrl.u32 %v5044, 7
        %v5046 = vsub.s32 %v3958, %v5045
        %v5047 = vrot.slane %v4775, %v5046
        %v5048 = vsel %vm3963, %v5047, %v5043
        %v5049 = vlaneseq
        %v5050 = vshrl.u32 %v5049, 7
        %v5051 = vsub.s32 %v3965, %v5050
        %v5052 = vrot.slane %v4776, %v5051
        %v5053 = vsel %vm3970, %v5052, %v5048
        %v5054 = vlaneseq
        %v5055 = vshrl.u32 %v5054, 7
        %v5056 = vsub.s32 %v3972, %v5055
        %v5057 = vrot.slane %v4777, %v5056
        %v5058 = vsel %vm3977, %v5057, %v5053
        %v5059 = vlaneseq
        %v5060 = vshrl.u32 %v5059, 7
        %v5061 = vsub.s32 %v3979, %v5060
        %v5062 = vrot.slane %v4778, %v5061
        %v5063 = vsel %vm3984, %v5062, %v5058
        %v5064 = vlaneseq
        %v5065 = vshrl.u32 %v5064, 7
        %v5066 = vsub.s32 %v3986, %v5065
        %v5067 = vrot.slane %v4779, %v5066
        %v5068 = vsel %vm3991, %v5067, %v5063
        %v5069 = vlaneseq
        %v5070 = vshrl.u32 %v5069, 7
        %v5071 = vsub.s32 %v3993, %v5070
        %v5072 = vrot.slane %v4780, %v5071
        %v5073 = vsel %vm3998, %v5072, %v5068
        %v5074 = vlaneseq
        %v5075 = vshrl.u32 %v5074, 7
        %v5076 = vsub.s32 %v4000, %v5075
        %v5077 = vrot.slane %v4781, %v5076
        %v5078 = vsel %vm4005, %v5077, %v5073
        %v5079 = vlaneseq
        %v5080 = vshrl.u32 %v5079, 7
        %v5081 = vsub.s32 %v4007, %v5080
        %v5082 = vrot.slane %v4782, %v5081
        %v5083 = vsel %vm4012, %v5082, %v5078
        %v5084 = vlaneseq
        %v5085 = vshrl.u32 %v5084, 7
        %v5086 = vsub.s32 %v4014, %v5085
        %v5087 = vrot.slane %v4783, %v5086
        %v5088 = vsel %vm4019, %v5087, %v5083
        %v5089 = vlaneseq
        %v5090 = vshrl.u32 %v5089, 7
        %v5091 = vsub.s32 %v4021, %v5090
        %v5092 = vrot.slane %v4784, %v5091
        %v5093 = vsel %vm4026, %v5092, %v5088
        %v5094 = vlaneseq
        %v5095 = vshrl.u32 %v5094, 7
        %v5096 = vsub.s32 %v4028, %v5095
        %v5097 = vrot.slane %v4785, %v5096
        %v5098 = vsel %vm4033, %v5097, %v5093
        %v5099 = vlaneseq
        %v5100 = vshrl.u32 %v5099, 7
        %v5101 = vsub.s32 %v4035, %v5100
        %v5102 = vrot.slane %v4786, %v5101
        %v5103 = vsel %vm4040, %v5102, %v5098
        %v5104 = vlaneseq
        %v5105 = vshrl.u32 %v5104, 7
        %v5106 = vsub.s32 %v216, %v5105
        %v5107 = vrot.slane %v4787, %v5106
        %v5108 = vlaneseq
        %v5109 = vshrl.u32 %v5108, 7
        %v5110 = vsub.s32 %v3937, %v5109
        %v5111 = vrot.slane %v4788, %v5110
        %v5112 = vsel %vm3942, %v5111, %v5107
        %v5113 = vlaneseq
        %v5114 = vshrl.u32 %v5113, 7
        %v5115 = vsub.s32 %v3944, %v5114
        %v5116 = vrot.slane %v4789, %v5115
        %v5117 = vsel %vm3949, %v5116, %v5112
        %v5118 = vlaneseq
        %v5119 = vshrl.u32 %v5118, 7
        %v5120 = vsub.s32 %v3951, %v5119
        %v5121 = vrot.slane %v4790, %v5120
        %v5122 = vsel %vm3956, %v5121, %v5117
        %v5123 = vlaneseq
        %v5124 = vshrl.u32 %v5123, 7
        %v5125 = vsub.s32 %v3958, %v5124
        %v5126 = vrot.slane %v4791, %v5125
        %v5127 = vsel %vm3963, %v5126, %v5122
        %v5128 = vlaneseq
        %v5129 = vshrl.u32 %v5128, 7
        %v5130 = vsub.s32 %v3965, %v5129
        %v5131 = vrot.slane %v4792, %v5130
        %v5132 = vsel %vm3970, %v5131, %v5127
        %v5133 = vlaneseq
        %v5134 = vshrl.u32 %v5133, 7
        %v5135 = vsub.s32 %v3972, %v5134
        %v5136 = vrot.slane %v4793, %v5135
        %v5137 = vsel %vm3977, %v5136, %v5132
        %v5138 = vlaneseq
        %v5139 = vshrl.u32 %v5138, 7
        %v5140 = vsub.s32 %v3979, %v5139
        %v5141 = vrot.slane %v4794, %v5140
        %v5142 = vsel %vm3984, %v5141, %v5137
        %v5143 = vlaneseq
        %v5144 = vshrl.u32 %v5143, 7
        %v5145 = vsub.s32 %v3986, %v5144
        %v5146 = vrot.slane %v4795, %v5145
        %v5147 = vsel %vm3991, %v5146, %v5142
        %v5148 = vlaneseq
        %v5149 = vshrl.u32 %v5148, 7
        %v5150 = vsub.s32 %v3993, %v5149
        %v5151 = vrot.slane %v4796, %v5150
        %v5152 = vsel %vm3998, %v5151, %v5147
        %v5153 = vlaneseq
        %v5154 = vshrl.u32 %v5153, 7
        %v5155 = vsub.s32 %v4000, %v5154
        %v5156 = vrot.slane %v4797, %v5155
        %v5157 = vsel %vm4005, %v5156, %v5152
        %v5158 = vlaneseq
        %v5159 = vshrl.u32 %v5158, 7
        %v5160 = vsub.s32 %v4007, %v5159
        %v5161 = vrot.slane %v4798, %v5160
        %v5162 = vsel %vm4012, %v5161, %v5157
        %v5163 = vlaneseq
        %v5164 = vshrl.u32 %v5163, 7
        %v5165 = vsub.s32 %v4014, %v5164
        %v5166 = vrot.slane %v4799, %v5165
        %v5167 = vsel %vm4019, %v5166, %v5162
        %v5168 = vlaneseq
        %v5169 = vshrl.u32 %v5168, 7
        %v5170 = vsub.s32 %v4021, %v5169
        %v5171 = vrot.slane %v4800, %v5170
        %v5172 = vsel %vm4026, %v5171, %v5167
        %v5173 = vlaneseq
        %v5174 = vshrl.u32 %v5173, 7
        %v5175 = vsub.s32 %v4028, %v5174
        %v5176 = vrot.slane %v4801, %v5175
        %v5177 = vsel %vm4033, %v5176, %v5172
        %v5178 = vlaneseq
        %v5179 = vshrl.u32 %v5178, 7
        %v5180 = vsub.s32 %v4035, %v5179
        %v5181 = vrot.slane %v4802, %v5180
        %v5182 = vsel %vm4040, %v5181, %v5177
        %v5183 = vlaneseq
        %v5184 = vshrl.u32 %v5183, 7
        %v5185 = vsub.s32 %v216, %v5184
        %v5186 = vrot.slane %v4803, %v5185
        %v5187 = vlaneseq
        %v5188 = vshrl.u32 %v5187, 7
        %v5189 = vsub.s32 %v3937, %v5188
        %v5190 = vrot.slane %v4804, %v5189
        %v5191 = vsel %vm3942, %v5190, %v5186
        %v5192 = vlaneseq
        %v5193 = vshrl.u32 %v5192, 7
        %v5194 = vsub.s32 %v3944, %v5193
        %v5195 = vrot.slane %v4805, %v5194
        %v5196 = vsel %vm3949, %v5195, %v5191
        %v5197 = vlaneseq
        %v5198 = vshrl.u32 %v5197, 7
        %v5199 = vsub.s32 %v3951, %v5198
        %v5200 = vrot.slane %v4806, %v5199
        %v5201 = vsel %vm3956, %v5200, %v5196
        %v5202 = vlaneseq
        %v5203 = vshrl.u32 %v5202, 7
        %v5204 = vsub.s32 %v3958, %v5203
        %v5205 = vrot.slane %v4807, %v5204
        %v5206 = vsel %vm3963, %v5205, %v5201
        %v5207 = vlaneseq
        %v5208 = vshrl.u32 %v5207, 7
        %v5209 = vsub.s32 %v3965, %v5208
        %v5210 = vrot.slane %v4808, %v5209
        %v5211 = vsel %vm3970, %v5210, %v5206
        %v5212 = vlaneseq
        %v5213 = vshrl.u32 %v5212, 7
        %v5214 = vsub.s32 %v3972, %v5213
        %v5215 = vrot.slane %v4809, %v5214
        %v5216 = vsel %vm3977, %v5215, %v5211
        %v5217 = vlaneseq
        %v5218 = vshrl.u32 %v5217, 7
        %v5219 = vsub.s32 %v3979, %v5218
        %v5220 = vrot.slane %v4810, %v5219
        %v5221 = vsel %vm3984, %v5220, %v5216
        %v5222 = vlaneseq
        %v5223 = vshrl.u32 %v5222, 7
        %v5224 = vsub.s32 %v3986, %v5223
        %v5225 = vrot.slane %v4811, %v5224
        %v5226 = vsel %vm3991, %v5225, %v5221
        %v5227 = vlaneseq
        %v5228 = vshrl.u32 %v5227, 7
        %v5229 = vsub.s32 %v3993, %v5228
        %v5230 = vrot.slane %v4812, %v5229
        %v5231 = vsel %vm3998, %v5230, %v5226
        %v5232 = vlaneseq
        %v5233 = vshrl.u32 %v5232, 7
        %v5234 = vsub.s32 %v4000, %v5233
        %v5235 = vrot.slane %v4813, %v5234
        %v5236 = vsel %vm4005, %v5235, %v5231
        %v5237 = vlaneseq
        %v5238 = vshrl.u32 %v5237, 7
        %v5239 = vsub.s32 %v4007, %v5238
        %v5240 = vrot.slane %v4814, %v5239
        %v5241 = vsel %vm4012, %v5240, %v5236
        %v5242 = vlaneseq
        %v5243 = vshrl.u32 %v5242, 7
        %v5244 = vsub.s32 %v4014, %v5243
        %v5245 = vrot.slane %v4815, %v5244
        %v5246 = vsel %vm4019, %v5245, %v5241
        %v5247 = vlaneseq
        %v5248 = vshrl.u32 %v5247, 7
        %v5249 = vsub.s32 %v4021, %v5248
        %v5250 = vrot.slane %v4816, %v5249
        %v5251 = vsel %vm4026, %v5250, %v5246
        %v5252 = vlaneseq
        %v5253 = vshrl.u32 %v5252, 7
        %v5254 = vsub.s32 %v4028, %v5253
        %v5255 = vrot.slane %v4817, %v5254
        %v5256 = vsel %vm4033, %v5255, %v5251
        %v5257 = vlaneseq
        %v5258 = vshrl.u32 %v5257, 7
        %v5259 = vsub.s32 %v4035, %v5258
        %v5260 = vrot.slane %v4818, %v5259
        %v5261 = vsel %vm4040, %v5260, %v5256
        %v5262 = vlaneseq
        %v5263 = vshrl.u32 %v5262, 7
        %v5264 = vsub.s32 %v216, %v5263
        %v5265 = vrot.slane %v4819, %v5264
        %v5266 = vlaneseq
        %v5267 = vshrl.u32 %v5266, 7
        %v5268 = vsub.s32 %v3937, %v5267
        %v5269 = vrot.slane %v4820, %v5268
        %v5270 = vsel %vm3942, %v5269, %v5265
        %v5271 = vlaneseq
        %v5272 = vshrl.u32 %v5271, 7
        %v5273 = vsub.s32 %v3944, %v5272
        %v5274 = vrot.slane %v4821, %v5273
        %v5275 = vsel %vm3949, %v5274, %v5270
        %v5276 = vlaneseq
        %v5277 = vshrl.u32 %v5276, 7
        %v5278 = vsub.s32 %v3951, %v5277
        %v5279 = vrot.slane %v4822, %v5278
        %v5280 = vsel %vm3956, %v5279, %v5275
        %v5281 = vlaneseq
        %v5282 = vshrl.u32 %v5281, 7
        %v5283 = vsub.s32 %v3958, %v5282
        %v5284 = vrot.slane %v4823, %v5283
        %v5285 = vsel %vm3963, %v5284, %v5280
        %v5286 = vlaneseq
        %v5287 = vshrl.u32 %v5286, 7
        %v5288 = vsub.s32 %v3965, %v5287
        %v5289 = vrot.slane %v4824, %v5288
        %v5290 = vsel %vm3970, %v5289, %v5285
        %v5291 = vlaneseq
        %v5292 = vshrl.u32 %v5291, 7
        %v5293 = vsub.s32 %v3972, %v5292
        %v5294 = vrot.slane %v4825, %v5293
        %v5295 = vsel %vm3977, %v5294, %v5290
        %v5296 = vlaneseq
        %v5297 = vshrl.u32 %v5296, 7
        %v5298 = vsub.s32 %v3979, %v5297
        %v5299 = vrot.slane %v4826, %v5298
        %v5300 = vsel %vm3984, %v5299, %v5295
        %v5301 = vlaneseq
        %v5302 = vshrl.u32 %v5301, 7
        %v5303 = vsub.s32 %v3986, %v5302
        %v5304 = vrot.slane %v4827, %v5303
        %v5305 = vsel %vm3991, %v5304, %v5300
        %v5306 = vlaneseq
        %v5307 = vshrl.u32 %v5306, 7
        %v5308 = vsub.s32 %v3993, %v5307
        %v5309 = vrot.slane %v4828, %v5308
        %v5310 = vsel %vm3998, %v5309, %v5305
        %v5311 = vlaneseq
        %v5312 = vshrl.u32 %v5311, 7
        %v5313 = vsub.s32 %v4000, %v5312
        %v5314 = vrot.slane %v4829, %v5313
        %v5315 = vsel %vm4005, %v5314, %v5310
        %v5316 = vlaneseq
        %v5317 = vshrl.u32 %v5316, 7
        %v5318 = vsub.s32 %v4007, %v5317
        %v5319 = vrot.slane %v4830, %v5318
        %v5320 = vsel %vm4012, %v5319, %v5315
        %v5321 = vlaneseq
        %v5322 = vshrl.u32 %v5321, 7
        %v5323 = vsub.s32 %v4014, %v5322
        %v5324 = vrot.slane %v4831, %v5323
        %v5325 = vsel %vm4019, %v5324, %v5320
        %v5326 = vlaneseq
        %v5327 = vshrl.u32 %v5326, 7
        %v5328 = vsub.s32 %v4021, %v5327
        %v5329 = vrot.slane %v4832, %v5328
        %v5330 = vsel %vm4026, %v5329, %v5325
        %v5331 = vlaneseq
        %v5332 = vshrl.u32 %v5331, 7
        %v5333 = vsub.s32 %v4028, %v5332
        %v5334 = vrot.slane %v4833, %v5333
        %v5335 = vsel %vm4033, %v5334, %v5330
        %v5336 = vlaneseq
        %v5337 = vshrl.u32 %v5336, 7
        %v5338 = vsub.s32 %v4035, %v5337
        %v5339 = vrot.slane %v4834, %v5338
        %v5340 = vsel %vm4040, %v5339, %v5335
        %v5341 = vlaneseq
        %v5342 = vshrl.u32 %v5341, 7
        %v5343 = vsub.s32 %v216, %v5342
        %v5344 = vrot.slane %v4835, %v5343
        %v5345 = vlaneseq
        %v5346 = vshrl.u32 %v5345, 7
        %v5347 = vsub.s32 %v3937, %v5346
        %v5348 = vrot.slane %v4836, %v5347
        %v5349 = vsel %vm3942, %v5348, %v5344
        %v5350 = vlaneseq
        %v5351 = vshrl.u32 %v5350, 7
        %v5352 = vsub.s32 %v3944, %v5351
        %v5353 = vrot.slane %v4837, %v5352
        %v5354 = vsel %vm3949, %v5353, %v5349
        %v5355 = vlaneseq
        %v5356 = vshrl.u32 %v5355, 7
        %v5357 = vsub.s32 %v3951, %v5356
        %v5358 = vrot.slane %v4838, %v5357
        %v5359 = vsel %vm3956, %v5358, %v5354
        %v5360 = vlaneseq
        %v5361 = vshrl.u32 %v5360, 7
        %v5362 = vsub.s32 %v3958, %v5361
        %v5363 = vrot.slane %v4839, %v5362
        %v5364 = vsel %vm3963, %v5363, %v5359
        %v5365 = vlaneseq
        %v5366 = vshrl.u32 %v5365, 7
        %v5367 = vsub.s32 %v3965, %v5366
        %v5368 = vrot.slane %v4840, %v5367
        %v5369 = vsel %vm3970, %v5368, %v5364
        %v5370 = vlaneseq
        %v5371 = vshrl.u32 %v5370, 7
        %v5372 = vsub.s32 %v3972, %v5371
        %v5373 = vrot.slane %v4841, %v5372
        %v5374 = vsel %vm3977, %v5373, %v5369
        %v5375 = vlaneseq
        %v5376 = vshrl.u32 %v5375, 7
        %v5377 = vsub.s32 %v3979, %v5376
        %v5378 = vrot.slane %v4842, %v5377
        %v5379 = vsel %vm3984, %v5378, %v5374
        %v5380 = vlaneseq
        %v5381 = vshrl.u32 %v5380, 7
        %v5382 = vsub.s32 %v3986, %v5381
        %v5383 = vrot.slane %v4843, %v5382
        %v5384 = vsel %vm3991, %v5383, %v5379
        %v5385 = vlaneseq
        %v5386 = vshrl.u32 %v5385, 7
        %v5387 = vsub.s32 %v3993, %v5386
        %v5388 = vrot.slane %v4844, %v5387
        %v5389 = vsel %vm3998, %v5388, %v5384
        %v5390 = vlaneseq
        %v5391 = vshrl.u32 %v5390, 7
        %v5392 = vsub.s32 %v4000, %v5391
        %v5393 = vrot.slane %v4845, %v5392
        %v5394 = vsel %vm4005, %v5393, %v5389
        %v5395 = vlaneseq
        %v5396 = vshrl.u32 %v5395, 7
        %v5397 = vsub.s32 %v4007, %v5396
        %v5398 = vrot.slane %v4846, %v5397
        %v5399 = vsel %vm4012, %v5398, %v5394
        %v5400 = vlaneseq
        %v5401 = vshrl.u32 %v5400, 7
        %v5402 = vsub.s32 %v4014, %v5401
        %v5403 = vrot.slane %v4847, %v5402
        %v5404 = vsel %vm4019, %v5403, %v5399
        %v5405 = vlaneseq
        %v5406 = vshrl.u32 %v5405, 7
        %v5407 = vsub.s32 %v4021, %v5406
        %v5408 = vrot.slane %v4848, %v5407
        %v5409 = vsel %vm4026, %v5408, %v5404
        %v5410 = vlaneseq
        %v5411 = vshrl.u32 %v5410, 7
        %v5412 = vsub.s32 %v4028, %v5411
        %v5413 = vrot.slane %v4849, %v5412
        %v5414 = vsel %vm4033, %v5413, %v5409
        %v5415 = vlaneseq
        %v5416 = vshrl.u32 %v5415, 7
        %v5417 = vsub.s32 %v4035, %v5416
        %v5418 = vrot.slane %v4850, %v5417
        %v5419 = vsel %vm4040, %v5418, %v5414
        %v5420 = vlaneseq
        %v5421 = vshrl.u32 %v5420, 7
        %v5422 = vsub.s32 %v216, %v5421
        %v5423 = vrot.slane %v4851, %v5422
        %v5424 = vlaneseq
        %v5425 = vshrl.u32 %v5424, 7
        %v5426 = vsub.s32 %v3937, %v5425
        %v5427 = vrot.slane %v4852, %v5426
        %v5428 = vsel %vm3942, %v5427, %v5423
        %v5429 = vlaneseq
        %v5430 = vshrl.u32 %v5429, 7
        %v5431 = vsub.s32 %v3944, %v5430
        %v5432 = vrot.slane %v4853, %v5431
        %v5433 = vsel %vm3949, %v5432, %v5428
        %v5434 = vlaneseq
        %v5435 = vshrl.u32 %v5434, 7
        %v5436 = vsub.s32 %v3951, %v5435
        %v5437 = vrot.slane %v4854, %v5436
        %v5438 = vsel %vm3956, %v5437, %v5433
        %v5439 = vlaneseq
        %v5440 = vshrl.u32 %v5439, 7
        %v5441 = vsub.s32 %v3958, %v5440
        %v5442 = vrot.slane %v4855, %v5441
        %v5443 = vsel %vm3963, %v5442, %v5438
        %v5444 = vlaneseq
        %v5445 = vshrl.u32 %v5444, 7
        %v5446 = vsub.s32 %v3965, %v5445
        %v5447 = vrot.slane %v4856, %v5446
        %v5448 = vsel %vm3970, %v5447, %v5443
        %v5449 = vlaneseq
        %v5450 = vshrl.u32 %v5449, 7
        %v5451 = vsub.s32 %v3972, %v5450
        %v5452 = vrot.slane %v4857, %v5451
        %v5453 = vsel %vm3977, %v5452, %v5448
        %v5454 = vlaneseq
        %v5455 = vshrl.u32 %v5454, 7
        %v5456 = vsub.s32 %v3979, %v5455
        %v5457 = vrot.slane %v4858, %v5456
        %v5458 = vsel %vm3984, %v5457, %v5453
        %v5459 = vlaneseq
        %v5460 = vshrl.u32 %v5459, 7
        %v5461 = vsub.s32 %v3986, %v5460
        %v5462 = vrot.slane %v4859, %v5461
        %v5463 = vsel %vm3991, %v5462, %v5458
        %v5464 = vlaneseq
        %v5465 = vshrl.u32 %v5464, 7
        %v5466 = vsub.s32 %v3993, %v5465
        %v5467 = vrot.slane %v4860, %v5466
        %v5468 = vsel %vm3998, %v5467, %v5463
        %v5469 = vlaneseq
        %v5470 = vshrl.u32 %v5469, 7
        %v5471 = vsub.s32 %v4000, %v5470
        %v5472 = vrot.slane %v4861, %v5471
        %v5473 = vsel %vm4005, %v5472, %v5468
        %v5474 = vlaneseq
        %v5475 = vshrl.u32 %v5474, 7
        %v5476 = vsub.s32 %v4007, %v5475
        %v5477 = vrot.slane %v4862, %v5476
        %v5478 = vsel %vm4012, %v5477, %v5473
        %v5479 = vlaneseq
        %v5480 = vshrl.u32 %v5479, 7
        %v5481 = vsub.s32 %v4014, %v5480
        %v5482 = vrot.slane %v4863, %v5481
        %v5483 = vsel %vm4019, %v5482, %v5478
        %v5484 = vlaneseq
        %v5485 = vshrl.u32 %v5484, 7
        %v5486 = vsub.s32 %v4021, %v5485
        %v5487 = vrot.slane %v4864, %v5486
        %v5488 = vsel %vm4026, %v5487, %v5483
        %v5489 = vlaneseq
        %v5490 = vshrl.u32 %v5489, 7
        %v5491 = vsub.s32 %v4028, %v5490
        %v5492 = vrot.slane %v4865, %v5491
        %v5493 = vsel %vm4033, %v5492, %v5488
        %v5494 = vlaneseq
        %v5495 = vshrl.u32 %v5494, 7
        %v5496 = vsub.s32 %v4035, %v5495
        %v5497 = vrot.slane %v4866, %v5496
        %v5498 = vsel %vm4040, %v5497, %v5493
        %v5499 = vsel %vm4595, %v5024, %v4945
        %v5500 = vsel %vm4597, %v5103, %v5499
        %v5501 = vsel %vm4599, %v5182, %v5500
        %v5502 = vsel %vm4601, %v5261, %v5501
        %v5503 = vsel %vm4603, %v5340, %v5502
        %v5504 = vsel %vm4605, %v5419, %v5503
        %v5505 = vsel %vm4607, %v5498, %v5504
        %vm5506 = vcmp.ne.s32.totalorder %v5505, 0
        %vm5507 = vmand %vm3676, %vm5506
        %v5508 = vsel %vm4610, 1, 0
        %v5509 = vcvt.s32.f32 %v5508
        %5510 = vadd.xlane.f32.xlu0 %v5509
        %v5511 = vpop.xlane.xlu0 %5510
        %v5512 = vadd.f32 %v5511, 0.0
        %v5513 = vsel %vm5507, 1, 0
        %v5514 = vcvt.s32.f32 %v5513
        %5515 = vadd.xlane.f32.xlu0 %v5514
        %v5516 = vpop.xlane.xlu0 %5515
        %v5517 = vadd.f32 %v5516, 0.0
        %v5518 = vsel %vm1898, 1, 0
        %v5519 = vsel %vm1899, 1, 0
        %v5520 = vsel %vm1900, 1, 0
        %v5521 = vsel %vm1901, 1, 0
        %v5522 = vsel %vm1902, 1, 0
        %v5523 = vsel %vm1903, 1, 0
        %v5524 = vsel %vm1904, 1, 0
        %v5525 = vsel %vm1905, 1, 0
        %v5526 = vsel %vm1906, 1, 0
        %v5527 = vsel %vm1907, 1, 0
        %v5528 = vsel %vm1908, 1, 0
        %v5529 = vsel %vm1909, 1, 0
        %v5530 = vsel %vm1910, 1, 0
        %v5531 = vsel %vm1911, 1, 0
        %v5532 = vsel %vm1912, 1, 0
        %v5533 = vsel %vm1913, 1, 0
        %v5534 = vsel %vm1914, 1, 0
        %v5535 = vsel %vm1915, 1, 0
        %v5536 = vsel %vm1916, 1, 0
        %v5537 = vsel %vm1917, 1, 0
        %v5538 = vsel %vm1918, 1, 0
        %v5539 = vsel %vm1919, 1, 0
        %v5540 = vsel %vm1920, 1, 0
        %v5541 = vsel %vm1921, 1, 0
        %v5542 = vsel %vm1922, 1, 0
        %v5543 = vsel %vm1923, 1, 0
        %v5544 = vsel %vm1924, 1, 0
        %v5545 = vsel %vm1925, 1, 0
        %v5546 = vsel %vm1926, 1, 0
        %v5547 = vsel %vm1927, 1, 0
        %v5548 = vsel %vm1928, 1, 0
        %v5549 = vsel %vm1929, 1, 0
        %v5550 = vsel %vm1930, 1, 0
        %v5551 = vsel %vm1931, 1, 0
        %v5552 = vsel %vm1932, 1, 0
        %v5553 = vsel %vm1933, 1, 0
        %v5554 = vsel %vm1934, 1, 0
        %v5555 = vsel %vm1935, 1, 0
        %v5556 = vsel %vm1936, 1, 0
        %v5557 = vsel %vm1937, 1, 0
        %v5558 = vsel %vm1938, 1, 0
        %v5559 = vsel %vm1939, 1, 0
        %v5560 = vsel %vm1940, 1, 0
        %v5561 = vsel %vm1941, 1, 0
        %v5562 = vsel %vm1942, 1, 0
        %v5563 = vsel %vm1943, 1, 0
        %v5564 = vsel %vm1944, 1, 0
        %v5565 = vsel %vm1945, 1, 0
        %v5566 = vsel %vm1946, 1, 0
        %v5567 = vsel %vm1947, 1, 0
        %v5568 = vsel %vm1948, 1, 0
        %v5569 = vsel %vm1949, 1, 0
        %v5570 = vsel %vm1950, 1, 0
        %v5571 = vsel %vm1951, 1, 0
        %v5572 = vsel %vm1952, 1, 0
        %v5573 = vsel %vm1953, 1, 0
        %v5574 = vsel %vm1954, 1, 0
        %v5575 = vsel %vm1955, 1, 0
        %v5576 = vsel %vm1956, 1, 0
        %v5577 = vsel %vm1957, 1, 0
        %v5578 = vsel %vm1958, 1, 0
        %v5579 = vsel %vm1959, 1, 0
        %v5580 = vsel %vm1960, 1, 0
        %v5581 = vsel %vm1961, 1, 0
        %v5582 = vsel %vm1962, 1, 0
        %v5583 = vsel %vm1963, 1, 0
        %v5584 = vsel %vm1964, 1, 0
        %v5585 = vsel %vm1965, 1, 0
        %v5586 = vsel %vm1966, 1, 0
        %v5587 = vsel %vm1967, 1, 0
        %v5588 = vsel %vm1968, 1, 0
        %v5589 = vsel %vm1969, 1, 0
        %v5590 = vsel %vm1970, 1, 0
        %v5591 = vsel %vm1971, 1, 0
        %v5592 = vsel %vm1972, 1, 0
        %v5593 = vsel %vm1973, 1, 0
        %v5594 = vsel %vm1974, 1, 0
        %v5595 = vsel %vm1975, 1, 0
        %v5596 = vsel %vm1976, 1, 0
        %v5597 = vsel %vm1977, 1, 0
        %v5598 = vsel %vm1978, 1, 0
        %v5599 = vsel %vm1979, 1, 0
        %v5600 = vsel %vm1980, 1, 0
        %v5601 = vsel %vm1981, 1, 0
        %v5602 = vsel %vm1982, 1, 0
        %v5603 = vsel %vm1983, 1, 0
        %v5604 = vsel %vm1984, 1, 0
        %v5605 = vsel %vm1985, 1, 0
        %v5606 = vsel %vm1986, 1, 0
        %v5607 = vsel %vm1987, 1, 0
        %v5608 = vsel %vm1988, 1, 0
        %v5609 = vsel %vm1989, 1, 0
        %v5610 = vsel %vm1990, 1, 0
        %v5611 = vsel %vm1991, 1, 0
        %v5612 = vsel %vm1992, 1, 0
        %v5613 = vsel %vm1993, 1, 0
        %v5614 = vsel %vm1994, 1, 0
        %v5615 = vsel %vm1995, 1, 0
        %v5616 = vsel %vm1996, 1, 0
        %v5617 = vsel %vm1997, 1, 0
        %v5618 = vsel %vm1998, 1, 0
        %v5619 = vsel %vm1999, 1, 0
        %v5620 = vsel %vm2000, 1, 0
        %v5621 = vsel %vm2001, 1, 0
        %v5622 = vsel %vm2002, 1, 0
        %v5623 = vsel %vm2003, 1, 0
        %v5624 = vsel %vm2004, 1, 0
        %v5625 = vsel %vm2005, 1, 0
        %v5626 = vsel %vm2006, 1, 0
        %v5627 = vsel %vm2007, 1, 0
        %v5628 = vsel %vm2008, 1, 0
        %v5629 = vsel %vm2009, 1, 0
        %v5630 = vsel %vm2010, 1, 0
        %v5631 = vsel %vm2011, 1, 0
        %v5632 = vsel %vm2012, 1, 0
        %v5633 = vsel %vm2013, 1, 0
        %v5634 = vsel %vm2014, 1, 0
        %v5635 = vsel %vm2015, 1, 0
        %v5636 = vsel %vm2016, 1, 0
        %v5637 = vsel %vm2017, 1, 0
        %v5638 = vsel %vm2018, 1, 0
        %v5639 = vsel %vm2019, 1, 0
        %v5640 = vsel %vm2020, 1, 0
        %v5641 = vsel %vm2021, 1, 0
        %v5642 = vsel %vm2022, 1, 0
        %v5643 = vsel %vm2023, 1, 0
        %v5644 = vsel %vm2024, 1, 0
        %v5645 = vsel %vm2025, 1, 0
        %v5646 = vlaneseq
        %v5647 = vshrl.u32 %v5646, 7
        %v5648 = vsub.s32 %v216, %v5647
        %v5649 = vrot.slane %v5518, %v5648
        %v5650 = vlaneseq
        %v5651 = vshrl.u32 %v5650, 7
        %v5652 = vsub.s32 %v3937, %v5651
        %v5653 = vrot.slane %v5519, %v5652
        %v5654 = vsel %vm3942, %v5653, %v5649
        %v5655 = vlaneseq
        %v5656 = vshrl.u32 %v5655, 7
        %v5657 = vsub.s32 %v3944, %v5656
        %v5658 = vrot.slane %v5520, %v5657
        %v5659 = vsel %vm3949, %v5658, %v5654
        %v5660 = vlaneseq
        %v5661 = vshrl.u32 %v5660, 7
        %v5662 = vsub.s32 %v3951, %v5661
        %v5663 = vrot.slane %v5521, %v5662
        %v5664 = vsel %vm3956, %v5663, %v5659
        %v5665 = vlaneseq
        %v5666 = vshrl.u32 %v5665, 7
        %v5667 = vsub.s32 %v3958, %v5666
        %v5668 = vrot.slane %v5522, %v5667
        %v5669 = vsel %vm3963, %v5668, %v5664
        %v5670 = vlaneseq
        %v5671 = vshrl.u32 %v5670, 7
        %v5672 = vsub.s32 %v3965, %v5671
        %v5673 = vrot.slane %v5523, %v5672
        %v5674 = vsel %vm3970, %v5673, %v5669
        %v5675 = vlaneseq
        %v5676 = vshrl.u32 %v5675, 7
        %v5677 = vsub.s32 %v3972, %v5676
        %v5678 = vrot.slane %v5524, %v5677
        %v5679 = vsel %vm3977, %v5678, %v5674
        %v5680 = vlaneseq
        %v5681 = vshrl.u32 %v5680, 7
        %v5682 = vsub.s32 %v3979, %v5681
        %v5683 = vrot.slane %v5525, %v5682
        %v5684 = vsel %vm3984, %v5683, %v5679
        %v5685 = vlaneseq
        %v5686 = vshrl.u32 %v5685, 7
        %v5687 = vsub.s32 %v3986, %v5686
        %v5688 = vrot.slane %v5526, %v5687
        %v5689 = vsel %vm3991, %v5688, %v5684
        %v5690 = vlaneseq
        %v5691 = vshrl.u32 %v5690, 7
        %v5692 = vsub.s32 %v3993, %v5691
        %v5693 = vrot.slane %v5527, %v5692
        %v5694 = vsel %vm3998, %v5693, %v5689
        %v5695 = vlaneseq
        %v5696 = vshrl.u32 %v5695, 7
        %v5697 = vsub.s32 %v4000, %v5696
        %v5698 = vrot.slane %v5528, %v5697
        %v5699 = vsel %vm4005, %v5698, %v5694
        %v5700 = vlaneseq
        %v5701 = vshrl.u32 %v5700, 7
        %v5702 = vsub.s32 %v4007, %v5701
        %v5703 = vrot.slane %v5529, %v5702
        %v5704 = vsel %vm4012, %v5703, %v5699
        %v5705 = vlaneseq
        %v5706 = vshrl.u32 %v5705, 7
        %v5707 = vsub.s32 %v4014, %v5706
        %v5708 = vrot.slane %v5530, %v5707
        %v5709 = vsel %vm4019, %v5708, %v5704
        %v5710 = vlaneseq
        %v5711 = vshrl.u32 %v5710, 7
        %v5712 = vsub.s32 %v4021, %v5711
        %v5713 = vrot.slane %v5531, %v5712
        %v5714 = vsel %vm4026, %v5713, %v5709
        %v5715 = vlaneseq
        %v5716 = vshrl.u32 %v5715, 7
        %v5717 = vsub.s32 %v4028, %v5716
        %v5718 = vrot.slane %v5532, %v5717
        %v5719 = vsel %vm4033, %v5718, %v5714
        %v5720 = vlaneseq
        %v5721 = vshrl.u32 %v5720, 7
        %v5722 = vsub.s32 %v4035, %v5721
        %v5723 = vrot.slane %v5533, %v5722
        %v5724 = vsel %vm4040, %v5723, %v5719
        %v5725 = vlaneseq
        %v5726 = vshrl.u32 %v5725, 7
        %v5727 = vsub.s32 %v216, %v5726
        %v5728 = vrot.slane %v5534, %v5727
        %v5729 = vlaneseq
        %v5730 = vshrl.u32 %v5729, 7
        %v5731 = vsub.s32 %v3937, %v5730
        %v5732 = vrot.slane %v5535, %v5731
        %v5733 = vsel %vm3942, %v5732, %v5728
        %v5734 = vlaneseq
        %v5735 = vshrl.u32 %v5734, 7
        %v5736 = vsub.s32 %v3944, %v5735
        %v5737 = vrot.slane %v5536, %v5736
        %v5738 = vsel %vm3949, %v5737, %v5733
        %v5739 = vlaneseq
        %v5740 = vshrl.u32 %v5739, 7
        %v5741 = vsub.s32 %v3951, %v5740
        %v5742 = vrot.slane %v5537, %v5741
        %v5743 = vsel %vm3956, %v5742, %v5738
        %v5744 = vlaneseq
        %v5745 = vshrl.u32 %v5744, 7
        %v5746 = vsub.s32 %v3958, %v5745
        %v5747 = vrot.slane %v5538, %v5746
        %v5748 = vsel %vm3963, %v5747, %v5743
        %v5749 = vlaneseq
        %v5750 = vshrl.u32 %v5749, 7
        %v5751 = vsub.s32 %v3965, %v5750
        %v5752 = vrot.slane %v5539, %v5751
        %v5753 = vsel %vm3970, %v5752, %v5748
        %v5754 = vlaneseq
        %v5755 = vshrl.u32 %v5754, 7
        %v5756 = vsub.s32 %v3972, %v5755
        %v5757 = vrot.slane %v5540, %v5756
        %v5758 = vsel %vm3977, %v5757, %v5753
        %v5759 = vlaneseq
        %v5760 = vshrl.u32 %v5759, 7
        %v5761 = vsub.s32 %v3979, %v5760
        %v5762 = vrot.slane %v5541, %v5761
        %v5763 = vsel %vm3984, %v5762, %v5758
        %v5764 = vlaneseq
        %v5765 = vshrl.u32 %v5764, 7
        %v5766 = vsub.s32 %v3986, %v5765
        %v5767 = vrot.slane %v5542, %v5766
        %v5768 = vsel %vm3991, %v5767, %v5763
        %v5769 = vlaneseq
        %v5770 = vshrl.u32 %v5769, 7
        %v5771 = vsub.s32 %v3993, %v5770
        %v5772 = vrot.slane %v5543, %v5771
        %v5773 = vsel %vm3998, %v5772, %v5768
        %v5774 = vlaneseq
        %v5775 = vshrl.u32 %v5774, 7
        %v5776 = vsub.s32 %v4000, %v5775
        %v5777 = vrot.slane %v5544, %v5776
        %v5778 = vsel %vm4005, %v5777, %v5773
        %v5779 = vlaneseq
        %v5780 = vshrl.u32 %v5779, 7
        %v5781 = vsub.s32 %v4007, %v5780
        %v5782 = vrot.slane %v5545, %v5781
        %v5783 = vsel %vm4012, %v5782, %v5778
        %v5784 = vlaneseq
        %v5785 = vshrl.u32 %v5784, 7
        %v5786 = vsub.s32 %v4014, %v5785
        %v5787 = vrot.slane %v5546, %v5786
        %v5788 = vsel %vm4019, %v5787, %v5783
        %v5789 = vlaneseq
        %v5790 = vshrl.u32 %v5789, 7
        %v5791 = vsub.s32 %v4021, %v5790
        %v5792 = vrot.slane %v5547, %v5791
        %v5793 = vsel %vm4026, %v5792, %v5788
        %v5794 = vlaneseq
        %v5795 = vshrl.u32 %v5794, 7
        %v5796 = vsub.s32 %v4028, %v5795
        %v5797 = vrot.slane %v5548, %v5796
        %v5798 = vsel %vm4033, %v5797, %v5793
        %v5799 = vlaneseq
        %v5800 = vshrl.u32 %v5799, 7
        %v5801 = vsub.s32 %v4035, %v5800
        %v5802 = vrot.slane %v5549, %v5801
        %v5803 = vsel %vm4040, %v5802, %v5798
        %v5804 = vlaneseq
        %v5805 = vshrl.u32 %v5804, 7
        %v5806 = vsub.s32 %v216, %v5805
        %v5807 = vrot.slane %v5550, %v5806
        %v5808 = vlaneseq
        %v5809 = vshrl.u32 %v5808, 7
        %v5810 = vsub.s32 %v3937, %v5809
        %v5811 = vrot.slane %v5551, %v5810
        %v5812 = vsel %vm3942, %v5811, %v5807
        %v5813 = vlaneseq
        %v5814 = vshrl.u32 %v5813, 7
        %v5815 = vsub.s32 %v3944, %v5814
        %v5816 = vrot.slane %v5552, %v5815
        %v5817 = vsel %vm3949, %v5816, %v5812
        %v5818 = vlaneseq
        %v5819 = vshrl.u32 %v5818, 7
        %v5820 = vsub.s32 %v3951, %v5819
        %v5821 = vrot.slane %v5553, %v5820
        %v5822 = vsel %vm3956, %v5821, %v5817
        %v5823 = vlaneseq
        %v5824 = vshrl.u32 %v5823, 7
        %v5825 = vsub.s32 %v3958, %v5824
        %v5826 = vrot.slane %v5554, %v5825
        %v5827 = vsel %vm3963, %v5826, %v5822
        %v5828 = vlaneseq
        %v5829 = vshrl.u32 %v5828, 7
        %v5830 = vsub.s32 %v3965, %v5829
        %v5831 = vrot.slane %v5555, %v5830
        %v5832 = vsel %vm3970, %v5831, %v5827
        %v5833 = vlaneseq
        %v5834 = vshrl.u32 %v5833, 7
        %v5835 = vsub.s32 %v3972, %v5834
        %v5836 = vrot.slane %v5556, %v5835
        %v5837 = vsel %vm3977, %v5836, %v5832
        %v5838 = vlaneseq
        %v5839 = vshrl.u32 %v5838, 7
        %v5840 = vsub.s32 %v3979, %v5839
        %v5841 = vrot.slane %v5557, %v5840
        %v5842 = vsel %vm3984, %v5841, %v5837
        %v5843 = vlaneseq
        %v5844 = vshrl.u32 %v5843, 7
        %v5845 = vsub.s32 %v3986, %v5844
        %v5846 = vrot.slane %v5558, %v5845
        %v5847 = vsel %vm3991, %v5846, %v5842
        %v5848 = vlaneseq
        %v5849 = vshrl.u32 %v5848, 7
        %v5850 = vsub.s32 %v3993, %v5849
        %v5851 = vrot.slane %v5559, %v5850
        %v5852 = vsel %vm3998, %v5851, %v5847
        %v5853 = vlaneseq
        %v5854 = vshrl.u32 %v5853, 7
        %v5855 = vsub.s32 %v4000, %v5854
        %v5856 = vrot.slane %v5560, %v5855
        %v5857 = vsel %vm4005, %v5856, %v5852
        %v5858 = vlaneseq
        %v5859 = vshrl.u32 %v5858, 7
        %v5860 = vsub.s32 %v4007, %v5859
        %v5861 = vrot.slane %v5561, %v5860
        %v5862 = vsel %vm4012, %v5861, %v5857
        %v5863 = vlaneseq
        %v5864 = vshrl.u32 %v5863, 7
        %v5865 = vsub.s32 %v4014, %v5864
        %v5866 = vrot.slane %v5562, %v5865
        %v5867 = vsel %vm4019, %v5866, %v5862
        %v5868 = vlaneseq
        %v5869 = vshrl.u32 %v5868, 7
        %v5870 = vsub.s32 %v4021, %v5869
        %v5871 = vrot.slane %v5563, %v5870
        %v5872 = vsel %vm4026, %v5871, %v5867
        %v5873 = vlaneseq
        %v5874 = vshrl.u32 %v5873, 7
        %v5875 = vsub.s32 %v4028, %v5874
        %v5876 = vrot.slane %v5564, %v5875
        %v5877 = vsel %vm4033, %v5876, %v5872
        %v5878 = vlaneseq
        %v5879 = vshrl.u32 %v5878, 7
        %v5880 = vsub.s32 %v4035, %v5879
        %v5881 = vrot.slane %v5565, %v5880
        %v5882 = vsel %vm4040, %v5881, %v5877
        %v5883 = vlaneseq
        %v5884 = vshrl.u32 %v5883, 7
        %v5885 = vsub.s32 %v216, %v5884
        %v5886 = vrot.slane %v5566, %v5885
        %v5887 = vlaneseq
        %v5888 = vshrl.u32 %v5887, 7
        %v5889 = vsub.s32 %v3937, %v5888
        %v5890 = vrot.slane %v5567, %v5889
        %v5891 = vsel %vm3942, %v5890, %v5886
        %v5892 = vlaneseq
        %v5893 = vshrl.u32 %v5892, 7
        %v5894 = vsub.s32 %v3944, %v5893
        %v5895 = vrot.slane %v5568, %v5894
        %v5896 = vsel %vm3949, %v5895, %v5891
        %v5897 = vlaneseq
        %v5898 = vshrl.u32 %v5897, 7
        %v5899 = vsub.s32 %v3951, %v5898
        %v5900 = vrot.slane %v5569, %v5899
        %v5901 = vsel %vm3956, %v5900, %v5896
        %v5902 = vlaneseq
        %v5903 = vshrl.u32 %v5902, 7
        %v5904 = vsub.s32 %v3958, %v5903
        %v5905 = vrot.slane %v5570, %v5904
        %v5906 = vsel %vm3963, %v5905, %v5901
        %v5907 = vlaneseq
        %v5908 = vshrl.u32 %v5907, 7
        %v5909 = vsub.s32 %v3965, %v5908
        %v5910 = vrot.slane %v5571, %v5909
        %v5911 = vsel %vm3970, %v5910, %v5906
        %v5912 = vlaneseq
        %v5913 = vshrl.u32 %v5912, 7
        %v5914 = vsub.s32 %v3972, %v5913
        %v5915 = vrot.slane %v5572, %v5914
        %v5916 = vsel %vm3977, %v5915, %v5911
        %v5917 = vlaneseq
        %v5918 = vshrl.u32 %v5917, 7
        %v5919 = vsub.s32 %v3979, %v5918
        %v5920 = vrot.slane %v5573, %v5919
        %v5921 = vsel %vm3984, %v5920, %v5916
        %v5922 = vlaneseq
        %v5923 = vshrl.u32 %v5922, 7
        %v5924 = vsub.s32 %v3986, %v5923
        %v5925 = vrot.slane %v5574, %v5924
        %v5926 = vsel %vm3991, %v5925, %v5921
        %v5927 = vlaneseq
        %v5928 = vshrl.u32 %v5927, 7
        %v5929 = vsub.s32 %v3993, %v5928
        %v5930 = vrot.slane %v5575, %v5929
        %v5931 = vsel %vm3998, %v5930, %v5926
        %v5932 = vlaneseq
        %v5933 = vshrl.u32 %v5932, 7
        %v5934 = vsub.s32 %v4000, %v5933
        %v5935 = vrot.slane %v5576, %v5934
        %v5936 = vsel %vm4005, %v5935, %v5931
        %v5937 = vlaneseq
        %v5938 = vshrl.u32 %v5937, 7
        %v5939 = vsub.s32 %v4007, %v5938
        %v5940 = vrot.slane %v5577, %v5939
        %v5941 = vsel %vm4012, %v5940, %v5936
        %v5942 = vlaneseq
        %v5943 = vshrl.u32 %v5942, 7
        %v5944 = vsub.s32 %v4014, %v5943
        %v5945 = vrot.slane %v5578, %v5944
        %v5946 = vsel %vm4019, %v5945, %v5941
        %v5947 = vlaneseq
        %v5948 = vshrl.u32 %v5947, 7
        %v5949 = vsub.s32 %v4021, %v5948
        %v5950 = vrot.slane %v5579, %v5949
        %v5951 = vsel %vm4026, %v5950, %v5946
        %v5952 = vlaneseq
        %v5953 = vshrl.u32 %v5952, 7
        %v5954 = vsub.s32 %v4028, %v5953
        %v5955 = vrot.slane %v5580, %v5954
        %v5956 = vsel %vm4033, %v5955, %v5951
        %v5957 = vlaneseq
        %v5958 = vshrl.u32 %v5957, 7
        %v5959 = vsub.s32 %v4035, %v5958
        %v5960 = vrot.slane %v5581, %v5959
        %v5961 = vsel %vm4040, %v5960, %v5956
        %v5962 = vlaneseq
        %v5963 = vshrl.u32 %v5962, 7
        %v5964 = vsub.s32 %v216, %v5963
        %v5965 = vrot.slane %v5582, %v5964
        %v5966 = vlaneseq
        %v5967 = vshrl.u32 %v5966, 7
        %v5968 = vsub.s32 %v3937, %v5967
        %v5969 = vrot.slane %v5583, %v5968
        %v5970 = vsel %vm3942, %v5969, %v5965
        %v5971 = vlaneseq
        %v5972 = vshrl.u32 %v5971, 7
        %v5973 = vsub.s32 %v3944, %v5972
        %v5974 = vrot.slane %v5584, %v5973
        %v5975 = vsel %vm3949, %v5974, %v5970
        %v5976 = vlaneseq
        %v5977 = vshrl.u32 %v5976, 7
        %v5978 = vsub.s32 %v3951, %v5977
        %v5979 = vrot.slane %v5585, %v5978
        %v5980 = vsel %vm3956, %v5979, %v5975
        %v5981 = vlaneseq
        %v5982 = vshrl.u32 %v5981, 7
        %v5983 = vsub.s32 %v3958, %v5982
        %v5984 = vrot.slane %v5586, %v5983
        %v5985 = vsel %vm3963, %v5984, %v5980
        %v5986 = vlaneseq
        %v5987 = vshrl.u32 %v5986, 7
        %v5988 = vsub.s32 %v3965, %v5987
        %v5989 = vrot.slane %v5587, %v5988
        %v5990 = vsel %vm3970, %v5989, %v5985
        %v5991 = vlaneseq
        %v5992 = vshrl.u32 %v5991, 7
        %v5993 = vsub.s32 %v3972, %v5992
        %v5994 = vrot.slane %v5588, %v5993
        %v5995 = vsel %vm3977, %v5994, %v5990
        %v5996 = vlaneseq
        %v5997 = vshrl.u32 %v5996, 7
        %v5998 = vsub.s32 %v3979, %v5997
        %v5999 = vrot.slane %v5589, %v5998
        %v6000 = vsel %vm3984, %v5999, %v5995
        %v6001 = vlaneseq
        %v6002 = vshrl.u32 %v6001, 7
        %v6003 = vsub.s32 %v3986, %v6002
        %v6004 = vrot.slane %v5590, %v6003
        %v6005 = vsel %vm3991, %v6004, %v6000
        %v6006 = vlaneseq
        %v6007 = vshrl.u32 %v6006, 7
        %v6008 = vsub.s32 %v3993, %v6007
        %v6009 = vrot.slane %v5591, %v6008
        %v6010 = vsel %vm3998, %v6009, %v6005
        %v6011 = vlaneseq
        %v6012 = vshrl.u32 %v6011, 7
        %v6013 = vsub.s32 %v4000, %v6012
        %v6014 = vrot.slane %v5592, %v6013
        %v6015 = vsel %vm4005, %v6014, %v6010
        %v6016 = vlaneseq
        %v6017 = vshrl.u32 %v6016, 7
        %v6018 = vsub.s32 %v4007, %v6017
        %v6019 = vrot.slane %v5593, %v6018
        %v6020 = vsel %vm4012, %v6019, %v6015
        %v6021 = vlaneseq
        %v6022 = vshrl.u32 %v6021, 7
        %v6023 = vsub.s32 %v4014, %v6022
        %v6024 = vrot.slane %v5594, %v6023
        %v6025 = vsel %vm4019, %v6024, %v6020
        %v6026 = vlaneseq
        %v6027 = vshrl.u32 %v6026, 7
        %v6028 = vsub.s32 %v4021, %v6027
        %v6029 = vrot.slane %v5595, %v6028
        %v6030 = vsel %vm4026, %v6029, %v6025
        %v6031 = vlaneseq
        %v6032 = vshrl.u32 %v6031, 7
        %v6033 = vsub.s32 %v4028, %v6032
        %v6034 = vrot.slane %v5596, %v6033
        %v6035 = vsel %vm4033, %v6034, %v6030
        %v6036 = vlaneseq
        %v6037 = vshrl.u32 %v6036, 7
        %v6038 = vsub.s32 %v4035, %v6037
        %v6039 = vrot.slane %v5597, %v6038
        %v6040 = vsel %vm4040, %v6039, %v6035
        %v6041 = vlaneseq
        %v6042 = vshrl.u32 %v6041, 7
        %v6043 = vsub.s32 %v216, %v6042
        %v6044 = vrot.slane %v5598, %v6043
        %v6045 = vlaneseq
        %v6046 = vshrl.u32 %v6045, 7
        %v6047 = vsub.s32 %v3937, %v6046
        %v6048 = vrot.slane %v5599, %v6047
        %v6049 = vsel %vm3942, %v6048, %v6044
        %v6050 = vlaneseq
        %v6051 = vshrl.u32 %v6050, 7
        %v6052 = vsub.s32 %v3944, %v6051
        %v6053 = vrot.slane %v5600, %v6052
        %v6054 = vsel %vm3949, %v6053, %v6049
        %v6055 = vlaneseq
        %v6056 = vshrl.u32 %v6055, 7
        %v6057 = vsub.s32 %v3951, %v6056
        %v6058 = vrot.slane %v5601, %v6057
        %v6059 = vsel %vm3956, %v6058, %v6054
        %v6060 = vlaneseq
        %v6061 = vshrl.u32 %v6060, 7
        %v6062 = vsub.s32 %v3958, %v6061
        %v6063 = vrot.slane %v5602, %v6062
        %v6064 = vsel %vm3963, %v6063, %v6059
        %v6065 = vlaneseq
        %v6066 = vshrl.u32 %v6065, 7
        %v6067 = vsub.s32 %v3965, %v6066
        %v6068 = vrot.slane %v5603, %v6067
        %v6069 = vsel %vm3970, %v6068, %v6064
        %v6070 = vlaneseq
        %v6071 = vshrl.u32 %v6070, 7
        %v6072 = vsub.s32 %v3972, %v6071
        %v6073 = vrot.slane %v5604, %v6072
        %v6074 = vsel %vm3977, %v6073, %v6069
        %v6075 = vlaneseq
        %v6076 = vshrl.u32 %v6075, 7
        %v6077 = vsub.s32 %v3979, %v6076
        %v6078 = vrot.slane %v5605, %v6077
        %v6079 = vsel %vm3984, %v6078, %v6074
        %v6080 = vlaneseq
        %v6081 = vshrl.u32 %v6080, 7
        %v6082 = vsub.s32 %v3986, %v6081
        %v6083 = vrot.slane %v5606, %v6082
        %v6084 = vsel %vm3991, %v6083, %v6079
        %v6085 = vlaneseq
        %v6086 = vshrl.u32 %v6085, 7
        %v6087 = vsub.s32 %v3993, %v6086
        %v6088 = vrot.slane %v5607, %v6087
        %v6089 = vsel %vm3998, %v6088, %v6084
        %v6090 = vlaneseq
        %v6091 = vshrl.u32 %v6090, 7
        %v6092 = vsub.s32 %v4000, %v6091
        %v6093 = vrot.slane %v5608, %v6092
        %v6094 = vsel %vm4005, %v6093, %v6089
        %v6095 = vlaneseq
        %v6096 = vshrl.u32 %v6095, 7
        %v6097 = vsub.s32 %v4007, %v6096
        %v6098 = vrot.slane %v5609, %v6097
        %v6099 = vsel %vm4012, %v6098, %v6094
        %v6100 = vlaneseq
        %v6101 = vshrl.u32 %v6100, 7
        %v6102 = vsub.s32 %v4014, %v6101
        %v6103 = vrot.slane %v5610, %v6102
        %v6104 = vsel %vm4019, %v6103, %v6099
        %v6105 = vlaneseq
        %v6106 = vshrl.u32 %v6105, 7
        %v6107 = vsub.s32 %v4021, %v6106
        %v6108 = vrot.slane %v5611, %v6107
        %v6109 = vsel %vm4026, %v6108, %v6104
        %v6110 = vlaneseq
        %v6111 = vshrl.u32 %v6110, 7
        %v6112 = vsub.s32 %v4028, %v6111
        %v6113 = vrot.slane %v5612, %v6112
        %v6114 = vsel %vm4033, %v6113, %v6109
        %v6115 = vlaneseq
        %v6116 = vshrl.u32 %v6115, 7
        %v6117 = vsub.s32 %v4035, %v6116
        %v6118 = vrot.slane %v5613, %v6117
        %v6119 = vsel %vm4040, %v6118, %v6114
        %v6120 = vlaneseq
        %v6121 = vshrl.u32 %v6120, 7
        %v6122 = vsub.s32 %v216, %v6121
        %v6123 = vrot.slane %v5614, %v6122
        %v6124 = vlaneseq
        %v6125 = vshrl.u32 %v6124, 7
        %v6126 = vsub.s32 %v3937, %v6125
        %v6127 = vrot.slane %v5615, %v6126
        %v6128 = vsel %vm3942, %v6127, %v6123
        %v6129 = vlaneseq
        %v6130 = vshrl.u32 %v6129, 7
        %v6131 = vsub.s32 %v3944, %v6130
        %v6132 = vrot.slane %v5616, %v6131
        %v6133 = vsel %vm3949, %v6132, %v6128
        %v6134 = vlaneseq
        %v6135 = vshrl.u32 %v6134, 7
        %v6136 = vsub.s32 %v3951, %v6135
        %v6137 = vrot.slane %v5617, %v6136
        %v6138 = vsel %vm3956, %v6137, %v6133
        %v6139 = vlaneseq
        %v6140 = vshrl.u32 %v6139, 7
        %v6141 = vsub.s32 %v3958, %v6140
        %v6142 = vrot.slane %v5618, %v6141
        %v6143 = vsel %vm3963, %v6142, %v6138
        %v6144 = vlaneseq
        %v6145 = vshrl.u32 %v6144, 7
        %v6146 = vsub.s32 %v3965, %v6145
        %v6147 = vrot.slane %v5619, %v6146
        %v6148 = vsel %vm3970, %v6147, %v6143
        %v6149 = vlaneseq
        %v6150 = vshrl.u32 %v6149, 7
        %v6151 = vsub.s32 %v3972, %v6150
        %v6152 = vrot.slane %v5620, %v6151
        %v6153 = vsel %vm3977, %v6152, %v6148
        %v6154 = vlaneseq
        %v6155 = vshrl.u32 %v6154, 7
        %v6156 = vsub.s32 %v3979, %v6155
        %v6157 = vrot.slane %v5621, %v6156
        %v6158 = vsel %vm3984, %v6157, %v6153
        %v6159 = vlaneseq
        %v6160 = vshrl.u32 %v6159, 7
        %v6161 = vsub.s32 %v3986, %v6160
        %v6162 = vrot.slane %v5622, %v6161
        %v6163 = vsel %vm3991, %v6162, %v6158
        %v6164 = vlaneseq
        %v6165 = vshrl.u32 %v6164, 7
        %v6166 = vsub.s32 %v3993, %v6165
        %v6167 = vrot.slane %v5623, %v6166
        %v6168 = vsel %vm3998, %v6167, %v6163
        %v6169 = vlaneseq
        %v6170 = vshrl.u32 %v6169, 7
        %v6171 = vsub.s32 %v4000, %v6170
        %v6172 = vrot.slane %v5624, %v6171
        %v6173 = vsel %vm4005, %v6172, %v6168
        %v6174 = vlaneseq
        %v6175 = vshrl.u32 %v6174, 7
        %v6176 = vsub.s32 %v4007, %v6175
        %v6177 = vrot.slane %v5625, %v6176
        %v6178 = vsel %vm4012, %v6177, %v6173
        %v6179 = vlaneseq
        %v6180 = vshrl.u32 %v6179, 7
        %v6181 = vsub.s32 %v4014, %v6180
        %v6182 = vrot.slane %v5626, %v6181
        %v6183 = vsel %vm4019, %v6182, %v6178
        %v6184 = vlaneseq
        %v6185 = vshrl.u32 %v6184, 7
        %v6186 = vsub.s32 %v4021, %v6185
        %v6187 = vrot.slane %v5627, %v6186
        %v6188 = vsel %vm4026, %v6187, %v6183
        %v6189 = vlaneseq
        %v6190 = vshrl.u32 %v6189, 7
        %v6191 = vsub.s32 %v4028, %v6190
        %v6192 = vrot.slane %v5628, %v6191
        %v6193 = vsel %vm4033, %v6192, %v6188
        %v6194 = vlaneseq
        %v6195 = vshrl.u32 %v6194, 7
        %v6196 = vsub.s32 %v4035, %v6195
        %v6197 = vrot.slane %v5629, %v6196
        %v6198 = vsel %vm4040, %v6197, %v6193
        %v6199 = vlaneseq
        %v6200 = vshrl.u32 %v6199, 7
        %v6201 = vsub.s32 %v216, %v6200
        %v6202 = vrot.slane %v5630, %v6201
        %v6203 = vlaneseq
        %v6204 = vshrl.u32 %v6203, 7
        %v6205 = vsub.s32 %v3937, %v6204
        %v6206 = vrot.slane %v5631, %v6205
        %v6207 = vsel %vm3942, %v6206, %v6202
        %v6208 = vlaneseq
        %v6209 = vshrl.u32 %v6208, 7
        %v6210 = vsub.s32 %v3944, %v6209
        %v6211 = vrot.slane %v5632, %v6210
        %v6212 = vsel %vm3949, %v6211, %v6207
        %v6213 = vlaneseq
        %v6214 = vshrl.u32 %v6213, 7
        %v6215 = vsub.s32 %v3951, %v6214
        %v6216 = vrot.slane %v5633, %v6215
        %v6217 = vsel %vm3956, %v6216, %v6212
        %v6218 = vlaneseq
        %v6219 = vshrl.u32 %v6218, 7
        %v6220 = vsub.s32 %v3958, %v6219
        %v6221 = vrot.slane %v5634, %v6220
        %v6222 = vsel %vm3963, %v6221, %v6217
        %v6223 = vlaneseq
        %v6224 = vshrl.u32 %v6223, 7
        %v6225 = vsub.s32 %v3965, %v6224
        %v6226 = vrot.slane %v5635, %v6225
        %v6227 = vsel %vm3970, %v6226, %v6222
        %v6228 = vlaneseq
        %v6229 = vshrl.u32 %v6228, 7
        %v6230 = vsub.s32 %v3972, %v6229
        %v6231 = vrot.slane %v5636, %v6230
        %v6232 = vsel %vm3977, %v6231, %v6227
        %v6233 = vlaneseq
        %v6234 = vshrl.u32 %v6233, 7
        %v6235 = vsub.s32 %v3979, %v6234
        %v6236 = vrot.slane %v5637, %v6235
        %v6237 = vsel %vm3984, %v6236, %v6232
        %v6238 = vlaneseq
        %v6239 = vshrl.u32 %v6238, 7
        %v6240 = vsub.s32 %v3986, %v6239
        %v6241 = vrot.slane %v5638, %v6240
        %v6242 = vsel %vm3991, %v6241, %v6237
        %v6243 = vlaneseq
        %v6244 = vshrl.u32 %v6243, 7
        %v6245 = vsub.s32 %v3993, %v6244
        %v6246 = vrot.slane %v5639, %v6245
        %v6247 = vsel %vm3998, %v6246, %v6242
        %v6248 = vlaneseq
        %v6249 = vshrl.u32 %v6248, 7
        %v6250 = vsub.s32 %v4000, %v6249
        %v6251 = vrot.slane %v5640, %v6250
        %v6252 = vsel %vm4005, %v6251, %v6247
        %v6253 = vlaneseq
        %v6254 = vshrl.u32 %v6253, 7
        %v6255 = vsub.s32 %v4007, %v6254
        %v6256 = vrot.slane %v5641, %v6255
        %v6257 = vsel %vm4012, %v6256, %v6252
        %v6258 = vlaneseq
        %v6259 = vshrl.u32 %v6258, 7
        %v6260 = vsub.s32 %v4014, %v6259
        %v6261 = vrot.slane %v5642, %v6260
        %v6262 = vsel %vm4019, %v6261, %v6257
        %v6263 = vlaneseq
        %v6264 = vshrl.u32 %v6263, 7
        %v6265 = vsub.s32 %v4021, %v6264
        %v6266 = vrot.slane %v5643, %v6265
        %v6267 = vsel %vm4026, %v6266, %v6262
        %v6268 = vlaneseq
        %v6269 = vshrl.u32 %v6268, 7
        %v6270 = vsub.s32 %v4028, %v6269
        %v6271 = vrot.slane %v5644, %v6270
        %v6272 = vsel %vm4033, %v6271, %v6267
        %v6273 = vlaneseq
        %v6274 = vshrl.u32 %v6273, 7
        %v6275 = vsub.s32 %v4035, %v6274
        %v6276 = vrot.slane %v5645, %v6275
        %v6277 = vsel %vm4040, %v6276, %v6272
        %v6278 = vsel %vm4595, %v5803, %v5724
        %v6279 = vsel %vm4597, %v5882, %v6278
        %v6280 = vsel %vm4599, %v5961, %v6279
        %v6281 = vsel %vm4601, %v6040, %v6280
        %v6282 = vsel %vm4603, %v6119, %v6281
        %v6283 = vsel %vm4605, %v6198, %v6282
        %v6284 = vsel %vm4607, %v6277, %v6283
        %vm6285 = vcmp.ne.s32.totalorder %v6284, 0
        %vm6286 = vmand %vm4610, %vm6285
        %v6287 = vsel %vm6286, 1, 0
        %v6288 = vcvt.s32.f32 %v6287
        %6289 = vadd.xlane.f32.xlu0 %v6288
        %v6290 = vpop.xlane.xlu0 %6289
        %v6291 = vadd.f32 %v6290, 0.0
        %vm6292 = vcmp.gt.f32.partialorder %v5512, 0.0
        %v6293 = vmax.f32 %v5512, 1.0
        %v6294 = vrcp.pop %v6293
        %v6295 = vmul.f32 %v6291, %v6294
        %v6296 = vsel %vm6292, %v6295, 0.0
        %vm6297 = vcmp.gt.f32.partialorder %v5517, 0.0
        %v6298 = vmax.f32 %v5517, 1.0
        %v6299 = vrcp.pop %v6298
        %v6300 = vmul.f32 %v6291, %v6299
        %v6301 = vsel %vm6297, %v6300, 0.0
        %v6302 = vmul.f32 %v6296, 2.0
        %v6303 = vmul.f32 %v6302, %v6301
        %v6304 = vadd.f32 %v6296, %v6301
        %v6305 = vadd.f32 %v6304, 1e-08
        %v6306 = vrcp.pop %v6305
        %v6307 = vmul.f32 %v6303, %v6306
        %vm6308 = vcmask 7168
        %6309 = vst.msk [vmem:[%s195] sm:$0xff] %vm6308, %v6307
        %p6310 = scmp.lt.s32.totalorder %s19, 1
        %s6311 = scalar_select %p6310, %s19, 1
        %s6312 = smul.addr %s6311, 8
        %s6313 = scalar_lea.vmem %s2, %s6312
        // Predicated region
        $region37: #{tpu_custom_call.1} parent=27 // pred_check
          %p6314 = pneg %p89
        $region38: #{tpu_custom_call.1} parent=27 // pred_check_branch
          %6316 = sbr.rel (%p6314) target = $region40
        $region39: #{tpu_custom_call.1} parent=27 // pred_region
          _
        $region40: #{tpu_custom_call.1} parent=27 // pred_fallthru
          _
      $region28: #{tpu_custom_call.1} parent=5 // pred_fallthru
        _
      %p6317 = scmp.le.s32.totalorder 2, %s14
      // Predicated region
      $region41: #{tpu_custom_call.1} parent=5 // pred_check
        %p6318 = pneg %p6317
      $region42: #{tpu_custom_call.1} parent=5 // pred_check_branch
        %6320 = sbr.rel (%p6318) target = $region44
      $region43: #{tpu_custom_call.1} parent=5 // pred_region
        %s6321 = ssub.s32 %s14, 2
        // Predicated region
        $region45: #{tpu_custom_call.1} parent=43 // pred_check
          %p6322 = pneg %p95
        $region46: #{tpu_custom_call.1} parent=43 // pred_check_branch
          %6324 = sbr.rel (%p6322) target = $region48
        $region47: #{tpu_custom_call.1} parent=43 // pred_region
          %p6325 = scmp.lt.s32.totalorder %s20, 1
          %s6326 = scalar_select %p6325, %s20, 1
          %s6327 = smul.addr %s6326, 8
          %s6328 = scalar_lea.vmem %s2, %s6327
        $region48: #{tpu_custom_call.1} parent=43 // pred_fallthru
          _
      $region44: #{tpu_custom_call.1} parent=5 // pred_fallthru
        _
    $region6: #{tpu_custom_call.1} parent=1 // loop_footer
      %s18 = sadd.s32 1, %s14
    $region7: #{tpu_custom_call.1} parent=1 // loop_footer_branch
      %13 = sbr.rel target = $region3
    $region8: #{tpu_custom_call.1} parent=1 // loop_exit
      _
    %6329 = vsyncpa [#allocation3], 1
    %s6330 = scalar_lea.sflag [#allocation3], 1
    %6331 = vsyncpa %s6330, 1
    %6332 = vsyncpa [#allocation5], 1
    %s6333 = scalar_lea.sflag [#allocation5], 1
    %6334 = vsyncpa %s6333, 1

</llo_original>
